<compile_context>
chip_gen: v7x
topology: tpu7x:2x2x1
jax: 0.10.0
libtpu: 0.0.40
codegen_flags: <defaults>
</compile_context>

<pallas_src>
import functools

import jax
import jax.numpy as jnp
from jax.experimental import pallas as pl
from jax.experimental.pallas import tpu as pltpu

_OUT_PAD = 128  # lane-dense padding for the scalar discriminator output


def _act(x, name):
    if name == "tanh":
        return jnp.tanh(x)
    if name == "sigmoid":
        return jax.nn.sigmoid(x)
    return x


# ----------------------------------------------------------------------------
# Fused forward kernel (one batch element / graph per grid step)
# ----------------------------------------------------------------------------
def _fused_kernel(x0_ref, a_ref, *refs, num_rel, trunk_plan, i_plan, j_plan):
    """Whole discriminator forward for one graph.

    x0_ref : (N, F)         node features
    a_ref  : (R, N, N)      relational adjacency
    refs   : flat 2-D parameter refs followed by o_ref
    o_ref  : (1, _OUT_PAD)  lane-padded scalar output
    """
    o_ref = refs[-1]
    params = refs[:-1]
    idx = [0]

    def take(n):
        out = params[idx[0]:idx[0] + n]
        idx[0] += n
        return out

    x0 = x0_ref[...]                                   # (N, F)

    def rgcn(self_terms, msg_terms, bs_ref, brf_ref, dout, act):
        # self_terms / msg_terms: list of (activation array, weight ref)
        out = bs_ref[...]                              # (1, dout) -> broadcast
        for x, w in self_terms:
            out = out + jnp.dot(x, w[...], preferred_element_type=jnp.float32)
        xw = brf_ref[...]                              # (1, R*dout) -> broadcast
        for x, w in msg_terms:                         # fused lane-dense matmul
            xw = xw + jnp.dot(x, w[...], preferred_element_type=jnp.float32)
        # message passing: sum_r A_r @ (X W_r + b_r)    (static unroll, R small)
        for r in range(num_rel):
            out = out + jnp.dot(a_ref[r], xw[:, r * dout:(r + 1) * dout],
                                preferred_element_type=jnp.float32)
        return _act(out, act)

    # ---- trunk RGCN stack (tanh) ----
    h = x0
    for dout, act in trunk_plan:
        ws, bs, wrf, brf = take(4)
        h = rgcn([(h, ws)], [(h, wrf)], bs, brf, dout, act)

    # ---- i / j branches; x0 skip-concat folded into split weights ----
    def branch(plan):
        hb = None
        for k, (dout, act) in enumerate(plan):
            if k == 0:
                ws_x, ws_h, bs, wrf_x, wrf_h, brf = take(6)
                hb = rgcn([(x0, ws_x), (h, ws_h)],
                          [(x0, wrf_x), (h, wrf_h)], bs, brf, dout, act)
            else:
                ws, bs, wrf, brf = take(4)
                hb = rgcn([(hb, ws)], [(hb, wrf)], bs, brf, dout, act)
        return hb

    i_out = branch(i_plan)
    j_out = branch(j_plan)

    # ---- graph readout + final MLP ----
    pooled = jnp.tanh(jnp.sum(i_out * j_out, axis=0, keepdims=True))   # (1, D)
    w1, b1, w2p, b2p = take(4)
    hmlp = jnp.tanh(jnp.dot(pooled, w1[...],
                            preferred_element_type=jnp.float32) + b1[...])
    o_ref[...] = (jnp.dot(hmlp, w2p[...],
                          preferred_element_type=jnp.float32) + b2p[...])


# ----------------------------------------------------------------------------
# Wrapper around the single pallas_call
# ----------------------------------------------------------------------------
def _fused_forward(x0, a, params, *, num_rel, trunk_plan, i_plan, j_plan):
    B, N, F = x0.shape
    R = a.shape[1]
    assert R == num_rel

    kernel = functools.partial(
        _fused_kernel, num_rel=num_rel,
        trunk_plan=tuple(trunk_plan), i_plan=tuple(i_plan),
        j_plan=tuple(j_plan))

    in_specs = [
        pl.BlockSpec((None, N, F), lambda b: (b, 0, 0)),
        pl.BlockSpec((None, R, N, N), lambda b: (b, 0, 0, 0)),
    ]
    for p in params:
        assert p.ndim == 2
        in_specs.append(pl.BlockSpec(p.shape, lambda b: (0, 0)))

    # advisory cost estimate so XLA schedules around this as a cheap call
    douts = [d for d, _ in list(trunk_plan) + list(i_plan) + list(j_plan)]
    weight_elems = sum(int(p.size) for p in params if p.shape[0] > 1)
    cost = pl.CostEstimate(
        flops=int(B * (2 * N * weight_elems + 2 * R * N * N * sum(douts))),
        transcendentals=int(B * (N * sum(douts) + 2 * _OUT_PAD)),
        bytes_accessed=int(4 * (x0.size + a.size
                                + sum(int(p.size) for p in params)
                                + B * _OUT_PAD)))

    out = pl.pallas_call(
        kernel,
        out_shape=jax.ShapeDtypeStruct((B, 1, _OUT_PAD), jnp.float32),
        grid=(B,),
        in_specs=in_specs,
        out_specs=pl.BlockSpec((None, 1, _OUT_PAD), lambda b: (b, 0, 0)),
        compiler_params=pltpu.CompilerParams(
            dimension_semantics=("parallel",)),
        cost_estimate=cost,
    )(x0, a, *params)
    return out[:, 0, :1]                               # (B, 1)


# ----------------------------------------------------------------------------
# Deterministic parameter construction (PyTorch nn.Linear-style init)
# ----------------------------------------------------------------------------
def _linear_init(key, din, dout):
    k1, k2 = jax.random.split(key)
    bound = din ** -0.5
    w = jax.random.uniform(k1, (din, dout), jnp.float32, -bound, bound)
    b = jax.random.uniform(k2, (1, dout), jnp.float32, -bound, bound)
    return w, b


def _rgcn_init(key, din, dout, num_rel):
    keys = jax.random.split(key, num_rel + 1)
    ws, bs = _linear_init(keys[0], din, dout)
    wr, br = [], []
    for r in range(num_rel):
        w, b = _linear_init(keys[r + 1], din, dout)
        wr.append(w)
        br.append(b)
    wrf = jnp.concatenate(wr, axis=1)      # (din, R*dout), lane-dense fused form
    brf = jnp.concatenate(br, axis=1)      # (1, R*dout)
    return ws, bs, wrf, brf


class DiscriminatorPallas:
    """Eq. (6) of the MolGAN paper, forward pass only (eval mode)."""

    def __init__(self, rgcn_dims, i_dims, j_dims, final_mlp_dims,
                 num_mols=5, num_rel=4, key=None):
        assert len(rgcn_dims) > 0
        assert i_dims[-1] == j_dims[-1]
        key = jax.random.PRNGKey(42) if key is None else key
        self.num_rel = num_rel
        self.input_dim = num_mols

        dims0 = [self.input_dim] + list(rgcn_dims)
        idims = [self.input_dim + rgcn_dims[-1]] + list(i_dims)
        jdims = [self.input_dim + rgcn_dims[-1]] + list(j_dims)
        mdims = [i_dims[-1]] + list(final_mlp_dims) + [1]
        assert len(mdims) == 3, "demo supports one hidden MLP layer"

        n_keys = (len(dims0) - 1) + (len(idims) - 1) + (len(jdims) - 1) + 2
        keys = iter(jax.random.split(key, n_keys))

        # trunk RGCN stack
        self.trunk_plan, trunk_params = [], []
        for k in range(len(dims0) - 1):
            ws, bs, wrf, brf = _rgcn_init(next(keys), dims0[k], dims0[k + 1],
                                          num_rel)
            trunk_params += [ws, bs, wrf, brf]
            self.trunk_plan.append((dims0[k + 1], "tanh"))

        # i / j branches: first layer consumes cat([x0, h_trunk]); weights are
        # pre-split so the concat never needs to be materialized in the kernel.
        F = self.input_dim

        def build_branch(dims):
            plan, flat = [], []
            for k in range(len(dims) - 1):
                act = "sigmoid" if k == len(dims) - 2 else "tanh"
                ws, bs, wrf, brf = _rgcn_init(next(keys), dims[k], dims[k + 1],
                                              num_rel)
                if k == 0:
                    flat += [ws[:F], ws[F:], bs, wrf[:F], wrf[F:], brf]
                else:
                    flat += [ws, bs, wrf, brf]
                plan.append((dims[k + 1], act))
            return plan, flat

        self.i_plan, i_params = build_branch(idims)
        self.j_plan, j_params = build_branch(jdims)

        # final MLP (tanh hidden, no final activation); last layer padded to
        # 128 output lanes so the kernel's final store is lane-dense.
        w1, b1 = _linear_init(next(keys), mdims[0], mdims[1])
        w2, b2 = _linear_init(next(keys), mdims[1], mdims[2])
        w2p = jnp.zeros((mdims[1], _OUT_PAD), jnp.float32).at[:, :1].set(w2)
        b2p = jnp.zeros((1, _OUT_PAD), jnp.float32).at[:, :1].set(b2)
        mlp_params = [w1, b1, w2p, b2p]

        self.params = trunk_params + i_params + j_params + mlp_params

    def __call__(self, inputs):
        x0, a = inputs
        out = _fused_forward(
            x0, a, self.params, num_rel=self.num_rel,
            trunk_plan=self.trunk_plan, i_plan=self.i_plan,
            j_plan=self.j_plan)
        return out, a


# ----------------------------------------------------------------------------
# Pure-jnp reference (same parameters) for validation
# ----------------------------------------------------------------------------
def _reference_forward(disc, x0, a):
    R = disc.num_rel
    params = list(disc.params)
    idx = [0]

    def take(n):
        out = params[idx[0]:idx[0] + n]
        idx[0] += n
        return out

    def rgcn(self_terms, msg_terms, bs, brf, dout, act):
        out = bs
        for x, w in self_terms:
            out = out + jnp.matmul(x, w)
        xw = brf
        for x, w in msg_terms:
            xw = xw + jnp.matmul(x, w)
        for r in range(R):
            out = out + jnp.matmul(a[:, r], xw[..., r * dout:(r + 1) * dout])
        return _act(out, act)

    h = x0
    for dout, act in disc.trunk_plan:
        ws, bs, wrf, brf = take(4)
        h = rgcn([(h, ws)], [(h, wrf)], bs, brf, dout, act)

    def branch(plan):
        hb = None
        for k, (dout, act) in enumerate(plan):
            if k == 0:
                ws_x, ws_h, bs, wrf_x, wrf_h, brf = take(6)
                hb = rgcn([(x0, ws_x), (h, ws_h)],
                          [(x0, wrf_x), (h, wrf_h)], bs, brf, dout, act)
            else:
                ws, bs, wrf, brf = take(4)
                hb = rgcn([(hb, ws)], [(hb, wrf)], bs, brf, dout, act)
        return hb

    i_out = branch(disc.i_plan)
    j_out = branch(disc.j_plan)
    pooled = jnp.tanh(jnp.sum(i_out * j_out, axis=-2))          # (B, D)
    w1, b1, w2p, b2p = take(4)
    hmlp = jnp.tanh(pooled @ w1 + b1)
    return (hmlp @ w2p + b2p)[:, :1]


if __name__ == "__main__":
    B, N = 2, 9           # batch, number of atoms/nodes
    NUM_MOLS = 5          # atom types  (len(MOLS))
    NUM_REL = 4           # bond types  (relations in the adjacency tensor)

    key = jax.random.PRNGKey(0)
    kx, ka = jax.random.split(key)
    x0 = jax.nn.softmax(jax.random.normal(kx, (B, N, NUM_MOLS), jnp.float32),
                        axis=-1)
    a = jax.random.uniform(ka, (B, NUM_REL, N, N), jnp.float32)
    a = 0.5 * (a + jnp.swapaxes(a, -1, -2))   # symmetric adjacency

    disc = DiscriminatorPallas(rgcn_dims=[32, 16], i_dims=[16], j_dims=[16],
                               final_mlp_dims=[32], num_mols=NUM_MOLS,
                               num_rel=NUM_REL)
    out, a_out = disc((x0, a))
    jax.block_until_ready(out)
    assert out.shape == (B, 1) and a_out.shape == a.shape

    ref = _reference_forward(disc, x0, a)
    assert jnp.allclose(out, ref, atol=5e-3, rtol=5e-3)
    print("KERNEL_OK")
</pallas_src>

<mosaic_0001>
module attributes {stable_mosaic.version = 11 : i64} {
  func.func @_fused_kernel(%arg0: i32, %arg1: memref<1x9x5xf32, #tpu.memory_space<vmem>>, %arg2: memref<1x4x9x9xf32, #tpu.memory_space<vmem>>, %arg3: memref<5x32xf32, #tpu.memory_space<vmem>>, %arg4: memref<1x32xf32, #tpu.memory_space<vmem>>, %arg5: memref<5x128xf32, #tpu.memory_space<vmem>>, %arg6: memref<1x128xf32, #tpu.memory_space<vmem>>, %arg7: memref<32x16xf32, #tpu.memory_space<vmem>>, %arg8: memref<1x16xf32, #tpu.memory_space<vmem>>, %arg9: memref<32x64xf32, #tpu.memory_space<vmem>>, %arg10: memref<1x64xf32, #tpu.memory_space<vmem>>, %arg11: memref<5x16xf32, #tpu.memory_space<vmem>>, %arg12: memref<16x16xf32, #tpu.memory_space<vmem>>, %arg13: memref<1x16xf32, #tpu.memory_space<vmem>>, %arg14: memref<5x64xf32, #tpu.memory_space<vmem>>, %arg15: memref<16x64xf32, #tpu.memory_space<vmem>>, %arg16: memref<1x64xf32, #tpu.memory_space<vmem>>, %arg17: memref<5x16xf32, #tpu.memory_space<vmem>>, %arg18: memref<16x16xf32, #tpu.memory_space<vmem>>, %arg19: memref<1x16xf32, #tpu.memory_space<vmem>>, %arg20: memref<5x64xf32, #tpu.memory_space<vmem>>, %arg21: memref<16x64xf32, #tpu.memory_space<vmem>>, %arg22: memref<1x64xf32, #tpu.memory_space<vmem>>, %arg23: memref<16x32xf32, #tpu.memory_space<vmem>>, %arg24: memref<1x32xf32, #tpu.memory_space<vmem>>, %arg25: memref<32x128xf32, #tpu.memory_space<vmem>>, %arg26: memref<1x128xf32, #tpu.memory_space<vmem>>, %arg27: memref<1x1x128xf32, #tpu.memory_space<vmem>>) attributes {dimension_semantics = [#tpu.dimension_semantics<parallel>], iteration_bounds = array<i64: 2>, scalar_prefetch = 0 : i64, scratch_operands = 0 : i64, tpu.core_type = #tpu.core_type<tc>, window_params = [{transform_indices = @transform_0, window_bounds = array<i64: 1, 9, 5>}, {transform_indices = @transform_1, window_bounds = array<i64: 1, 4, 9, 9>}, {pipeline_mode = #tpu.pipeline_mode<synchronous>, transform_indices = @transform_2, window_bounds = array<i64: 5, 32>}, {pipeline_mode = #tpu.pipeline_mode<synchronous>, transform_indices = @transform_3, window_bounds = array<i64: 1, 32>}, {pipeline_mode = #tpu.pipeline_mode<synchronous>, transform_indices = @transform_4, window_bounds = array<i64: 5, 128>}, {pipeline_mode = #tpu.pipeline_mode<synchronous>, transform_indices = @transform_5, window_bounds = array<i64: 1, 128>}, {pipeline_mode = #tpu.pipeline_mode<synchronous>, transform_indices = @transform_6, window_bounds = array<i64: 32, 16>}, {pipeline_mode = #tpu.pipeline_mode<synchronous>, transform_indices = @transform_7, window_bounds = array<i64: 1, 16>}, {pipeline_mode = #tpu.pipeline_mode<synchronous>, transform_indices = @transform_8, window_bounds = array<i64: 32, 64>}, {pipeline_mode = #tpu.pipeline_mode<synchronous>, transform_indices = @transform_9, window_bounds = array<i64: 1, 64>}, {pipeline_mode = #tpu.pipeline_mode<synchronous>, transform_indices = @transform_10, window_bounds = array<i64: 5, 16>}, {pipeline_mode = #tpu.pipeline_mode<synchronous>, transform_indices = @transform_11, window_bounds = array<i64: 16, 16>}, {pipeline_mode = #tpu.pipeline_mode<synchronous>, transform_indices = @transform_12, window_bounds = array<i64: 1, 16>}, {pipeline_mode = #tpu.pipeline_mode<synchronous>, transform_indices = @transform_13, window_bounds = array<i64: 5, 64>}, {pipeline_mode = #tpu.pipeline_mode<synchronous>, transform_indices = @transform_14, window_bounds = array<i64: 16, 64>}, {pipeline_mode = #tpu.pipeline_mode<synchronous>, transform_indices = @transform_15, window_bounds = array<i64: 1, 64>}, {pipeline_mode = #tpu.pipeline_mode<synchronous>, transform_indices = @transform_16, window_bounds = array<i64: 5, 16>}, {pipeline_mode = #tpu.pipeline_mode<synchronous>, transform_indices = @transform_17, window_bounds = array<i64: 16, 16>}, {pipeline_mode = #tpu.pipeline_mode<synchronous>, transform_indices = @transform_18, window_bounds = array<i64: 1, 16>}, {pipeline_mode = #tpu.pipeline_mode<synchronous>, transform_indices = @transform_19, window_bounds = array<i64: 5, 64>}, {pipeline_mode = #tpu.pipeline_mode<synchronous>, transform_indices = @transform_20, window_bounds = array<i64: 16, 64>}, {pipeline_mode = #tpu.pipeline_mode<synchronous>, transform_indices = @transform_21, window_bounds = array<i64: 1, 64>}, {pipeline_mode = #tpu.pipeline_mode<synchronous>, transform_indices = @transform_22, window_bounds = array<i64: 16, 32>}, {pipeline_mode = #tpu.pipeline_mode<synchronous>, transform_indices = @transform_23, window_bounds = array<i64: 1, 32>}, {pipeline_mode = #tpu.pipeline_mode<synchronous>, transform_indices = @transform_24, window_bounds = array<i64: 32, 128>}, {pipeline_mode = #tpu.pipeline_mode<synchronous>, transform_indices = @transform_25, window_bounds = array<i64: 1, 128>}, {transform_indices = @transform_26, window_bounds = array<i64: 1, 1, 128>}]} {
    %c0 = arith.constant 0 : index
    %c0_0 = arith.constant 0 : index
    %c0_1 = arith.constant 0 : index
    %0 = vector.load %arg1[%c0, %c0_0, %c0_1] : memref<1x9x5xf32, #tpu.memory_space<vmem>>, vector<1x9x5xf32>
    %1 = vector.shape_cast %0 : vector<1x9x5xf32> to vector<9x5xf32>
    %c0_2 = arith.constant 0 : index
    %c0_3 = arith.constant 0 : index
    %2 = vector.load %arg4[%c0_2, %c0_3] : memref<1x32xf32, #tpu.memory_space<vmem>>, vector<1x32xf32>
    %c0_4 = arith.constant 0 : index
    %c0_5 = arith.constant 0 : index
    %3 = vector.load %arg3[%c0_4, %c0_5] : memref<5x32xf32, #tpu.memory_space<vmem>>, vector<5x32xf32>
    %cst = arith.constant dense<0.000000e+00> : vector<9x32xf32>
    %4 = tpu.matmul %1, %3, %cst {dimension_numbers = #tpu.dot_dimension_numbers<[1], [0], [0], [1], [0, 0, 1, 1], [], []>} : vector<9x5xf32>, vector<5x32xf32>, vector<9x32xf32> -> vector<9x32xf32>
    %5 = vector.broadcast %2 : vector<1x32xf32> to vector<9x32xf32>
    %6 = arith.addf %5, %4 : vector<9x32xf32>
    %c0_6 = arith.constant 0 : index
    %c0_7 = arith.constant 0 : index
    %7 = vector.load %arg6[%c0_6, %c0_7] : memref<1x128xf32, #tpu.memory_space<vmem>>, vector<1x128xf32>
    %c0_8 = arith.constant 0 : index
    %c0_9 = arith.constant 0 : index
    %8 = vector.load %arg5[%c0_8, %c0_9] : memref<5x128xf32, #tpu.memory_space<vmem>>, vector<5x128xf32>
    %cst_10 = arith.constant dense<0.000000e+00> : vector<9x128xf32>
    %9 = tpu.matmul %1, %8, %cst_10 {dimension_numbers = #tpu.dot_dimension_numbers<[1], [0], [0], [1], [0, 0, 1, 1], [], []>} : vector<9x5xf32>, vector<5x128xf32>, vector<9x128xf32> -> vector<9x128xf32>
    %10 = vector.broadcast %7 : vector<1x128xf32> to vector<9x128xf32>
    %11 = arith.addf %10, %9 : vector<9x128xf32>
    %c0_11 = arith.constant 0 : index
    %c0_12 = arith.constant 0 : index
    %c0_13 = arith.constant 0 : index
    %c0_14 = arith.constant 0 : index
    %12 = vector.load %arg2[%c0_11, %c0_12, %c0_13, %c0_14] : memref<1x4x9x9xf32, #tpu.memory_space<vmem>>, vector<1x1x9x9xf32>
    %13 = vector.shape_cast %12 : vector<1x1x9x9xf32> to vector<9x9xf32>
    %14 = vector.extract_strided_slice %11 {offsets = [0, 0], sizes = [9, 32], strides = [1, 1]} : vector<9x128xf32> to vector<9x32xf32>
    %cst_15 = arith.constant dense<0.000000e+00> : vector<9x32xf32>
    %15 = tpu.matmul %13, %14, %cst_15 {dimension_numbers = #tpu.dot_dimension_numbers<[1], [0], [0], [1], [0, 0, 1, 1], [], []>} : vector<9x9xf32>, vector<9x32xf32>, vector<9x32xf32> -> vector<9x32xf32>
    %16 = arith.addf %6, %15 : vector<9x32xf32>
    %c0_16 = arith.constant 0 : index
    %c1 = arith.constant 1 : index
    %c0_17 = arith.constant 0 : index
    %c0_18 = arith.constant 0 : index
    %17 = vector.load %arg2[%c0_16, %c1, %c0_17, %c0_18] : memref<1x4x9x9xf32, #tpu.memory_space<vmem>>, vector<1x1x9x9xf32>
    %18 = vector.shape_cast %17 : vector<1x1x9x9xf32> to vector<9x9xf32>
    %19 = vector.extract_strided_slice %11 {offsets = [0, 32], sizes = [9, 32], strides = [1, 1]} : vector<9x128xf32> to vector<9x32xf32>
    %cst_19 = arith.constant dense<0.000000e+00> : vector<9x32xf32>
    %20 = tpu.matmul %18, %19, %cst_19 {dimension_numbers = #tpu.dot_dimension_numbers<[1], [0], [0], [1], [0, 0, 1, 1], [], []>} : vector<9x9xf32>, vector<9x32xf32>, vector<9x32xf32> -> vector<9x32xf32>
    %21 = arith.addf %16, %20 : vector<9x32xf32>
    %c0_20 = arith.constant 0 : index
    %c2 = arith.constant 2 : index
    %c0_21 = arith.constant 0 : index
    %c0_22 = arith.constant 0 : index
    %22 = vector.load %arg2[%c0_20, %c2, %c0_21, %c0_22] : memref<1x4x9x9xf32, #tpu.memory_space<vmem>>, vector<1x1x9x9xf32>
    %23 = vector.shape_cast %22 : vector<1x1x9x9xf32> to vector<9x9xf32>
    %24 = vector.extract_strided_slice %11 {offsets = [0, 64], sizes = [9, 32], strides = [1, 1]} : vector<9x128xf32> to vector<9x32xf32>
    %cst_23 = arith.constant dense<0.000000e+00> : vector<9x32xf32>
    %25 = tpu.matmul %23, %24, %cst_23 {dimension_numbers = #tpu.dot_dimension_numbers<[1], [0], [0], [1], [0, 0, 1, 1], [], []>} : vector<9x9xf32>, vector<9x32xf32>, vector<9x32xf32> -> vector<9x32xf32>
    %26 = arith.addf %21, %25 : vector<9x32xf32>
    %c0_24 = arith.constant 0 : index
    %c3 = arith.constant 3 : index
    %c0_25 = arith.constant 0 : index
    %c0_26 = arith.constant 0 : index
    %27 = vector.load %arg2[%c0_24, %c3, %c0_25, %c0_26] : memref<1x4x9x9xf32, #tpu.memory_space<vmem>>, vector<1x1x9x9xf32>
    %28 = vector.shape_cast %27 : vector<1x1x9x9xf32> to vector<9x9xf32>
    %29 = vector.extract_strided_slice %11 {offsets = [0, 96], sizes = [9, 32], strides = [1, 1]} : vector<9x128xf32> to vector<9x32xf32>
    %cst_27 = arith.constant dense<0.000000e+00> : vector<9x32xf32>
    %30 = tpu.matmul %28, %29, %cst_27 {dimension_numbers = #tpu.dot_dimension_numbers<[1], [0], [0], [1], [0, 0, 1, 1], [], []>} : vector<9x9xf32>, vector<9x32xf32>, vector<9x32xf32> -> vector<9x32xf32>
    %31 = arith.addf %26, %30 : vector<9x32xf32>
    %32 = math.tanh %31 : vector<9x32xf32>
    %c0_28 = arith.constant 0 : index
    %c0_29 = arith.constant 0 : index
    %33 = vector.load %arg8[%c0_28, %c0_29] : memref<1x16xf32, #tpu.memory_space<vmem>>, vector<1x16xf32>
    %c0_30 = arith.constant 0 : index
    %c0_31 = arith.constant 0 : index
    %34 = vector.load %arg7[%c0_30, %c0_31] : memref<32x16xf32, #tpu.memory_space<vmem>>, vector<32x16xf32>
    %cst_32 = arith.constant dense<0.000000e+00> : vector<9x16xf32>
    %35 = tpu.matmul %32, %34, %cst_32 {dimension_numbers = #tpu.dot_dimension_numbers<[1], [0], [0], [1], [0, 0, 1, 1], [], []>} : vector<9x32xf32>, vector<32x16xf32>, vector<9x16xf32> -> vector<9x16xf32>
    %36 = vector.broadcast %33 : vector<1x16xf32> to vector<9x16xf32>
    %37 = arith.addf %36, %35 : vector<9x16xf32>
    %c0_33 = arith.constant 0 : index
    %c0_34 = arith.constant 0 : index
    %38 = vector.load %arg10[%c0_33, %c0_34] : memref<1x64xf32, #tpu.memory_space<vmem>>, vector<1x64xf32>
    %c0_35 = arith.constant 0 : index
    %c0_36 = arith.constant 0 : index
    %39 = vector.load %arg9[%c0_35, %c0_36] : memref<32x64xf32, #tpu.memory_space<vmem>>, vector<32x64xf32>
    %cst_37 = arith.constant dense<0.000000e+00> : vector<9x64xf32>
    %40 = tpu.matmul %32, %39, %cst_37 {dimension_numbers = #tpu.dot_dimension_numbers<[1], [0], [0], [1], [0, 0, 1, 1], [], []>} : vector<9x32xf32>, vector<32x64xf32>, vector<9x64xf32> -> vector<9x64xf32>
    %41 = vector.broadcast %38 : vector<1x64xf32> to vector<9x64xf32>
    %42 = arith.addf %41, %40 : vector<9x64xf32>
    %c0_38 = arith.constant 0 : index
    %c0_39 = arith.constant 0 : index
    %c0_40 = arith.constant 0 : index
    %c0_41 = arith.constant 0 : index
    %43 = vector.load %arg2[%c0_38, %c0_39, %c0_40, %c0_41] : memref<1x4x9x9xf32, #tpu.memory_space<vmem>>, vector<1x1x9x9xf32>
    %44 = vector.shape_cast %43 : vector<1x1x9x9xf32> to vector<9x9xf32>
    %45 = vector.extract_strided_slice %42 {offsets = [0, 0], sizes = [9, 16], strides = [1, 1]} : vector<9x64xf32> to vector<9x16xf32>
    %cst_42 = arith.constant dense<0.000000e+00> : vector<9x16xf32>
    %46 = tpu.matmul %44, %45, %cst_42 {dimension_numbers = #tpu.dot_dimension_numbers<[1], [0], [0], [1], [0, 0, 1, 1], [], []>} : vector<9x9xf32>, vector<9x16xf32>, vector<9x16xf32> -> vector<9x16xf32>
    %47 = arith.addf %37, %46 : vector<9x16xf32>
    %c0_43 = arith.constant 0 : index
    %c1_44 = arith.constant 1 : index
    %c0_45 = arith.constant 0 : index
    %c0_46 = arith.constant 0 : index
    %48 = vector.load %arg2[%c0_43, %c1_44, %c0_45, %c0_46] : memref<1x4x9x9xf32, #tpu.memory_space<vmem>>, vector<1x1x9x9xf32>
    %49 = vector.shape_cast %48 : vector<1x1x9x9xf32> to vector<9x9xf32>
    %50 = vector.extract_strided_slice %42 {offsets = [0, 16], sizes = [9, 16], strides = [1, 1]} : vector<9x64xf32> to vector<9x16xf32>
    %cst_47 = arith.constant dense<0.000000e+00> : vector<9x16xf32>
    %51 = tpu.matmul %49, %50, %cst_47 {dimension_numbers = #tpu.dot_dimension_numbers<[1], [0], [0], [1], [0, 0, 1, 1], [], []>} : vector<9x9xf32>, vector<9x16xf32>, vector<9x16xf32> -> vector<9x16xf32>
    %52 = arith.addf %47, %51 : vector<9x16xf32>
    %c0_48 = arith.constant 0 : index
    %c2_49 = arith.constant 2 : index
    %c0_50 = arith.constant 0 : index
    %c0_51 = arith.constant 0 : index
    %53 = vector.load %arg2[%c0_48, %c2_49, %c0_50, %c0_51] : memref<1x4x9x9xf32, #tpu.memory_space<vmem>>, vector<1x1x9x9xf32>
    %54 = vector.shape_cast %53 : vector<1x1x9x9xf32> to vector<9x9xf32>
    %55 = vector.extract_strided_slice %42 {offsets = [0, 32], sizes = [9, 16], strides = [1, 1]} : vector<9x64xf32> to vector<9x16xf32>
    %cst_52 = arith.constant dense<0.000000e+00> : vector<9x16xf32>
    %56 = tpu.matmul %54, %55, %cst_52 {dimension_numbers = #tpu.dot_dimension_numbers<[1], [0], [0], [1], [0, 0, 1, 1], [], []>} : vector<9x9xf32>, vector<9x16xf32>, vector<9x16xf32> -> vector<9x16xf32>
    %57 = arith.addf %52, %56 : vector<9x16xf32>
    %c0_53 = arith.constant 0 : index
    %c3_54 = arith.constant 3 : index
    %c0_55 = arith.constant 0 : index
    %c0_56 = arith.constant 0 : index
    %58 = vector.load %arg2[%c0_53, %c3_54, %c0_55, %c0_56] : memref<1x4x9x9xf32, #tpu.memory_space<vmem>>, vector<1x1x9x9xf32>
    %59 = vector.shape_cast %58 : vector<1x1x9x9xf32> to vector<9x9xf32>
    %60 = vector.extract_strided_slice %42 {offsets = [0, 48], sizes = [9, 16], strides = [1, 1]} : vector<9x64xf32> to vector<9x16xf32>
    %cst_57 = arith.constant dense<0.000000e+00> : vector<9x16xf32>
    %61 = tpu.matmul %59, %60, %cst_57 {dimension_numbers = #tpu.dot_dimension_numbers<[1], [0], [0], [1], [0, 0, 1, 1], [], []>} : vector<9x9xf32>, vector<9x16xf32>, vector<9x16xf32> -> vector<9x16xf32>
    %62 = arith.addf %57, %61 : vector<9x16xf32>
    %63 = math.tanh %62 : vector<9x16xf32>
    %c0_58 = arith.constant 0 : index
    %c0_59 = arith.constant 0 : index
    %64 = vector.load %arg13[%c0_58, %c0_59] : memref<1x16xf32, #tpu.memory_space<vmem>>, vector<1x16xf32>
    %c0_60 = arith.constant 0 : index
    %c0_61 = arith.constant 0 : index
    %65 = vector.load %arg11[%c0_60, %c0_61] : memref<5x16xf32, #tpu.memory_space<vmem>>, vector<5x16xf32>
    %cst_62 = arith.constant dense<0.000000e+00> : vector<9x16xf32>
    %66 = tpu.matmul %1, %65, %cst_62 {dimension_numbers = #tpu.dot_dimension_numbers<[1], [0], [0], [1], [0, 0, 1, 1], [], []>} : vector<9x5xf32>, vector<5x16xf32>, vector<9x16xf32> -> vector<9x16xf32>
    %67 = vector.broadcast %64 : vector<1x16xf32> to vector<9x16xf32>
    %68 = arith.addf %67, %66 : vector<9x16xf32>
    %c0_63 = arith.constant 0 : index
    %c0_64 = arith.constant 0 : index
    %69 = vector.load %arg12[%c0_63, %c0_64] : memref<16x16xf32, #tpu.memory_space<vmem>>, vector<16x16xf32>
    %cst_65 = arith.constant dense<0.000000e+00> : vector<9x16xf32>
    %70 = tpu.matmul %63, %69, %cst_65 {dimension_numbers = #tpu.dot_dimension_numbers<[1], [0], [0], [1], [0, 0, 1, 1], [], []>} : vector<9x16xf32>, vector<16x16xf32>, vector<9x16xf32> -> vector<9x16xf32>
    %71 = arith.addf %68, %70 : vector<9x16xf32>
    %c0_66 = arith.constant 0 : index
    %c0_67 = arith.constant 0 : index
    %72 = vector.load %arg16[%c0_66, %c0_67] : memref<1x64xf32, #tpu.memory_space<vmem>>, vector<1x64xf32>
    %c0_68 = arith.constant 0 : index
    %c0_69 = arith.constant 0 : index
    %73 = vector.load %arg14[%c0_68, %c0_69] : memref<5x64xf32, #tpu.memory_space<vmem>>, vector<5x64xf32>
    %cst_70 = arith.constant dense<0.000000e+00> : vector<9x64xf32>
    %74 = tpu.matmul %1, %73, %cst_70 {dimension_numbers = #tpu.dot_dimension_numbers<[1], [0], [0], [1], [0, 0, 1, 1], [], []>} : vector<9x5xf32>, vector<5x64xf32>, vector<9x64xf32> -> vector<9x64xf32>
    %75 = vector.broadcast %72 : vector<1x64xf32> to vector<9x64xf32>
    %76 = arith.addf %75, %74 : vector<9x64xf32>
    %c0_71 = arith.constant 0 : index
    %c0_72 = arith.constant 0 : index
    %77 = vector.load %arg15[%c0_71, %c0_72] : memref<16x64xf32, #tpu.memory_space<vmem>>, vector<16x64xf32>
    %cst_73 = arith.constant dense<0.000000e+00> : vector<9x64xf32>
    %78 = tpu.matmul %63, %77, %cst_73 {dimension_numbers = #tpu.dot_dimension_numbers<[1], [0], [0], [1], [0, 0, 1, 1], [], []>} : vector<9x16xf32>, vector<16x64xf32>, vector<9x64xf32> -> vector<9x64xf32>
    %79 = arith.addf %76, %78 : vector<9x64xf32>
    %c0_74 = arith.constant 0 : index
    %c0_75 = arith.constant 0 : index
    %c0_76 = arith.constant 0 : index
    %c0_77 = arith.constant 0 : index
    %80 = vector.load %arg2[%c0_74, %c0_75, %c0_76, %c0_77] : memref<1x4x9x9xf32, #tpu.memory_space<vmem>>, vector<1x1x9x9xf32>
    %81 = vector.shape_cast %80 : vector<1x1x9x9xf32> to vector<9x9xf32>
    %82 = vector.extract_strided_slice %79 {offsets = [0, 0], sizes = [9, 16], strides = [1, 1]} : vector<9x64xf32> to vector<9x16xf32>
    %cst_78 = arith.constant dense<0.000000e+00> : vector<9x16xf32>
    %83 = tpu.matmul %81, %82, %cst_78 {dimension_numbers = #tpu.dot_dimension_numbers<[1], [0], [0], [1], [0, 0, 1, 1], [], []>} : vector<9x9xf32>, vector<9x16xf32>, vector<9x16xf32> -> vector<9x16xf32>
    %84 = arith.addf %71, %83 : vector<9x16xf32>
    %c0_79 = arith.constant 0 : index
    %c1_80 = arith.constant 1 : index
    %c0_81 = arith.constant 0 : index
    %c0_82 = arith.constant 0 : index
    %85 = vector.load %arg2[%c0_79, %c1_80, %c0_81, %c0_82] : memref<1x4x9x9xf32, #tpu.memory_space<vmem>>, vector<1x1x9x9xf32>
    %86 = vector.shape_cast %85 : vector<1x1x9x9xf32> to vector<9x9xf32>
    %87 = vector.extract_strided_slice %79 {offsets = [0, 16], sizes = [9, 16], strides = [1, 1]} : vector<9x64xf32> to vector<9x16xf32>
    %cst_83 = arith.constant dense<0.000000e+00> : vector<9x16xf32>
    %88 = tpu.matmul %86, %87, %cst_83 {dimension_numbers = #tpu.dot_dimension_numbers<[1], [0], [0], [1], [0, 0, 1, 1], [], []>} : vector<9x9xf32>, vector<9x16xf32>, vector<9x16xf32> -> vector<9x16xf32>
    %89 = arith.addf %84, %88 : vector<9x16xf32>
    %c0_84 = arith.constant 0 : index
    %c2_85 = arith.constant 2 : index
    %c0_86 = arith.constant 0 : index
    %c0_87 = arith.constant 0 : index
    %90 = vector.load %arg2[%c0_84, %c2_85, %c0_86, %c0_87] : memref<1x4x9x9xf32, #tpu.memory_space<vmem>>, vector<1x1x9x9xf32>
    %91 = vector.shape_cast %90 : vector<1x1x9x9xf32> to vector<9x9xf32>
    %92 = vector.extract_strided_slice %79 {offsets = [0, 32], sizes = [9, 16], strides = [1, 1]} : vector<9x64xf32> to vector<9x16xf32>
    %cst_88 = arith.constant dense<0.000000e+00> : vector<9x16xf32>
    %93 = tpu.matmul %91, %92, %cst_88 {dimension_numbers = #tpu.dot_dimension_numbers<[1], [0], [0], [1], [0, 0, 1, 1], [], []>} : vector<9x9xf32>, vector<9x16xf32>, vector<9x16xf32> -> vector<9x16xf32>
    %94 = arith.addf %89, %93 : vector<9x16xf32>
    %c0_89 = arith.constant 0 : index
    %c3_90 = arith.constant 3 : index
    %c0_91 = arith.constant 0 : index
    %c0_92 = arith.constant 0 : index
    %95 = vector.load %arg2[%c0_89, %c3_90, %c0_91, %c0_92] : memref<1x4x9x9xf32, #tpu.memory_space<vmem>>, vector<1x1x9x9xf32>
    %96 = vector.shape_cast %95 : vector<1x1x9x9xf32> to vector<9x9xf32>
    %97 = vector.extract_strided_slice %79 {offsets = [0, 48], sizes = [9, 16], strides = [1, 1]} : vector<9x64xf32> to vector<9x16xf32>
    %cst_93 = arith.constant dense<0.000000e+00> : vector<9x16xf32>
    %98 = tpu.matmul %96, %97, %cst_93 {dimension_numbers = #tpu.dot_dimension_numbers<[1], [0], [0], [1], [0, 0, 1, 1], [], []>} : vector<9x9xf32>, vector<9x16xf32>, vector<9x16xf32> -> vector<9x16xf32>
    %99 = arith.addf %94, %98 : vector<9x16xf32>
    %100 = arith.negf %99 : vector<9x16xf32>
    %101 = math.exp %100 : vector<9x16xf32>
    %cst_94 = arith.constant 1.000000e+00 : f32
    %102 = vector.broadcast %cst_94 : f32 to vector<9x16xf32>
    %103 = arith.addf %102, %101 : vector<9x16xf32>
    %104 = arith.divf %102, %103 : vector<9x16xf32>
    %c0_95 = arith.constant 0 : index
    %c0_96 = arith.constant 0 : index
    %105 = vector.load %arg19[%c0_95, %c0_96] : memref<1x16xf32, #tpu.memory_space<vmem>>, vector<1x16xf32>
    %c0_97 = arith.constant 0 : index
    %c0_98 = arith.constant 0 : index
    %106 = vector.load %arg17[%c0_97, %c0_98] : memref<5x16xf32, #tpu.memory_space<vmem>>, vector<5x16xf32>
    %cst_99 = arith.constant dense<0.000000e+00> : vector<9x16xf32>
    %107 = tpu.matmul %1, %106, %cst_99 {dimension_numbers = #tpu.dot_dimension_numbers<[1], [0], [0], [1], [0, 0, 1, 1], [], []>} : vector<9x5xf32>, vector<5x16xf32>, vector<9x16xf32> -> vector<9x16xf32>
    %108 = vector.broadcast %105 : vector<1x16xf32> to vector<9x16xf32>
    %109 = arith.addf %108, %107 : vector<9x16xf32>
    %c0_100 = arith.constant 0 : index
    %c0_101 = arith.constant 0 : index
    %110 = vector.load %arg18[%c0_100, %c0_101] : memref<16x16xf32, #tpu.memory_space<vmem>>, vector<16x16xf32>
    %cst_102 = arith.constant dense<0.000000e+00> : vector<9x16xf32>
    %111 = tpu.matmul %63, %110, %cst_102 {dimension_numbers = #tpu.dot_dimension_numbers<[1], [0], [0], [1], [0, 0, 1, 1], [], []>} : vector<9x16xf32>, vector<16x16xf32>, vector<9x16xf32> -> vector<9x16xf32>
    %112 = arith.addf %109, %111 : vector<9x16xf32>
    %c0_103 = arith.constant 0 : index
    %c0_104 = arith.constant 0 : index
    %113 = vector.load %arg22[%c0_103, %c0_104] : memref<1x64xf32, #tpu.memory_space<vmem>>, vector<1x64xf32>
    %c0_105 = arith.constant 0 : index
    %c0_106 = arith.constant 0 : index
    %114 = vector.load %arg20[%c0_105, %c0_106] : memref<5x64xf32, #tpu.memory_space<vmem>>, vector<5x64xf32>
    %cst_107 = arith.constant dense<0.000000e+00> : vector<9x64xf32>
    %115 = tpu.matmul %1, %114, %cst_107 {dimension_numbers = #tpu.dot_dimension_numbers<[1], [0], [0], [1], [0, 0, 1, 1], [], []>} : vector<9x5xf32>, vector<5x64xf32>, vector<9x64xf32> -> vector<9x64xf32>
    %116 = vector.broadcast %113 : vector<1x64xf32> to vector<9x64xf32>
    %117 = arith.addf %116, %115 : vector<9x64xf32>
    %c0_108 = arith.constant 0 : index
    %c0_109 = arith.constant 0 : index
    %118 = vector.load %arg21[%c0_108, %c0_109] : memref<16x64xf32, #tpu.memory_space<vmem>>, vector<16x64xf32>
    %cst_110 = arith.constant dense<0.000000e+00> : vector<9x64xf32>
    %119 = tpu.matmul %63, %118, %cst_110 {dimension_numbers = #tpu.dot_dimension_numbers<[1], [0], [0], [1], [0, 0, 1, 1], [], []>} : vector<9x16xf32>, vector<16x64xf32>, vector<9x64xf32> -> vector<9x64xf32>
    %120 = arith.addf %117, %119 : vector<9x64xf32>
    %c0_111 = arith.constant 0 : index
    %c0_112 = arith.constant 0 : index
    %c0_113 = arith.constant 0 : index
    %c0_114 = arith.constant 0 : index
    %121 = vector.load %arg2[%c0_111, %c0_112, %c0_113, %c0_114] : memref<1x4x9x9xf32, #tpu.memory_space<vmem>>, vector<1x1x9x9xf32>
    %122 = vector.shape_cast %121 : vector<1x1x9x9xf32> to vector<9x9xf32>
    %123 = vector.extract_strided_slice %120 {offsets = [0, 0], sizes = [9, 16], strides = [1, 1]} : vector<9x64xf32> to vector<9x16xf32>
    %cst_115 = arith.constant dense<0.000000e+00> : vector<9x16xf32>
    %124 = tpu.matmul %122, %123, %cst_115 {dimension_numbers = #tpu.dot_dimension_numbers<[1], [0], [0], [1], [0, 0, 1, 1], [], []>} : vector<9x9xf32>, vector<9x16xf32>, vector<9x16xf32> -> vector<9x16xf32>
    %125 = arith.addf %112, %124 : vector<9x16xf32>
    %c0_116 = arith.constant 0 : index
    %c1_117 = arith.constant 1 : index
    %c0_118 = arith.constant 0 : index
    %c0_119 = arith.constant 0 : index
    %126 = vector.load %arg2[%c0_116, %c1_117, %c0_118, %c0_119] : memref<1x4x9x9xf32, #tpu.memory_space<vmem>>, vector<1x1x9x9xf32>
    %127 = vector.shape_cast %126 : vector<1x1x9x9xf32> to vector<9x9xf32>
    %128 = vector.extract_strided_slice %120 {offsets = [0, 16], sizes = [9, 16], strides = [1, 1]} : vector<9x64xf32> to vector<9x16xf32>
    %cst_120 = arith.constant dense<0.000000e+00> : vector<9x16xf32>
    %129 = tpu.matmul %127, %128, %cst_120 {dimension_numbers = #tpu.dot_dimension_numbers<[1], [0], [0], [1], [0, 0, 1, 1], [], []>} : vector<9x9xf32>, vector<9x16xf32>, vector<9x16xf32> -> vector<9x16xf32>
    %130 = arith.addf %125, %129 : vector<9x16xf32>
    %c0_121 = arith.constant 0 : index
    %c2_122 = arith.constant 2 : index
    %c0_123 = arith.constant 0 : index
    %c0_124 = arith.constant 0 : index
    %131 = vector.load %arg2[%c0_121, %c2_122, %c0_123, %c0_124] : memref<1x4x9x9xf32, #tpu.memory_space<vmem>>, vector<1x1x9x9xf32>
    %132 = vector.shape_cast %131 : vector<1x1x9x9xf32> to vector<9x9xf32>
    %133 = vector.extract_strided_slice %120 {offsets = [0, 32], sizes = [9, 16], strides = [1, 1]} : vector<9x64xf32> to vector<9x16xf32>
    %cst_125 = arith.constant dense<0.000000e+00> : vector<9x16xf32>
    %134 = tpu.matmul %132, %133, %cst_125 {dimension_numbers = #tpu.dot_dimension_numbers<[1], [0], [0], [1], [0, 0, 1, 1], [], []>} : vector<9x9xf32>, vector<9x16xf32>, vector<9x16xf32> -> vector<9x16xf32>
    %135 = arith.addf %130, %134 : vector<9x16xf32>
    %c0_126 = arith.constant 0 : index
    %c3_127 = arith.constant 3 : index
    %c0_128 = arith.constant 0 : index
    %c0_129 = arith.constant 0 : index
    %136 = vector.load %arg2[%c0_126, %c3_127, %c0_128, %c0_129] : memref<1x4x9x9xf32, #tpu.memory_space<vmem>>, vector<1x1x9x9xf32>
    %137 = vector.shape_cast %136 : vector<1x1x9x9xf32> to vector<9x9xf32>
    %138 = vector.extract_strided_slice %120 {offsets = [0, 48], sizes = [9, 16], strides = [1, 1]} : vector<9x64xf32> to vector<9x16xf32>
    %cst_130 = arith.constant dense<0.000000e+00> : vector<9x16xf32>
    %139 = tpu.matmul %137, %138, %cst_130 {dimension_numbers = #tpu.dot_dimension_numbers<[1], [0], [0], [1], [0, 0, 1, 1], [], []>} : vector<9x9xf32>, vector<9x16xf32>, vector<9x16xf32> -> vector<9x16xf32>
    %140 = arith.addf %135, %139 : vector<9x16xf32>
    %141 = arith.negf %140 : vector<9x16xf32>
    %142 = math.exp %141 : vector<9x16xf32>
    %cst_131 = arith.constant 1.000000e+00 : f32
    %143 = vector.broadcast %cst_131 : f32 to vector<9x16xf32>
    %144 = arith.addf %143, %142 : vector<9x16xf32>
    %145 = arith.divf %143, %144 : vector<9x16xf32>
    %146 = arith.mulf %104, %145 : vector<9x16xf32>
    %cst_132 = arith.constant dense<0.000000e+00> : vector<16xf32>
    %147 = vector.multi_reduction <add>, %146, %cst_132 [0] : vector<9x16xf32> to vector<16xf32>
    %148 = vector.shape_cast %147 : vector<16xf32> to vector<1x16xf32>
    %149 = math.tanh %148 : vector<1x16xf32>
    %c0_133 = arith.constant 0 : index
    %c0_134 = arith.constant 0 : index
    %150 = vector.load %arg23[%c0_133, %c0_134] : memref<16x32xf32, #tpu.memory_space<vmem>>, vector<16x32xf32>
    %cst_135 = arith.constant dense<0.000000e+00> : vector<1x32xf32>
    %151 = tpu.matmul %149, %150, %cst_135 {dimension_numbers = #tpu.dot_dimension_numbers<[1], [0], [0], [1], [0, 0, 1, 1], [], []>} : vector<1x16xf32>, vector<16x32xf32>, vector<1x32xf32> -> vector<1x32xf32>
    %c0_136 = arith.constant 0 : index
    %c0_137 = arith.constant 0 : index
    %152 = vector.load %arg24[%c0_136, %c0_137] : memref<1x32xf32, #tpu.memory_space<vmem>>, vector<1x32xf32>
    %153 = arith.addf %151, %152 : vector<1x32xf32>
    %154 = math.tanh %153 : vector<1x32xf32>
    %c0_138 = arith.constant 0 : index
    %c0_139 = arith.constant 0 : index
    %155 = vector.load %arg25[%c0_138, %c0_139] : memref<32x128xf32, #tpu.memory_space<vmem>>, vector<32x128xf32>
    %cst_140 = arith.constant dense<0.000000e+00> : vector<1x128xf32>
    %156 = tpu.matmul %154, %155, %cst_140 {dimension_numbers = #tpu.dot_dimension_numbers<[1], [0], [0], [1], [0, 0, 1, 1], [], []>} : vector<1x32xf32>, vector<32x128xf32>, vector<1x128xf32> -> vector<1x128xf32>
    %c0_141 = arith.constant 0 : index
    %c0_142 = arith.constant 0 : index
    %157 = vector.load %arg26[%c0_141, %c0_142] : memref<1x128xf32, #tpu.memory_space<vmem>>, vector<1x128xf32>
    %158 = arith.addf %156, %157 : vector<1x128xf32>
    %c0_143 = arith.constant 0 : index
    %c0_144 = arith.constant 0 : index
    %c0_145 = arith.constant 0 : index
    %159 = vector.load %arg27[%c0_143, %c0_144, %c0_145] : memref<1x1x128xf32, #tpu.memory_space<vmem>>, vector<1x1x128xf32>
    %160 = vector.shape_cast %159 : vector<1x1x128xf32> to vector<1x128xf32>
    %161 = vector.shape_cast %158 : vector<1x128xf32> to vector<1x1x128xf32>
    tpu.vector_store %arg27[%c0_143, %c0_144, %c0_145], %161 {strides = array<i32>} : memref<1x1x128xf32, #tpu.memory_space<vmem>>, vector<1x1x128xf32>,
    return
  }
  func.func @transform_0(%arg0: i32) -> (i32, i32, i32) {
    %c0_i32 = arith.constant 0 : i32
    %c0_i32_0 = arith.constant 0 : i32
    %c0_i32_1 = arith.constant 0 : i32
    return %arg0, %c0_i32, %c0_i32_0 : i32, i32, i32
  }
  func.func @transform_1(%arg0: i32) -> (i32, i32, i32, i32) {
    %c0_i32 = arith.constant 0 : i32
    %c0_i32_0 = arith.constant 0 : i32
    %c0_i32_1 = arith.constant 0 : i32
    %c0_i32_2 = arith.constant 0 : i32
    return %arg0, %c0_i32, %c0_i32_0, %c0_i32_1 : i32, i32, i32, i32
  }
  func.func @transform_2(%arg0: i32) -> (i32, i32) {
    %c0_i32 = arith.constant 0 : i32
    %c0_i32_0 = arith.constant 0 : i32
    %c0_i32_1 = arith.constant 0 : i32
    return %c0_i32, %c0_i32_0 : i32, i32
  }
  func.func @transform_3(%arg0: i32) -> (i32, i32) {
    %c0_i32 = arith.constant 0 : i32
    %c0_i32_0 = arith.constant 0 : i32
    %c0_i32_1 = arith.constant 0 : i32
    return %c0_i32, %c0_i32_0 : i32, i32
  }
  func.func @transform_4(%arg0: i32) -> (i32, i32) {
    %c0_i32 = arith.constant 0 : i32
    %c0_i32_0 = arith.constant 0 : i32
    %c0_i32_1 = arith.constant 0 : i32
    return %c0_i32, %c0_i32_0 : i32, i32
  }
  func.func @transform_5(%arg0: i32) -> (i32, i32) {
    %c0_i32 = arith.constant 0 : i32
    %c0_i32_0 = arith.constant 0 : i32
    %c0_i32_1 = arith.constant 0 : i32
    return %c0_i32, %c0_i32_0 : i32, i32
  }
  func.func @transform_6(%arg0: i32) -> (i32, i32) {
    %c0_i32 = arith.constant 0 : i32
    %c0_i32_0 = arith.constant 0 : i32
    %c0_i32_1 = arith.constant 0 : i32
    return %c0_i32, %c0_i32_0 : i32, i32
  }
  func.func @transform_7(%arg0: i32) -> (i32, i32) {
    %c0_i32 = arith.constant 0 : i32
    %c0_i32_0 = arith.constant 0 : i32
    %c0_i32_1 = arith.constant 0 : i32
    return %c0_i32, %c0_i32_0 : i32, i32
  }
  func.func @transform_8(%arg0: i32) -> (i32, i32) {
    %c0_i32 = arith.constant 0 : i32
    %c0_i32_0 = arith.constant 0 : i32
    %c0_i32_1 = arith.constant 0 : i32
    return %c0_i32, %c0_i32_0 : i32, i32
  }
  func.func @transform_9(%arg0: i32) -> (i32, i32) {
    %c0_i32 = arith.constant 0 : i32
    %c0_i32_0 = arith.constant 0 : i32
    %c0_i32_1 = arith.constant 0 : i32
    return %c0_i32, %c0_i32_0 : i32, i32
  }
  func.func @transform_10(%arg0: i32) -> (i32, i32) {
    %c0_i32 = arith.constant 0 : i32
    %c0_i32_0 = arith.constant 0 : i32
    %c0_i32_1 = arith.constant 0 : i32
    return %c0_i32, %c0_i32_0 : i32, i32
  }
  func.func @transform_11(%arg0: i32) -> (i32, i32) {
    %c0_i32 = arith.constant 0 : i32
    %c0_i32_0 = arith.constant 0 : i32
    %c0_i32_1 = arith.constant 0 : i32
    return %c0_i32, %c0_i32_0 : i32, i32
  }
  func.func @transform_12(%arg0: i32) -> (i32, i32) {
    %c0_i32 = arith.constant 0 : i32
    %c0_i32_0 = arith.constant 0 : i32
    %c0_i32_1 = arith.constant 0 : i32
    return %c0_i32, %c0_i32_0 : i32, i32
  }
  func.func @transform_13(%arg0: i32) -> (i32, i32) {
    %c0_i32 = arith.constant 0 : i32
    %c0_i32_0 = arith.constant 0 : i32
    %c0_i32_1 = arith.constant 0 : i32
    return %c0_i32, %c0_i32_0 : i32, i32
  }
  func.func @transform_14(%arg0: i32) -> (i32, i32) {
    %c0_i32 = arith.constant 0 : i32
    %c0_i32_0 = arith.constant 0 : i32
    %c0_i32_1 = arith.constant 0 : i32
    return %c0_i32, %c0_i32_0 : i32, i32
  }
  func.func @transform_15(%arg0: i32) -> (i32, i32) {
    %c0_i32 = arith.constant 0 : i32
    %c0_i32_0 = arith.constant 0 : i32
    %c0_i32_1 = arith.constant 0 : i32
    return %c0_i32, %c0_i32_0 : i32, i32
  }
  func.func @transform_16(%arg0: i32) -> (i32, i32) {
    %c0_i32 = arith.constant 0 : i32
    %c0_i32_0 = arith.constant 0 : i32
    %c0_i32_1 = arith.constant 0 : i32
    return %c0_i32, %c0_i32_0 : i32, i32
  }
  func.func @transform_17(%arg0: i32) -> (i32, i32) {
    %c0_i32 = arith.constant 0 : i32
    %c0_i32_0 = arith.constant 0 : i32
    %c0_i32_1 = arith.constant 0 : i32
    return %c0_i32, %c0_i32_0 : i32, i32
  }
  func.func @transform_18(%arg0: i32) -> (i32, i32) {
    %c0_i32 = arith.constant 0 : i32
    %c0_i32_0 = arith.constant 0 : i32
    %c0_i32_1 = arith.constant 0 : i32
    return %c0_i32, %c0_i32_0 : i32, i32
  }
  func.func @transform_19(%arg0: i32) -> (i32, i32) {
    %c0_i32 = arith.constant 0 : i32
    %c0_i32_0 = arith.constant 0 : i32
    %c0_i32_1 = arith.constant 0 : i32
    return %c0_i32, %c0_i32_0 : i32, i32
  }
  func.func @transform_20(%arg0: i32) -> (i32, i32) {
    %c0_i32 = arith.constant 0 : i32
    %c0_i32_0 = arith.constant 0 : i32
    %c0_i32_1 = arith.constant 0 : i32
    return %c0_i32, %c0_i32_0 : i32, i32
  }
  func.func @transform_21(%arg0: i32) -> (i32, i32) {
    %c0_i32 = arith.constant 0 : i32
    %c0_i32_0 = arith.constant 0 : i32
    %c0_i32_1 = arith.constant 0 : i32
    return %c0_i32, %c0_i32_0 : i32, i32
  }
  func.func @transform_22(%arg0: i32) -> (i32, i32) {
    %c0_i32 = arith.constant 0 : i32
    %c0_i32_0 = arith.constant 0 : i32
    %c0_i32_1 = arith.constant 0 : i32
    return %c0_i32, %c0_i32_0 : i32, i32
  }
  func.func @transform_23(%arg0: i32) -> (i32, i32) {
    %c0_i32 = arith.constant 0 : i32
    %c0_i32_0 = arith.constant 0 : i32
    %c0_i32_1 = arith.constant 0 : i32
    return %c0_i32, %c0_i32_0 : i32, i32
  }
  func.func @transform_24(%arg0: i32) -> (i32, i32) {
    %c0_i32 = arith.constant 0 : i32
    %c0_i32_0 = arith.constant 0 : i32
    %c0_i32_1 = arith.constant 0 : i32
    return %c0_i32, %c0_i32_0 : i32, i32
  }
  func.func @transform_25(%arg0: i32) -> (i32, i32) {
    %c0_i32 = arith.constant 0 : i32
    %c0_i32_0 = arith.constant 0 : i32
    %c0_i32_1 = arith.constant 0 : i32
    return %c0_i32, %c0_i32_0 : i32, i32
  }
  func.func @transform_26(%arg0: i32) -> (i32, i32, i32) {
    %c0_i32 = arith.constant 0 : i32
    %c0_i32_0 = arith.constant 0 : i32
    %c0_i32_1 = arith.constant 0 : i32
    return %arg0, %c0_i32, %c0_i32_0 : i32, i32, i32
  }
}

</mosaic_0001>

<llo_original>
// kernel: tpu_custom_call.1
$region0: #{tpu_custom_call.1}
  #allocation0 [shape = 'u32[]', space=smem, size = 0x4, offset = 0x4, fixed_abs, tag = 'smem constant byte address 0x4 - core index']
  #allocation1 [shape = 'u32[144,128]{1,0:T(1,128)}', space=vmem, size = 0x12000, scoped, tag = 'internal scratch']
  %s0 = inlined_call_operand.vmem [shape: f32[2,9,5], index: 0, kind: input, shape index: {}]
  %s1 = inlined_call_operand.vmem [shape: f32[2,4,9,9], index: 1, kind: input, shape index: {}]
  %s2 = inlined_call_operand.vmem [shape: f32[5,32], index: 2, kind: input, shape index: {}]
  %s3 = inlined_call_operand.vmem [shape: f32[1,32], index: 3, kind: input, shape index: {}]
  %s4 = inlined_call_operand.vmem [shape: f32[5,128], index: 4, kind: input, shape index: {}]
  %s5 = inlined_call_operand.vmem [shape: f32[1,128], index: 5, kind: input, shape index: {}]
  %s6 = inlined_call_operand.vmem [shape: f32[32,16], index: 6, kind: input, shape index: {}]
  %s7 = inlined_call_operand.vmem [shape: f32[1,16], index: 7, kind: input, shape index: {}]
  %s8 = inlined_call_operand.vmem [shape: f32[32,64], index: 8, kind: input, shape index: {}]
  %s9 = inlined_call_operand.vmem [shape: f32[1,64], index: 9, kind: input, shape index: {}]
  %s10 = inlined_call_operand.vmem [shape: f32[5,16], index: 10, kind: input, shape index: {}]
  %s11 = inlined_call_operand.vmem [shape: f32[16,16], index: 11, kind: input, shape index: {}]
  %s12 = inlined_call_operand.vmem [shape: f32[1,16], index: 12, kind: input, shape index: {}]
  %s13 = inlined_call_operand.vmem [shape: f32[5,64], index: 13, kind: input, shape index: {}]
  %s14 = inlined_call_operand.vmem [shape: f32[16,64], index: 14, kind: input, shape index: {}]
  %s15 = inlined_call_operand.vmem [shape: f32[1,64], index: 15, kind: input, shape index: {}]
  %s16 = inlined_call_operand.vmem [shape: f32[5,16], index: 16, kind: input, shape index: {}]
  %s17 = inlined_call_operand.vmem [shape: f32[16,16], index: 17, kind: input, shape index: {}]
  %s18 = inlined_call_operand.vmem [shape: f32[1,16], index: 18, kind: input, shape index: {}]
  %s19 = inlined_call_operand.vmem [shape: f32[5,64], index: 19, kind: input, shape index: {}]
  %s20 = inlined_call_operand.vmem [shape: f32[16,64], index: 20, kind: input, shape index: {}]
  %s21 = inlined_call_operand.vmem [shape: f32[1,64], index: 21, kind: input, shape index: {}]
  %s22 = inlined_call_operand.vmem [shape: f32[16,32], index: 22, kind: input, shape index: {}]
  %s23 = inlined_call_operand.vmem [shape: f32[1,32], index: 23, kind: input, shape index: {}]
  %s24 = inlined_call_operand.vmem [shape: f32[32,128], index: 24, kind: input, shape index: {}]
  %s25 = inlined_call_operand.vmem [shape: f32[1,128], index: 25, kind: input, shape index: {}]
  %s26 = inlined_call_operand.hbm [shape: f32[2,1,128], index: 26, kind: output, shape index: {}]
  %s27 = sld [smem:[#allocation0]]
  $region137: #{tpu_custom_call.1} parent=0
    _
  %s29 = ssub.s32 1, %s27
  %s30 = scalar_select 0, %s29, %s27
  $region1: #{tpu_custom_call.1} parent=0
    #allocation2 [shape = 'u8[1024]{0}', space=vmem, size = 0x400, scoped, tag = 'output window, operand 0']
    #allocation3 [shape = 's32[2]{0}', space=sflag, size = 0x8, scoped, tag = 'scoped memory for tpu_custom_call.1']
    %31 = vsyncpa [#allocation3], 0
    %s32 = scalar_lea.sflag [#allocation3], 1
    %33 = vsyncpa %s32, 0
    loop: start=0, step=1, limit=4
    $region2: #{tpu_custom_call.1} parent=1 // loop_pre_header
      _
    $region3: #{tpu_custom_call.1} parent=1 // loop_header
      %s35 = sphi 0, %s39
      %p36 = scmp.ge.s32.totalorder %s35, 4
      %s45 = sphi 0, %s47
      %s48 = sphi 0, %s45
      %s49 = sphi 0, %s48
      %s65 = sphi 0, %s49
      %s71 = sphi 0, %s73
      %s74 = sphi 0, %s71
      %s75 = sphi 0, %s74
      %s91 = sphi 0, %s75
      %s95 = sphi 0, %s95
      %s97 = sphi 0, %s95
      %s98 = sphi 0, %s97
      %s112 = sphi 0, %s98
      %s116 = sphi 0, %s116
      %s118 = sphi 0, %s116
      %s119 = sphi 0, %s118
      %s133 = sphi 0, %s119
      %s137 = sphi 0, %s137
      %s139 = sphi 0, %s137
      %s140 = sphi 0, %s139
      %s154 = sphi 0, %s140
      %s158 = sphi 0, %s158
      %s160 = sphi 0, %s158
      %s161 = sphi 0, %s160
      %s175 = sphi 0, %s161
      %s179 = sphi 0, %s179
      %s181 = sphi 0, %s179
      %s182 = sphi 0, %s181
      %s196 = sphi 0, %s182
      %s200 = sphi 0, %s200
      %s202 = sphi 0, %s200
      %s203 = sphi 0, %s202
      %s217 = sphi 0, %s203
      %s221 = sphi 0, %s221
      %s223 = sphi 0, %s221
      %s224 = sphi 0, %s223
      %s238 = sphi 0, %s224
      %s242 = sphi 0, %s242
      %s244 = sphi 0, %s242
      %s245 = sphi 0, %s244
      %s259 = sphi 0, %s245
      %s263 = sphi 0, %s263
      %s265 = sphi 0, %s263
      %s266 = sphi 0, %s265
      %s280 = sphi 0, %s266
      %s284 = sphi 0, %s284
      %s286 = sphi 0, %s284
      %s287 = sphi 0, %s286
      %s301 = sphi 0, %s287
      %s305 = sphi 0, %s305
      %s307 = sphi 0, %s305
      %s308 = sphi 0, %s307
      %s322 = sphi 0, %s308
      %s326 = sphi 0, %s326
      %s328 = sphi 0, %s326
      %s329 = sphi 0, %s328
      %s343 = sphi 0, %s329
      %s347 = sphi 0, %s347
      %s349 = sphi 0, %s347
      %s350 = sphi 0, %s349
      %s364 = sphi 0, %s350
      %s368 = sphi 0, %s368
      %s370 = sphi 0, %s368
      %s371 = sphi 0, %s370
      %s385 = sphi 0, %s371
      %s389 = sphi 0, %s389
      %s391 = sphi 0, %s389
      %s392 = sphi 0, %s391
      %s406 = sphi 0, %s392
      %s410 = sphi 0, %s410
      %s412 = sphi 0, %s410
      %s413 = sphi 0, %s412
      %s427 = sphi 0, %s413
      %s431 = sphi 0, %s431
      %s433 = sphi 0, %s431
      %s434 = sphi 0, %s433
      %s448 = sphi 0, %s434
      %s452 = sphi 0, %s452
      %s454 = sphi 0, %s452
      %s455 = sphi 0, %s454
      %s469 = sphi 0, %s455
      %s473 = sphi 0, %s473
      %s475 = sphi 0, %s473
      %s476 = sphi 0, %s475
      %s490 = sphi 0, %s476
      %s494 = sphi 0, %s494
      %s496 = sphi 0, %s494
      %s497 = sphi 0, %s496
      %s511 = sphi 0, %s497
      %s515 = sphi 0, %s515
      %s517 = sphi 0, %s515
      %s518 = sphi 0, %s517
      %s532 = sphi 0, %s518
      %s536 = sphi 0, %s536
      %s538 = sphi 0, %s536
      %s539 = sphi 0, %s538
      %s553 = sphi 0, %s539
      %s557 = sphi 0, %s557
      %s559 = sphi 0, %s557
      %s560 = sphi 0, %s559
      %s574 = sphi 0, %s560
      %s578 = sphi 0, %s578
      %s580 = sphi 0, %s578
      %s581 = sphi 0, %s580
      %s595 = sphi 0, %s581
      %s601 = sphi 0, %s603
      %s604 = sphi 0, %s601
      %s605 = sphi 0, %s604
      %s621 = sphi 0, %s605
    $region4: #{tpu_custom_call.1} parent=1 // loop_header_branch
      %38 = sbr.rel (%p36) target = $region8
    $region5: #{tpu_custom_call.1} parent=1 // loop_body
      %s40 = ssub.s32 %s35, 1
      %s41 = ssub.s32 %s35, 2
      %s42 = sadd.s32 %s35, 1
      %s43 = ssub.s32 %s35, %s42
      %p44 = scmp.eq.s32.totalorder %s43, 0
      %s46 = sadd.s32 %s45, 1
      %s47 = scalar_select %p44, %s45, %s46
      %p50 = pneg %p44
      %p51 = scmp.eq.s32.totalorder %s35, 1
      %p52 = por %p50, %p51
      %p53 = scmp.ne.s32.totalorder %s45, %s48
      %p54 = scmp.eq.s32.totalorder %s35, 0
      %p55 = por %p53, %p54
      %p56 = scmp.ne.s32.totalorder %s45, %s48
      %p57 = scmp.eq.s32.totalorder %s40, 1
      %p58 = por %p56, %p57
      %p59 = scmp.ne.s32.totalorder %s48, %s49
      %p60 = scmp.eq.s32.totalorder %s40, 0
      %p61 = por %p59, %p60
      %p62 = scmp.ne.s32.totalorder %s48, %s49
      %p63 = scmp.eq.s32.totalorder %s41, 1
      %p64 = por %p62, %p63
      %p66 = scmp.ne.s32.totalorder %s49, %s65
      %p67 = scmp.eq.s32.totalorder %s41, 0
      %p68 = por %p66, %p67
      %s69 = ssub.s32 %s35, %s42
      %p70 = scmp.eq.s32.totalorder %s69, 0
      %s72 = sadd.s32 %s71, 1
      %s73 = scalar_select %p70, %s71, %s72
      %p76 = pneg %p70
      %p77 = scmp.eq.s32.totalorder %s35, 1
      %p78 = por %p76, %p77
      %p79 = scmp.ne.s32.totalorder %s71, %s74
      %p80 = scmp.eq.s32.totalorder %s35, 0
      %p81 = por %p79, %p80
      %p82 = scmp.ne.s32.totalorder %s71, %s74
      %p83 = scmp.eq.s32.totalorder %s40, 1
      %p84 = por %p82, %p83
      %p85 = scmp.ne.s32.totalorder %s74, %s75
      %p86 = scmp.eq.s32.totalorder %s40, 0
      %p87 = por %p85, %p86
      %p88 = scmp.ne.s32.totalorder %s74, %s75
      %p89 = scmp.eq.s32.totalorder %s41, 1
      %p90 = por %p88, %p89
      %p92 = scmp.ne.s32.totalorder %s75, %s91
      %p93 = scmp.eq.s32.totalorder %s41, 0
      %p94 = por %p92, %p93
      %s96 = sadd.s32 %s95, 1
      %p99 = scmp.eq.s32.totalorder %s35, 1
      %p100 = scmp.ne.s32.totalorder %s95, %s97
      %p101 = scmp.eq.s32.totalorder %s35, 0
      %p102 = por %p100, %p101
      %p103 = scmp.ne.s32.totalorder %s95, %s97
      %p104 = scmp.eq.s32.totalorder %s40, 1
      %p105 = por %p103, %p104
      %p106 = scmp.ne.s32.totalorder %s97, %s98
      %p107 = scmp.eq.s32.totalorder %s40, 0
      %p108 = por %p106, %p107
      %p109 = scmp.ne.s32.totalorder %s97, %s98
      %p110 = scmp.eq.s32.totalorder %s41, 1
      %p111 = por %p109, %p110
      %p113 = scmp.ne.s32.totalorder %s98, %s112
      %p114 = scmp.eq.s32.totalorder %s41, 0
      %p115 = por %p113, %p114
      %s117 = sadd.s32 %s116, 1
      %p120 = scmp.eq.s32.totalorder %s35, 1
      %p121 = scmp.ne.s32.totalorder %s116, %s118
      %p122 = scmp.eq.s32.totalorder %s35, 0
      %p123 = por %p121, %p122
      %p124 = scmp.ne.s32.totalorder %s116, %s118
      %p125 = scmp.eq.s32.totalorder %s40, 1
      %p126 = por %p124, %p125
      %p127 = scmp.ne.s32.totalorder %s118, %s119
      %p128 = scmp.eq.s32.totalorder %s40, 0
      %p129 = por %p127, %p128
      %p130 = scmp.ne.s32.totalorder %s118, %s119
      %p131 = scmp.eq.s32.totalorder %s41, 1
      %p132 = por %p130, %p131
      %p134 = scmp.ne.s32.totalorder %s119, %s133
      %p135 = scmp.eq.s32.totalorder %s41, 0
      %p136 = por %p134, %p135
      %s138 = sadd.s32 %s137, 1
      %p141 = scmp.eq.s32.totalorder %s35, 1
      %p142 = scmp.ne.s32.totalorder %s137, %s139
      %p143 = scmp.eq.s32.totalorder %s35, 0
      %p144 = por %p142, %p143
      %p145 = scmp.ne.s32.totalorder %s137, %s139
      %p146 = scmp.eq.s32.totalorder %s40, 1
      %p147 = por %p145, %p146
      %p148 = scmp.ne.s32.totalorder %s139, %s140
      %p149 = scmp.eq.s32.totalorder %s40, 0
      %p150 = por %p148, %p149
      %p151 = scmp.ne.s32.totalorder %s139, %s140
      %p152 = scmp.eq.s32.totalorder %s41, 1
      %p153 = por %p151, %p152
      %p155 = scmp.ne.s32.totalorder %s140, %s154
      %p156 = scmp.eq.s32.totalorder %s41, 0
      %p157 = por %p155, %p156
      %s159 = sadd.s32 %s158, 1
      %p162 = scmp.eq.s32.totalorder %s35, 1
      %p163 = scmp.ne.s32.totalorder %s158, %s160
      %p164 = scmp.eq.s32.totalorder %s35, 0
      %p165 = por %p163, %p164
      %p166 = scmp.ne.s32.totalorder %s158, %s160
      %p167 = scmp.eq.s32.totalorder %s40, 1
      %p168 = por %p166, %p167
      %p169 = scmp.ne.s32.totalorder %s160, %s161
      %p170 = scmp.eq.s32.totalorder %s40, 0
      %p171 = por %p169, %p170
      %p172 = scmp.ne.s32.totalorder %s160, %s161
      %p173 = scmp.eq.s32.totalorder %s41, 1
      %p174 = por %p172, %p173
      %p176 = scmp.ne.s32.totalorder %s161, %s175
      %p177 = scmp.eq.s32.totalorder %s41, 0
      %p178 = por %p176, %p177
      %s180 = sadd.s32 %s179, 1
      %p183 = scmp.eq.s32.totalorder %s35, 1
      %p184 = scmp.ne.s32.totalorder %s179, %s181
      %p185 = scmp.eq.s32.totalorder %s35, 0
      %p186 = por %p184, %p185
      %p187 = scmp.ne.s32.totalorder %s179, %s181
      %p188 = scmp.eq.s32.totalorder %s40, 1
      %p189 = por %p187, %p188
      %p190 = scmp.ne.s32.totalorder %s181, %s182
      %p191 = scmp.eq.s32.totalorder %s40, 0
      %p192 = por %p190, %p191
      %p193 = scmp.ne.s32.totalorder %s181, %s182
      %p194 = scmp.eq.s32.totalorder %s41, 1
      %p195 = por %p193, %p194
      %p197 = scmp.ne.s32.totalorder %s182, %s196
      %p198 = scmp.eq.s32.totalorder %s41, 0
      %p199 = por %p197, %p198
      %s201 = sadd.s32 %s200, 1
      %p204 = scmp.eq.s32.totalorder %s35, 1
      %p205 = scmp.ne.s32.totalorder %s200, %s202
      %p206 = scmp.eq.s32.totalorder %s35, 0
      %p207 = por %p205, %p206
      %p208 = scmp.ne.s32.totalorder %s200, %s202
      %p209 = scmp.eq.s32.totalorder %s40, 1
      %p210 = por %p208, %p209
      %p211 = scmp.ne.s32.totalorder %s202, %s203
      %p212 = scmp.eq.s32.totalorder %s40, 0
      %p213 = por %p211, %p212
      %p214 = scmp.ne.s32.totalorder %s202, %s203
      %p215 = scmp.eq.s32.totalorder %s41, 1
      %p216 = por %p214, %p215
      %p218 = scmp.ne.s32.totalorder %s203, %s217
      %p219 = scmp.eq.s32.totalorder %s41, 0
      %p220 = por %p218, %p219
      %s222 = sadd.s32 %s221, 1
      %p225 = scmp.eq.s32.totalorder %s35, 1
      %p226 = scmp.ne.s32.totalorder %s221, %s223
      %p227 = scmp.eq.s32.totalorder %s35, 0
      %p228 = por %p226, %p227
      %p229 = scmp.ne.s32.totalorder %s221, %s223
      %p230 = scmp.eq.s32.totalorder %s40, 1
      %p231 = por %p229, %p230
      %p232 = scmp.ne.s32.totalorder %s223, %s224
      %p233 = scmp.eq.s32.totalorder %s40, 0
      %p234 = por %p232, %p233
      %p235 = scmp.ne.s32.totalorder %s223, %s224
      %p236 = scmp.eq.s32.totalorder %s41, 1
      %p237 = por %p235, %p236
      %p239 = scmp.ne.s32.totalorder %s224, %s238
      %p240 = scmp.eq.s32.totalorder %s41, 0
      %p241 = por %p239, %p240
      %s243 = sadd.s32 %s242, 1
      %p246 = scmp.eq.s32.totalorder %s35, 1
      %p247 = scmp.ne.s32.totalorder %s242, %s244
      %p248 = scmp.eq.s32.totalorder %s35, 0
      %p249 = por %p247, %p248
      %p250 = scmp.ne.s32.totalorder %s242, %s244
      %p251 = scmp.eq.s32.totalorder %s40, 1
      %p252 = por %p250, %p251
      %p253 = scmp.ne.s32.totalorder %s244, %s245
      %p254 = scmp.eq.s32.totalorder %s40, 0
      %p255 = por %p253, %p254
      %p256 = scmp.ne.s32.totalorder %s244, %s245
      %p257 = scmp.eq.s32.totalorder %s41, 1
      %p258 = por %p256, %p257
      %p260 = scmp.ne.s32.totalorder %s245, %s259
      %p261 = scmp.eq.s32.totalorder %s41, 0
      %p262 = por %p260, %p261
      %s264 = sadd.s32 %s263, 1
      %p267 = scmp.eq.s32.totalorder %s35, 1
      %p268 = scmp.ne.s32.totalorder %s263, %s265
      %p269 = scmp.eq.s32.totalorder %s35, 0
      %p270 = por %p268, %p269
      %p271 = scmp.ne.s32.totalorder %s263, %s265
      %p272 = scmp.eq.s32.totalorder %s40, 1
      %p273 = por %p271, %p272
      %p274 = scmp.ne.s32.totalorder %s265, %s266
      %p275 = scmp.eq.s32.totalorder %s40, 0
      %p276 = por %p274, %p275
      %p277 = scmp.ne.s32.totalorder %s265, %s266
      %p278 = scmp.eq.s32.totalorder %s41, 1
      %p279 = por %p277, %p278
      %p281 = scmp.ne.s32.totalorder %s266, %s280
      %p282 = scmp.eq.s32.totalorder %s41, 0
      %p283 = por %p281, %p282
      %s285 = sadd.s32 %s284, 1
      %p288 = scmp.eq.s32.totalorder %s35, 1
      %p289 = scmp.ne.s32.totalorder %s284, %s286
      %p290 = scmp.eq.s32.totalorder %s35, 0
      %p291 = por %p289, %p290
      %p292 = scmp.ne.s32.totalorder %s284, %s286
      %p293 = scmp.eq.s32.totalorder %s40, 1
      %p294 = por %p292, %p293
      %p295 = scmp.ne.s32.totalorder %s286, %s287
      %p296 = scmp.eq.s32.totalorder %s40, 0
      %p297 = por %p295, %p296
      %p298 = scmp.ne.s32.totalorder %s286, %s287
      %p299 = scmp.eq.s32.totalorder %s41, 1
      %p300 = por %p298, %p299
      %p302 = scmp.ne.s32.totalorder %s287, %s301
      %p303 = scmp.eq.s32.totalorder %s41, 0
      %p304 = por %p302, %p303
      %s306 = sadd.s32 %s305, 1
      %p309 = scmp.eq.s32.totalorder %s35, 1
      %p310 = scmp.ne.s32.totalorder %s305, %s307
      %p311 = scmp.eq.s32.totalorder %s35, 0
      %p312 = por %p310, %p311
      %p313 = scmp.ne.s32.totalorder %s305, %s307
      %p314 = scmp.eq.s32.totalorder %s40, 1
      %p315 = por %p313, %p314
      %p316 = scmp.ne.s32.totalorder %s307, %s308
      %p317 = scmp.eq.s32.totalorder %s40, 0
      %p318 = por %p316, %p317
      %p319 = scmp.ne.s32.totalorder %s307, %s308
      %p320 = scmp.eq.s32.totalorder %s41, 1
      %p321 = por %p319, %p320
      %p323 = scmp.ne.s32.totalorder %s308, %s322
      %p324 = scmp.eq.s32.totalorder %s41, 0
      %p325 = por %p323, %p324
      %s327 = sadd.s32 %s326, 1
      %p330 = scmp.eq.s32.totalorder %s35, 1
      %p331 = scmp.ne.s32.totalorder %s326, %s328
      %p332 = scmp.eq.s32.totalorder %s35, 0
      %p333 = por %p331, %p332
      %p334 = scmp.ne.s32.totalorder %s326, %s328
      %p335 = scmp.eq.s32.totalorder %s40, 1
      %p336 = por %p334, %p335
      %p337 = scmp.ne.s32.totalorder %s328, %s329
      %p338 = scmp.eq.s32.totalorder %s40, 0
      %p339 = por %p337, %p338
      %p340 = scmp.ne.s32.totalorder %s328, %s329
      %p341 = scmp.eq.s32.totalorder %s41, 1
      %p342 = por %p340, %p341
      %p344 = scmp.ne.s32.totalorder %s329, %s343
      %p345 = scmp.eq.s32.totalorder %s41, 0
      %p346 = por %p344, %p345
      %s348 = sadd.s32 %s347, 1
      %p351 = scmp.eq.s32.totalorder %s35, 1
      %p352 = scmp.ne.s32.totalorder %s347, %s349
      %p353 = scmp.eq.s32.totalorder %s35, 0
      %p354 = por %p352, %p353
      %p355 = scmp.ne.s32.totalorder %s347, %s349
      %p356 = scmp.eq.s32.totalorder %s40, 1
      %p357 = por %p355, %p356
      %p358 = scmp.ne.s32.totalorder %s349, %s350
      %p359 = scmp.eq.s32.totalorder %s40, 0
      %p360 = por %p358, %p359
      %p361 = scmp.ne.s32.totalorder %s349, %s350
      %p362 = scmp.eq.s32.totalorder %s41, 1
      %p363 = por %p361, %p362
      %p365 = scmp.ne.s32.totalorder %s350, %s364
      %p366 = scmp.eq.s32.totalorder %s41, 0
      %p367 = por %p365, %p366
      %s369 = sadd.s32 %s368, 1
      %p372 = scmp.eq.s32.totalorder %s35, 1
      %p373 = scmp.ne.s32.totalorder %s368, %s370
      %p374 = scmp.eq.s32.totalorder %s35, 0
      %p375 = por %p373, %p374
      %p376 = scmp.ne.s32.totalorder %s368, %s370
      %p377 = scmp.eq.s32.totalorder %s40, 1
      %p378 = por %p376, %p377
      %p379 = scmp.ne.s32.totalorder %s370, %s371
      %p380 = scmp.eq.s32.totalorder %s40, 0
      %p381 = por %p379, %p380
      %p382 = scmp.ne.s32.totalorder %s370, %s371
      %p383 = scmp.eq.s32.totalorder %s41, 1
      %p384 = por %p382, %p383
      %p386 = scmp.ne.s32.totalorder %s371, %s385
      %p387 = scmp.eq.s32.totalorder %s41, 0
      %p388 = por %p386, %p387
      %s390 = sadd.s32 %s389, 1
      %p393 = scmp.eq.s32.totalorder %s35, 1
      %p394 = scmp.ne.s32.totalorder %s389, %s391
      %p395 = scmp.eq.s32.totalorder %s35, 0
      %p396 = por %p394, %p395
      %p397 = scmp.ne.s32.totalorder %s389, %s391
      %p398 = scmp.eq.s32.totalorder %s40, 1
      %p399 = por %p397, %p398
      %p400 = scmp.ne.s32.totalorder %s391, %s392
      %p401 = scmp.eq.s32.totalorder %s40, 0
      %p402 = por %p400, %p401
      %p403 = scmp.ne.s32.totalorder %s391, %s392
      %p404 = scmp.eq.s32.totalorder %s41, 1
      %p405 = por %p403, %p404
      %p407 = scmp.ne.s32.totalorder %s392, %s406
      %p408 = scmp.eq.s32.totalorder %s41, 0
      %p409 = por %p407, %p408
      %s411 = sadd.s32 %s410, 1
      %p414 = scmp.eq.s32.totalorder %s35, 1
      %p415 = scmp.ne.s32.totalorder %s410, %s412
      %p416 = scmp.eq.s32.totalorder %s35, 0
      %p417 = por %p415, %p416
      %p418 = scmp.ne.s32.totalorder %s410, %s412
      %p419 = scmp.eq.s32.totalorder %s40, 1
      %p420 = por %p418, %p419
      %p421 = scmp.ne.s32.totalorder %s412, %s413
      %p422 = scmp.eq.s32.totalorder %s40, 0
      %p423 = por %p421, %p422
      %p424 = scmp.ne.s32.totalorder %s412, %s413
      %p425 = scmp.eq.s32.totalorder %s41, 1
      %p426 = por %p424, %p425
      %p428 = scmp.ne.s32.totalorder %s413, %s427
      %p429 = scmp.eq.s32.totalorder %s41, 0
      %p430 = por %p428, %p429
      %s432 = sadd.s32 %s431, 1
      %p435 = scmp.eq.s32.totalorder %s35, 1
      %p436 = scmp.ne.s32.totalorder %s431, %s433
      %p437 = scmp.eq.s32.totalorder %s35, 0
      %p438 = por %p436, %p437
      %p439 = scmp.ne.s32.totalorder %s431, %s433
      %p440 = scmp.eq.s32.totalorder %s40, 1
      %p441 = por %p439, %p440
      %p442 = scmp.ne.s32.totalorder %s433, %s434
      %p443 = scmp.eq.s32.totalorder %s40, 0
      %p444 = por %p442, %p443
      %p445 = scmp.ne.s32.totalorder %s433, %s434
      %p446 = scmp.eq.s32.totalorder %s41, 1
      %p447 = por %p445, %p446
      %p449 = scmp.ne.s32.totalorder %s434, %s448
      %p450 = scmp.eq.s32.totalorder %s41, 0
      %p451 = por %p449, %p450
      %s453 = sadd.s32 %s452, 1
      %p456 = scmp.eq.s32.totalorder %s35, 1
      %p457 = scmp.ne.s32.totalorder %s452, %s454
      %p458 = scmp.eq.s32.totalorder %s35, 0
      %p459 = por %p457, %p458
      %p460 = scmp.ne.s32.totalorder %s452, %s454
      %p461 = scmp.eq.s32.totalorder %s40, 1
      %p462 = por %p460, %p461
      %p463 = scmp.ne.s32.totalorder %s454, %s455
      %p464 = scmp.eq.s32.totalorder %s40, 0
      %p465 = por %p463, %p464
      %p466 = scmp.ne.s32.totalorder %s454, %s455
      %p467 = scmp.eq.s32.totalorder %s41, 1
      %p468 = por %p466, %p467
      %p470 = scmp.ne.s32.totalorder %s455, %s469
      %p471 = scmp.eq.s32.totalorder %s41, 0
      %p472 = por %p470, %p471
      %s474 = sadd.s32 %s473, 1
      %p477 = scmp.eq.s32.totalorder %s35, 1
      %p478 = scmp.ne.s32.totalorder %s473, %s475
      %p479 = scmp.eq.s32.totalorder %s35, 0
      %p480 = por %p478, %p479
      %p481 = scmp.ne.s32.totalorder %s473, %s475
      %p482 = scmp.eq.s32.totalorder %s40, 1
      %p483 = por %p481, %p482
      %p484 = scmp.ne.s32.totalorder %s475, %s476
      %p485 = scmp.eq.s32.totalorder %s40, 0
      %p486 = por %p484, %p485
      %p487 = scmp.ne.s32.totalorder %s475, %s476
      %p488 = scmp.eq.s32.totalorder %s41, 1
      %p489 = por %p487, %p488
      %p491 = scmp.ne.s32.totalorder %s476, %s490
      %p492 = scmp.eq.s32.totalorder %s41, 0
      %p493 = por %p491, %p492
      %s495 = sadd.s32 %s494, 1
      %p498 = scmp.eq.s32.totalorder %s35, 1
      %p499 = scmp.ne.s32.totalorder %s494, %s496
      %p500 = scmp.eq.s32.totalorder %s35, 0
      %p501 = por %p499, %p500
      %p502 = scmp.ne.s32.totalorder %s494, %s496
      %p503 = scmp.eq.s32.totalorder %s40, 1
      %p504 = por %p502, %p503
      %p505 = scmp.ne.s32.totalorder %s496, %s497
      %p506 = scmp.eq.s32.totalorder %s40, 0
      %p507 = por %p505, %p506
      %p508 = scmp.ne.s32.totalorder %s496, %s497
      %p509 = scmp.eq.s32.totalorder %s41, 1
      %p510 = por %p508, %p509
      %p512 = scmp.ne.s32.totalorder %s497, %s511
      %p513 = scmp.eq.s32.totalorder %s41, 0
      %p514 = por %p512, %p513
      %s516 = sadd.s32 %s515, 1
      %p519 = scmp.eq.s32.totalorder %s35, 1
      %p520 = scmp.ne.s32.totalorder %s515, %s517
      %p521 = scmp.eq.s32.totalorder %s35, 0
      %p522 = por %p520, %p521
      %p523 = scmp.ne.s32.totalorder %s515, %s517
      %p524 = scmp.eq.s32.totalorder %s40, 1
      %p525 = por %p523, %p524
      %p526 = scmp.ne.s32.totalorder %s517, %s518
      %p527 = scmp.eq.s32.totalorder %s40, 0
      %p528 = por %p526, %p527
      %p529 = scmp.ne.s32.totalorder %s517, %s518
      %p530 = scmp.eq.s32.totalorder %s41, 1
      %p531 = por %p529, %p530
      %p533 = scmp.ne.s32.totalorder %s518, %s532
      %p534 = scmp.eq.s32.totalorder %s41, 0
      %p535 = por %p533, %p534
      %s537 = sadd.s32 %s536, 1
      %p540 = scmp.eq.s32.totalorder %s35, 1
      %p541 = scmp.ne.s32.totalorder %s536, %s538
      %p542 = scmp.eq.s32.totalorder %s35, 0
      %p543 = por %p541, %p542
      %p544 = scmp.ne.s32.totalorder %s536, %s538
      %p545 = scmp.eq.s32.totalorder %s40, 1
      %p546 = por %p544, %p545
      %p547 = scmp.ne.s32.totalorder %s538, %s539
      %p548 = scmp.eq.s32.totalorder %s40, 0
      %p549 = por %p547, %p548
      %p550 = scmp.ne.s32.totalorder %s538, %s539
      %p551 = scmp.eq.s32.totalorder %s41, 1
      %p552 = por %p550, %p551
      %p554 = scmp.ne.s32.totalorder %s539, %s553
      %p555 = scmp.eq.s32.totalorder %s41, 0
      %p556 = por %p554, %p555
      %s558 = sadd.s32 %s557, 1
      %p561 = scmp.eq.s32.totalorder %s35, 1
      %p562 = scmp.ne.s32.totalorder %s557, %s559
      %p563 = scmp.eq.s32.totalorder %s35, 0
      %p564 = por %p562, %p563
      %p565 = scmp.ne.s32.totalorder %s557, %s559
      %p566 = scmp.eq.s32.totalorder %s40, 1
      %p567 = por %p565, %p566
      %p568 = scmp.ne.s32.totalorder %s559, %s560
      %p569 = scmp.eq.s32.totalorder %s40, 0
      %p570 = por %p568, %p569
      %p571 = scmp.ne.s32.totalorder %s559, %s560
      %p572 = scmp.eq.s32.totalorder %s41, 1
      %p573 = por %p571, %p572
      %p575 = scmp.ne.s32.totalorder %s560, %s574
      %p576 = scmp.eq.s32.totalorder %s41, 0
      %p577 = por %p575, %p576
      %s579 = sadd.s32 %s578, 1
      %p582 = scmp.eq.s32.totalorder %s35, 1
      %p583 = scmp.ne.s32.totalorder %s578, %s580
      %p584 = scmp.eq.s32.totalorder %s35, 0
      %p585 = por %p583, %p584
      %p586 = scmp.ne.s32.totalorder %s578, %s580
      %p587 = scmp.eq.s32.totalorder %s40, 1
      %p588 = por %p586, %p587
      %p589 = scmp.ne.s32.totalorder %s580, %s581
      %p590 = scmp.eq.s32.totalorder %s40, 0
      %p591 = por %p589, %p590
      %p592 = scmp.ne.s32.totalorder %s580, %s581
      %p593 = scmp.eq.s32.totalorder %s41, 1
      %p594 = por %p592, %p593
      %p596 = scmp.ne.s32.totalorder %s581, %s595
      %p597 = scmp.eq.s32.totalorder %s41, 0
      %p598 = por %p596, %p597
      %s599 = ssub.s32 %s35, %s42
      %p600 = scmp.eq.s32.totalorder %s599, 0
      %s602 = sadd.s32 %s601, 1
      %s603 = scalar_select %p600, %s601, %s602
      %p606 = pneg %p600
      %p607 = scmp.eq.s32.totalorder %s35, 1
      %p608 = por %p606, %p607
      %p609 = scmp.ne.s32.totalorder %s601, %s604
      %p610 = scmp.eq.s32.totalorder %s35, 0
      %p611 = por %p609, %p610
      %p612 = scmp.ne.s32.totalorder %s601, %s604
      %p613 = scmp.eq.s32.totalorder %s40, 1
      %p614 = por %p612, %p613
      %p615 = scmp.ne.s32.totalorder %s604, %s605
      %p616 = scmp.eq.s32.totalorder %s40, 0
      %p617 = por %p615, %p616
      %p618 = scmp.ne.s32.totalorder %s604, %s605
      %p619 = scmp.eq.s32.totalorder %s41, 1
      %p620 = por %p618, %p619
      %p622 = scmp.ne.s32.totalorder %s605, %s621
      %p623 = scmp.eq.s32.totalorder %s41, 0
      %p624 = por %p622, %p623
      %p625 = scmp.le.s32.totalorder 1, %s35
      %p626 = scmp.lt.s32.totalorder %s35, 3
      %p627 = pnand %p625, %p626
      %p628 = pneg %p627
      // Predicated region
      $region9: #{tpu_custom_call.1} parent=5 // pred_check
        _
      $region10: #{tpu_custom_call.1} parent=5 // pred_check_branch
        %630 = sbr.rel (%p627) target = $region12
      $region11: #{tpu_custom_call.1} parent=5 // pred_region
        %s631 = ssub.s32 %s35, 1
        // Predicated region
        $region13: #{tpu_custom_call.1} parent=11 // pred_check
          %p632 = pneg %p108
        $region14: #{tpu_custom_call.1} parent=11 // pred_check_branch
          %634 = sbr.rel (%p632) target = $region16
        $region15: #{tpu_custom_call.1} parent=11 // pred_region
          _
        $region16: #{tpu_custom_call.1} parent=11 // pred_fallthru
          _
        // Predicated region
        $region17: #{tpu_custom_call.1} parent=11 // pred_check
          %p635 = pneg %p129
        $region18: #{tpu_custom_call.1} parent=11 // pred_check_branch
          %637 = sbr.rel (%p635) target = $region20
        $region19: #{tpu_custom_call.1} parent=11 // pred_region
          _
        $region20: #{tpu_custom_call.1} parent=11 // pred_fallthru
          _
        // Predicated region
        $region21: #{tpu_custom_call.1} parent=11 // pred_check
          %p638 = pneg %p150
        $region22: #{tpu_custom_call.1} parent=11 // pred_check_branch
          %640 = sbr.rel (%p638) target = $region24
        $region23: #{tpu_custom_call.1} parent=11 // pred_region
          _
        $region24: #{tpu_custom_call.1} parent=11 // pred_fallthru
          _
        // Predicated region
        $region25: #{tpu_custom_call.1} parent=11 // pred_check
          %p641 = pneg %p171
        $region26: #{tpu_custom_call.1} parent=11 // pred_check_branch
          %643 = sbr.rel (%p641) target = $region28
        $region27: #{tpu_custom_call.1} parent=11 // pred_region
          _
        $region28: #{tpu_custom_call.1} parent=11 // pred_fallthru
          _
        // Predicated region
        $region29: #{tpu_custom_call.1} parent=11 // pred_check
          %p644 = pneg %p192
        $region30: #{tpu_custom_call.1} parent=11 // pred_check_branch
          %646 = sbr.rel (%p644) target = $region32
        $region31: #{tpu_custom_call.1} parent=11 // pred_region
          _
        $region32: #{tpu_custom_call.1} parent=11 // pred_fallthru
          _
        // Predicated region
        $region33: #{tpu_custom_call.1} parent=11 // pred_check
          %p647 = pneg %p213
        $region34: #{tpu_custom_call.1} parent=11 // pred_check_branch
          %649 = sbr.rel (%p647) target = $region36
        $region35: #{tpu_custom_call.1} parent=11 // pred_region
          _
        $region36: #{tpu_custom_call.1} parent=11 // pred_fallthru
          _
        // Predicated region
        $region37: #{tpu_custom_call.1} parent=11 // pred_check
          %p650 = pneg %p234
        $region38: #{tpu_custom_call.1} parent=11 // pred_check_branch
          %652 = sbr.rel (%p650) target = $region40
        $region39: #{tpu_custom_call.1} parent=11 // pred_region
          _
        $region40: #{tpu_custom_call.1} parent=11 // pred_fallthru
          _
        // Predicated region
        $region41: #{tpu_custom_call.1} parent=11 // pred_check
          %p653 = pneg %p255
        $region42: #{tpu_custom_call.1} parent=11 // pred_check_branch
          %655 = sbr.rel (%p653) target = $region44
        $region43: #{tpu_custom_call.1} parent=11 // pred_region
          _
        $region44: #{tpu_custom_call.1} parent=11 // pred_fallthru
          _
        // Predicated region
        $region45: #{tpu_custom_call.1} parent=11 // pred_check
          %p656 = pneg %p276
        $region46: #{tpu_custom_call.1} parent=11 // pred_check_branch
          %658 = sbr.rel (%p656) target = $region48
        $region47: #{tpu_custom_call.1} parent=11 // pred_region
          _
        $region48: #{tpu_custom_call.1} parent=11 // pred_fallthru
          _
        // Predicated region
        $region49: #{tpu_custom_call.1} parent=11 // pred_check
          %p659 = pneg %p297
        $region50: #{tpu_custom_call.1} parent=11 // pred_check_branch
          %661 = sbr.rel (%p659) target = $region52
        $region51: #{tpu_custom_call.1} parent=11 // pred_region
          _
        $region52: #{tpu_custom_call.1} parent=11 // pred_fallthru
          _
        // Predicated region
        $region53: #{tpu_custom_call.1} parent=11 // pred_check
          %p662 = pneg %p318
        $region54: #{tpu_custom_call.1} parent=11 // pred_check_branch
          %664 = sbr.rel (%p662) target = $region56
        $region55: #{tpu_custom_call.1} parent=11 // pred_region
          _
        $region56: #{tpu_custom_call.1} parent=11 // pred_fallthru
          _
        // Predicated region
        $region57: #{tpu_custom_call.1} parent=11 // pred_check
          %p665 = pneg %p339
        $region58: #{tpu_custom_call.1} parent=11 // pred_check_branch
          %667 = sbr.rel (%p665) target = $region60
        $region59: #{tpu_custom_call.1} parent=11 // pred_region
          _
        $region60: #{tpu_custom_call.1} parent=11 // pred_fallthru
          _
        // Predicated region
        $region61: #{tpu_custom_call.1} parent=11 // pred_check
          %p668 = pneg %p360
        $region62: #{tpu_custom_call.1} parent=11 // pred_check_branch
          %670 = sbr.rel (%p668) target = $region64
        $region63: #{tpu_custom_call.1} parent=11 // pred_region
          _
        $region64: #{tpu_custom_call.1} parent=11 // pred_fallthru
          _
        // Predicated region
        $region65: #{tpu_custom_call.1} parent=11 // pred_check
          %p671 = pneg %p381
        $region66: #{tpu_custom_call.1} parent=11 // pred_check_branch
          %673 = sbr.rel (%p671) target = $region68
        $region67: #{tpu_custom_call.1} parent=11 // pred_region
          _
        $region68: #{tpu_custom_call.1} parent=11 // pred_fallthru
          _
        // Predicated region
        $region69: #{tpu_custom_call.1} parent=11 // pred_check
          %p674 = pneg %p402
        $region70: #{tpu_custom_call.1} parent=11 // pred_check_branch
          %676 = sbr.rel (%p674) target = $region72
        $region71: #{tpu_custom_call.1} parent=11 // pred_region
          _
        $region72: #{tpu_custom_call.1} parent=11 // pred_fallthru
          _
        // Predicated region
        $region73: #{tpu_custom_call.1} parent=11 // pred_check
          %p677 = pneg %p423
        $region74: #{tpu_custom_call.1} parent=11 // pred_check_branch
          %679 = sbr.rel (%p677) target = $region76
        $region75: #{tpu_custom_call.1} parent=11 // pred_region
          _
        $region76: #{tpu_custom_call.1} parent=11 // pred_fallthru
          _
        // Predicated region
        $region77: #{tpu_custom_call.1} parent=11 // pred_check
          %p680 = pneg %p444
        $region78: #{tpu_custom_call.1} parent=11 // pred_check_branch
          %682 = sbr.rel (%p680) target = $region80
        $region79: #{tpu_custom_call.1} parent=11 // pred_region
          _
        $region80: #{tpu_custom_call.1} parent=11 // pred_fallthru
          _
        // Predicated region
        $region81: #{tpu_custom_call.1} parent=11 // pred_check
          %p683 = pneg %p465
        $region82: #{tpu_custom_call.1} parent=11 // pred_check_branch
          %685 = sbr.rel (%p683) target = $region84
        $region83: #{tpu_custom_call.1} parent=11 // pred_region
          _
        $region84: #{tpu_custom_call.1} parent=11 // pred_fallthru
          _
        // Predicated region
        $region85: #{tpu_custom_call.1} parent=11 // pred_check
          %p686 = pneg %p486
        $region86: #{tpu_custom_call.1} parent=11 // pred_check_branch
          %688 = sbr.rel (%p686) target = $region88
        $region87: #{tpu_custom_call.1} parent=11 // pred_region
          _
        $region88: #{tpu_custom_call.1} parent=11 // pred_fallthru
          _
        // Predicated region
        $region89: #{tpu_custom_call.1} parent=11 // pred_check
          %p689 = pneg %p507
        $region90: #{tpu_custom_call.1} parent=11 // pred_check_branch
          %691 = sbr.rel (%p689) target = $region92
        $region91: #{tpu_custom_call.1} parent=11 // pred_region
          _
        $region92: #{tpu_custom_call.1} parent=11 // pred_fallthru
          _
        // Predicated region
        $region93: #{tpu_custom_call.1} parent=11 // pred_check
          %p692 = pneg %p528
        $region94: #{tpu_custom_call.1} parent=11 // pred_check_branch
          %694 = sbr.rel (%p692) target = $region96
        $region95: #{tpu_custom_call.1} parent=11 // pred_region
          _
        $region96: #{tpu_custom_call.1} parent=11 // pred_fallthru
          _
        // Predicated region
        $region97: #{tpu_custom_call.1} parent=11 // pred_check
          %p695 = pneg %p549
        $region98: #{tpu_custom_call.1} parent=11 // pred_check_branch
          %697 = sbr.rel (%p695) target = $region100
        $region99: #{tpu_custom_call.1} parent=11 // pred_region
          _
        $region100: #{tpu_custom_call.1} parent=11 // pred_fallthru
          _
        // Predicated region
        $region101: #{tpu_custom_call.1} parent=11 // pred_check
          %p698 = pneg %p570
        $region102: #{tpu_custom_call.1} parent=11 // pred_check_branch
          %700 = sbr.rel (%p698) target = $region104
        $region103: #{tpu_custom_call.1} parent=11 // pred_region
          _
        $region104: #{tpu_custom_call.1} parent=11 // pred_fallthru
          _
        // Predicated region
        $region105: #{tpu_custom_call.1} parent=11 // pred_check
          %p701 = pneg %p591
        $region106: #{tpu_custom_call.1} parent=11 // pred_check_branch
          %703 = sbr.rel (%p701) target = $region108
        $region107: #{tpu_custom_call.1} parent=11 // pred_region
          _
        $region108: #{tpu_custom_call.1} parent=11 // pred_fallthru
          _
      $region12: #{tpu_custom_call.1} parent=5 // pred_fallthru
        _
      %p704 = scmp.lt.s32.totalorder %s35, 2
      // Predicated region
      $region109: #{tpu_custom_call.1} parent=5 // pred_check
        %p705 = pneg %p704
      $region110: #{tpu_custom_call.1} parent=5 // pred_check_branch
        %707 = sbr.rel (%p705) target = $region112
      $region111: #{tpu_custom_call.1} parent=5 // pred_region
        // Predicated region
        $region113: #{tpu_custom_call.1} parent=111 // pred_check
          %p708 = pneg %p55
        $region114: #{tpu_custom_call.1} parent=111 // pred_check_branch
          %710 = sbr.rel (%p708) target = $region116
        $region115: #{tpu_custom_call.1} parent=111 // pred_region
          %p711 = scmp.lt.s32.totalorder %s35, 1
          %s712 = scalar_select %p711, %s35, 1
          %s713 = smul.addr %s712, 2
          %s714 = smul.addr %s713, 8
          %s715 = scalar_lea.vmem %s0, %s714
        $region116: #{tpu_custom_call.1} parent=111 // pred_fallthru
          _
        // Predicated region
        $region117: #{tpu_custom_call.1} parent=111 // pred_check
          %p716 = pneg %p81
        $region118: #{tpu_custom_call.1} parent=111 // pred_check_branch
          %718 = sbr.rel (%p716) target = $region120
        $region119: #{tpu_custom_call.1} parent=111 // pred_region
          %p719 = scmp.lt.s32.totalorder %s35, 1
          %s720 = scalar_select %p719, %s35, 1
          %s721 = smul.addr %s720, 8
          %s722 = smul.addr %s721, 8
          %s723 = scalar_lea.vmem %s1, %s722
        $region120: #{tpu_custom_call.1} parent=111 // pred_fallthru
          _
      $region112: #{tpu_custom_call.1} parent=5 // pred_fallthru
        _
      %p724 = scmp.le.s32.totalorder 1, %s35
      %p725 = scmp.lt.s32.totalorder %s35, 3
      %p726 = pnand %p724, %p725
      %p727 = pneg %p726
      // Predicated region
      $region121: #{tpu_custom_call.1} parent=5 // pred_check
        _
      $region122: #{tpu_custom_call.1} parent=5 // pred_check_branch
        %729 = sbr.rel (%p726) target = $region124
      $region123: #{tpu_custom_call.1} parent=5 // pred_region
        %s730 = ssub.s32 %s35, 1
        %p731 = scmp.lt.s32.totalorder %s40, 1
        %s732 = scalar_select %p731, %s40, 1
        %s733 = smul.addr %s732, 2
        %s734 = smul.addr %s733, 8
        %s735 = scalar_lea.vmem %s0, %s734
        %p736 = pneg %p61
        %p737 = pneg %p58
        %p738 = scmp.lt.s32.totalorder %s40, 1
        %s739 = scalar_select %p738, %s40, 1
        %s740 = smul.addr %s739, 8
        %s741 = smul.addr %s740, 8
        %s742 = scalar_lea.vmem %s1, %s741
        %p743 = pneg %p87
        %p744 = pneg %p84
        %p745 = pneg %p108
        %p746 = pneg %p105
        %p747 = pneg %p129
        %p748 = pneg %p126
        %p749 = pneg %p150
        %p750 = pneg %p147
        %p751 = pneg %p171
        %p752 = pneg %p168
        %p753 = pneg %p192
        %p754 = pneg %p189
        %p755 = pneg %p213
        %p756 = pneg %p210
        %p757 = pneg %p234
        %p758 = pneg %p231
        %p759 = pneg %p255
        %p760 = pneg %p252
        %p761 = pneg %p276
        %p762 = pneg %p273
        %p763 = pneg %p297
        %p764 = pneg %p294
        %p765 = pneg %p318
        %p766 = pneg %p315
        %p767 = pneg %p339
        %p768 = pneg %p336
        %p769 = pneg %p360
        %p770 = pneg %p357
        %p771 = pneg %p381
        %p772 = pneg %p378
        %p773 = pneg %p402
        %p774 = pneg %p399
        %p775 = pneg %p423
        %p776 = pneg %p420
        %p777 = pneg %p444
        %p778 = pneg %p441
        %p779 = pneg %p465
        %p780 = pneg %p462
        %p781 = pneg %p486
        %p782 = pneg %p483
        %p783 = pneg %p507
        %p784 = pneg %p504
        %p785 = pneg %p528
        %p786 = pneg %p525
        %p787 = pneg %p549
        %p788 = pneg %p546
        %p789 = pneg %p570
        %p790 = pneg %p567
        %p791 = pneg %p591
        %p792 = pneg %p588
        %p793 = pneg %p617
        %p794 = pneg %p614
        %s795 = sand.u32 %s604, 1
        %s796 = scalar_lea.sflag [#allocation3], %s795
        %s797 = sand.u32 %s604, 1
        %s798 = scalar_lea.vmem [#allocation2], %s797
        %p799 = scmp.lt.s32.totalorder %s40, 1
        %s800 = scalar_select %p799, %s40, 1
        %s801 = smul.addr %s800, 2
        %s802 = smul.addr %s801, 8
        %s803 = scalar_lea.vmem %s0, %s802
        %p804 = scmp.lt.s32.totalorder %s40, 1
        %s805 = scalar_select %p804, %s40, 1
        %s806 = smul.addr %s805, 8
        %s807 = smul.addr %s806, 8
        %s808 = scalar_lea.vmem %s1, %s807
        %v809 = vld [vmem:[%s803] sm:$0xff]
        %v810 = vld [vmem:[%s803 + $0x8] sm:$0x1]
        %v811 = vld [vmem:[%s3] sm:$0x1]
        %v812 = vld [vmem:[%s2] sm:$0x1f]
        %vm813 = vcmask 39936
        %v815 = vsel %vm813, %v809, 0
        %v818 = vsel %vm813, %v810, 0
        %vm820 = vcmask 1044480
        %v822 = vsel %vm820, %v812, 0
        %824 = vmatprep.subr.mxu0 0.0
        %825 = vmatpush1.msra.mxu0 %v822
        %826 = vmatprep.subr.mxu0 0.0
        %827 = vmatpush1.msra.mxu0 0.0
        %828 = vmatprep.subr.mxu0 0.0
        %829 = vmatpush1.msra.mxu0 0.0
        %830 = vmatprep.subr.mxu0 0.0
        %831 = vmatpush1.msra.mxu0 0.0
        %832 = vmatprep.subr.mxu0 0.0
        %833 = vmatpush1.msra.mxu0 0.0
        %834 = vmatprep.subr.mxu0 0.0
        %835 = vmatpush1.msra.mxu0 0.0
        %836 = vmatprep.subr.mxu0 0.0
        %837 = vmatpush1.msra.mxu0 0.0
        %838 = vmatprep.subr.mxu0 0.0
        %839 = vmatpush1.msra.mxu0 0.0
        %840 = vmatprep.subr.mxu0 0.0
        %841 = vmatpush1.msra.mxu0 0.0
        %842 = vmatprep.subr.mxu0 0.0
        %843 = vmatpush1.msra.mxu0 0.0
        %844 = vmatprep.subr.mxu0 0.0
        %845 = vmatpush1.msra.mxu0 0.0
        %846 = vmatprep.subr.mxu0 0.0
        %847 = vmatpush1.msra.mxu0 0.0
        %848 = vmatprep.subr.mxu0 0.0
        %849 = vmatpush1.msra.mxu0 0.0
        %850 = vmatprep.subr.mxu0 0.0
        %851 = vmatpush1.msra.mxu0 0.0
        %852 = vmatprep.subr.mxu0 0.0
        %853 = vmatpush1.msra.mxu0 0.0
        %854 = vmatprep.subr.mxu0 0.0
        %855 = vmatpush1.msra.mxu0 0.0
        %856 = vmatprep.subr.mxu0 0.0
        %857 = vmatpush1.msra.mxu0 0.0
        %858 = vmatprep.subr.mxu0 0.0
        %859 = vmatpush1.msra.mxu0 0.0
        %860 = vmatprep.subr.mxu0 0.0
        %861 = vmatpush1.msra.mxu0 0.0
        %862 = vmatprep.subr.mxu0 0.0
        %863 = vmatpush1.msra.mxu0 0.0
        %864 = vmatprep.subr.mxu0 0.0
        %865 = vmatpush1.msra.mxu0 0.0
        %866 = vmatprep.subr.mxu0 0.0
        %867 = vmatpush1.msra.mxu0 0.0
        %868 = vmatprep.subr.mxu0 0.0
        %869 = vmatpush1.msra.mxu0 0.0
        %870 = vmatprep.subr.mxu0 0.0
        %871 = vmatpush1.msra.mxu0 0.0
        %872 = vmatprep.subr.mxu0 0.0
        %873 = vmatpush1.msra.mxu0 0.0
        %874 = vmatprep.subr.mxu0 0.0
        %875 = vmatpush1.msra.mxu0 0.0
        %876 = vmatprep.subr.mxu0 0.0
        %877 = vmatpush1.msra.mxu0 0.0
        %878 = vmatprep.subr.mxu0 0.0
        %879 = vmatpush1.msra.mxu0 0.0
        %880 = vmatprep.subr.mxu0 0.0
        %881 = vmatpush1.msra.mxu0 0.0
        %882 = vmatprep.subr.mxu0 0.0
        %883 = vmatpush1.msra.mxu0 0.0
        %884 = vmatprep.subr.mxu0 0.0
        %885 = vmatpush1.msra.mxu0 0.0
        %886 = vmatprep.subr.mxu0 0.0
        %887 = vmatpush1.msra.mxu0 0.0
        %888 = vmatprep.mubr.f32.mxu0 0.0
        %889 = vmatmul.mubr.f32.gmra.mrb[0].mxu0 %v815
        %v890 = vpop.f32.mrb[0].mxu0
        %v891 = vadd.f32 0.0, %v890
        %v892 = vpop.f32.mrb[0].mxu0
        %893 = vmatprep.mubr.f32.mxu0 0.0
        %894 = vmatmul.mubr.f32.gmra.mrb[0].mxu0 %v818
        %v895 = vpop.f32.mrb[0].mxu0
        %v896 = vadd.f32 0.0, %v895
        %v897 = vpop.f32.mrb[0].mxu0
        %898 = vdwg.mxu0
        %v900 = vlaneseq
        %v901 = vshrl.u32 %v900, 7
        %v902 = vsub.s32 0, %v901
        %v903 = vrot.slane %v811, %v902
        %v905 = vadd.f32 %v903, %v891
        %v906 = vadd.f32 %v903, %v896
        %v907 = vld [vmem:[%s5] sm:$0x1]
        %v908 = vld [vmem:[%s4] sm:$0x1f]
        %v910 = vsel %vm820, %v908, 0
        %912 = vmatprep.subr.mxu0 0.0
        %913 = vmatpush1.msra.mxu0 %v910
        %914 = vmatprep.subr.mxu0 0.0
        %915 = vmatpush1.msra.mxu0 0.0
        %916 = vmatprep.subr.mxu0 0.0
        %917 = vmatpush1.msra.mxu0 0.0
        %918 = vmatprep.subr.mxu0 0.0
        %919 = vmatpush1.msra.mxu0 0.0
        %920 = vmatprep.subr.mxu0 0.0
        %921 = vmatpush1.msra.mxu0 0.0
        %922 = vmatprep.subr.mxu0 0.0
        %923 = vmatpush1.msra.mxu0 0.0
        %924 = vmatprep.subr.mxu0 0.0
        %925 = vmatpush1.msra.mxu0 0.0
        %926 = vmatprep.subr.mxu0 0.0
        %927 = vmatpush1.msra.mxu0 0.0
        %928 = vmatprep.subr.mxu0 0.0
        %929 = vmatpush1.msra.mxu0 0.0
        %930 = vmatprep.subr.mxu0 0.0
        %931 = vmatpush1.msra.mxu0 0.0
        %932 = vmatprep.subr.mxu0 0.0
        %933 = vmatpush1.msra.mxu0 0.0
        %934 = vmatprep.subr.mxu0 0.0
        %935 = vmatpush1.msra.mxu0 0.0
        %936 = vmatprep.subr.mxu0 0.0
        %937 = vmatpush1.msra.mxu0 0.0
        %938 = vmatprep.subr.mxu0 0.0
        %939 = vmatpush1.msra.mxu0 0.0
        %940 = vmatprep.subr.mxu0 0.0
        %941 = vmatpush1.msra.mxu0 0.0
        %942 = vmatprep.subr.mxu0 0.0
        %943 = vmatpush1.msra.mxu0 0.0
        %944 = vmatprep.subr.mxu0 0.0
        %945 = vmatpush1.msra.mxu0 0.0
        %946 = vmatprep.subr.mxu0 0.0
        %947 = vmatpush1.msra.mxu0 0.0
        %948 = vmatprep.subr.mxu0 0.0
        %949 = vmatpush1.msra.mxu0 0.0
        %950 = vmatprep.subr.mxu0 0.0
        %951 = vmatpush1.msra.mxu0 0.0
        %952 = vmatprep.subr.mxu0 0.0
        %953 = vmatpush1.msra.mxu0 0.0
        %954 = vmatprep.subr.mxu0 0.0
        %955 = vmatpush1.msra.mxu0 0.0
        %956 = vmatprep.subr.mxu0 0.0
        %957 = vmatpush1.msra.mxu0 0.0
        %958 = vmatprep.subr.mxu0 0.0
        %959 = vmatpush1.msra.mxu0 0.0
        %960 = vmatprep.subr.mxu0 0.0
        %961 = vmatpush1.msra.mxu0 0.0
        %962 = vmatprep.subr.mxu0 0.0
        %963 = vmatpush1.msra.mxu0 0.0
        %964 = vmatprep.subr.mxu0 0.0
        %965 = vmatpush1.msra.mxu0 0.0
        %966 = vmatprep.subr.mxu0 0.0
        %967 = vmatpush1.msra.mxu0 0.0
        %968 = vmatprep.subr.mxu0 0.0
        %969 = vmatpush1.msra.mxu0 0.0
        %970 = vmatprep.subr.mxu0 0.0
        %971 = vmatpush1.msra.mxu0 0.0
        %972 = vmatprep.subr.mxu0 0.0
        %973 = vmatpush1.msra.mxu0 0.0
        %974 = vmatprep.subr.mxu0 0.0
        %975 = vmatpush1.msra.mxu0 0.0
        %976 = vmatprep.mubr.f32.mxu0 0.0
        %977 = vmatmul.mubr.f32.gmra.mrb[0].mxu0 %v815
        %v978 = vpop.f32.mrb[0].mxu0
        %v979 = vadd.f32 0.0, %v978
        %v980 = vpop.f32.mrb[0].mxu0
        %981 = vmatprep.mubr.f32.mxu0 0.0
        %982 = vmatmul.mubr.f32.gmra.mrb[0].mxu0 %v818
        %v983 = vpop.f32.mrb[0].mxu0
        %v984 = vadd.f32 0.0, %v983
        %v985 = vpop.f32.mrb[0].mxu0
        %986 = vdwg.mxu0
        %v988 = vlaneseq
        %v989 = vshrl.u32 %v988, 7
        %v990 = vsub.s32 0, %v989
        %v991 = vrot.slane %v907, %v990
        %v993 = vadd.f32 %v991, %v979
        %v994 = vadd.f32 %v991, %v984
        %v995 = vld [vmem:[%s808] sm:$0xff]
        %v996 = vld [vmem:[%s808 + $0x8] sm:$0x1]
        %vm997 = vcmask 72704
        %v999 = vsel %vm997, %v995, 0
        %v1002 = vsel %vm997, %v996, 0
        %vm1004 = vcmask 1040384
        %v1006 = vsel %vm1004, %v994, 0
        %1008 = vmatprep.subr.mxu0 0.0
        %1009 = vmatpush1.msra.mxu0 %v993
        %1010 = vmatprep.subr.mxu0 0.0
        %1011 = vmatpush1.msra.mxu0 %v1006
        %1012 = vmatprep.subr.mxu0 0.0
        %1013 = vmatpush1.msra.mxu0 0.0
        %1014 = vmatprep.subr.mxu0 0.0
        %1015 = vmatpush1.msra.mxu0 0.0
        %1016 = vmatprep.subr.mxu0 0.0
        %1017 = vmatpush1.msra.mxu0 0.0
        %1018 = vmatprep.subr.mxu0 0.0
        %1019 = vmatpush1.msra.mxu0 0.0
        %1020 = vmatprep.subr.mxu0 0.0
        %1021 = vmatpush1.msra.mxu0 0.0
        %1022 = vmatprep.subr.mxu0 0.0
        %1023 = vmatpush1.msra.mxu0 0.0
        %1024 = vmatprep.subr.mxu0 0.0
        %1025 = vmatpush1.msra.mxu0 0.0
        %1026 = vmatprep.subr.mxu0 0.0
        %1027 = vmatpush1.msra.mxu0 0.0
        %1028 = vmatprep.subr.mxu0 0.0
        %1029 = vmatpush1.msra.mxu0 0.0
        %1030 = vmatprep.subr.mxu0 0.0
        %1031 = vmatpush1.msra.mxu0 0.0
        %1032 = vmatprep.subr.mxu0 0.0
        %1033 = vmatpush1.msra.mxu0 0.0
        %1034 = vmatprep.subr.mxu0 0.0
        %1035 = vmatpush1.msra.mxu0 0.0
        %1036 = vmatprep.subr.mxu0 0.0
        %1037 = vmatpush1.msra.mxu0 0.0
        %1038 = vmatprep.subr.mxu0 0.0
        %1039 = vmatpush1.msra.mxu0 0.0
        %1040 = vmatprep.subr.mxu0 0.0
        %1041 = vmatpush1.msra.mxu0 0.0
        %1042 = vmatprep.subr.mxu0 0.0
        %1043 = vmatpush1.msra.mxu0 0.0
        %1044 = vmatprep.subr.mxu0 0.0
        %1045 = vmatpush1.msra.mxu0 0.0
        %1046 = vmatprep.subr.mxu0 0.0
        %1047 = vmatpush1.msra.mxu0 0.0
        %1048 = vmatprep.subr.mxu0 0.0
        %1049 = vmatpush1.msra.mxu0 0.0
        %1050 = vmatprep.subr.mxu0 0.0
        %1051 = vmatpush1.msra.mxu0 0.0
        %1052 = vmatprep.subr.mxu0 0.0
        %1053 = vmatpush1.msra.mxu0 0.0
        %1054 = vmatprep.subr.mxu0 0.0
        %1055 = vmatpush1.msra.mxu0 0.0
        %1056 = vmatprep.subr.mxu0 0.0
        %1057 = vmatpush1.msra.mxu0 0.0
        %1058 = vmatprep.subr.mxu0 0.0
        %1059 = vmatpush1.msra.mxu0 0.0
        %1060 = vmatprep.subr.mxu0 0.0
        %1061 = vmatpush1.msra.mxu0 0.0
        %1062 = vmatprep.subr.mxu0 0.0
        %1063 = vmatpush1.msra.mxu0 0.0
        %1064 = vmatprep.subr.mxu0 0.0
        %1065 = vmatpush1.msra.mxu0 0.0
        %1066 = vmatprep.subr.mxu0 0.0
        %1067 = vmatpush1.msra.mxu0 0.0
        %1068 = vmatprep.subr.mxu0 0.0
        %1069 = vmatpush1.msra.mxu0 0.0
        %1070 = vmatprep.subr.mxu0 0.0
        %1071 = vmatpush1.msra.mxu0 0.0
        %1072 = vmatprep.mubr.f32.mxu0 0.0
        %1073 = vmatmul.mubr.f32.gmra.mrb[0].mxu0 %v999
        %v1074 = vpop.f32.mrb[0].mxu0
        %v1075 = vadd.f32 0.0, %v1074
        %v1076 = vpop.f32.mrb[0].mxu0
        %1077 = vmatprep.mubr.f32.mxu0 0.0
        %1078 = vmatmul.mubr.f32.gmra.mrb[0].mxu0 %v1002
        %v1079 = vpop.f32.mrb[0].mxu0
        %v1080 = vadd.f32 0.0, %v1079
        %v1081 = vpop.f32.mrb[0].mxu0
        %1082 = vdwg.mxu0
        %v1083 = vadd.f32 %v905, %v1075
        %v1084 = vadd.f32 %v906, %v1080
        %s1085 = scalar_lea.vmem %s808, 16
        %v1086 = vld [vmem:[%s1085] sm:$0xff]
        %v1087 = vld [vmem:[%s1085 + $0x8] sm:$0x1]
        %1089 = vrot.lane.b32.xlu0 %v993, 96
        %v1090 = vpop.permute.xlu0 %1089
        %1091 = vrot.lane.b32.xlu0 %v994, 96
        %v1092 = vpop.permute.xlu0 %1091
        %v1095 = vsel %vm997, %v1086, 0
        %v1098 = vsel %vm997, %v1087, 0
        %v1100 = vsel %vm1004, %v1092, 0
        %1102 = vmatprep.subr.mxu0 0.0
        %1103 = vmatpush1.msra.mxu0 %v1090
        %1104 = vmatprep.subr.mxu0 0.0
        %1105 = vmatpush1.msra.mxu0 %v1100
        %1106 = vmatprep.subr.mxu0 0.0
        %1107 = vmatpush1.msra.mxu0 0.0
        %1108 = vmatprep.subr.mxu0 0.0
        %1109 = vmatpush1.msra.mxu0 0.0
        %1110 = vmatprep.subr.mxu0 0.0
        %1111 = vmatpush1.msra.mxu0 0.0
        %1112 = vmatprep.subr.mxu0 0.0
        %1113 = vmatpush1.msra.mxu0 0.0
        %1114 = vmatprep.subr.mxu0 0.0
        %1115 = vmatpush1.msra.mxu0 0.0
        %1116 = vmatprep.subr.mxu0 0.0
        %1117 = vmatpush1.msra.mxu0 0.0
        %1118 = vmatprep.subr.mxu0 0.0
        %1119 = vmatpush1.msra.mxu0 0.0
        %1120 = vmatprep.subr.mxu0 0.0
        %1121 = vmatpush1.msra.mxu0 0.0
        %1122 = vmatprep.subr.mxu0 0.0
        %1123 = vmatpush1.msra.mxu0 0.0
        %1124 = vmatprep.subr.mxu0 0.0
        %1125 = vmatpush1.msra.mxu0 0.0
        %1126 = vmatprep.subr.mxu0 0.0
        %1127 = vmatpush1.msra.mxu0 0.0
        %1128 = vmatprep.subr.mxu0 0.0
        %1129 = vmatpush1.msra.mxu0 0.0
        %1130 = vmatprep.subr.mxu0 0.0
        %1131 = vmatpush1.msra.mxu0 0.0
        %1132 = vmatprep.subr.mxu0 0.0
        %1133 = vmatpush1.msra.mxu0 0.0
        %1134 = vmatprep.subr.mxu0 0.0
        %1135 = vmatpush1.msra.mxu0 0.0
        %1136 = vmatprep.subr.mxu0 0.0
        %1137 = vmatpush1.msra.mxu0 0.0
        %1138 = vmatprep.subr.mxu0 0.0
        %1139 = vmatpush1.msra.mxu0 0.0
        %1140 = vmatprep.subr.mxu0 0.0
        %1141 = vmatpush1.msra.mxu0 0.0
        %1142 = vmatprep.subr.mxu0 0.0
        %1143 = vmatpush1.msra.mxu0 0.0
        %1144 = vmatprep.subr.mxu0 0.0
        %1145 = vmatpush1.msra.mxu0 0.0
        %1146 = vmatprep.subr.mxu0 0.0
        %1147 = vmatpush1.msra.mxu0 0.0
        %1148 = vmatprep.subr.mxu0 0.0
        %1149 = vmatpush1.msra.mxu0 0.0
        %1150 = vmatprep.subr.mxu0 0.0
        %1151 = vmatpush1.msra.mxu0 0.0
        %1152 = vmatprep.subr.mxu0 0.0
        %1153 = vmatpush1.msra.mxu0 0.0
        %1154 = vmatprep.subr.mxu0 0.0
        %1155 = vmatpush1.msra.mxu0 0.0
        %1156 = vmatprep.subr.mxu0 0.0
        %1157 = vmatpush1.msra.mxu0 0.0
        %1158 = vmatprep.subr.mxu0 0.0
        %1159 = vmatpush1.msra.mxu0 0.0
        %1160 = vmatprep.subr.mxu0 0.0
        %1161 = vmatpush1.msra.mxu0 0.0
        %1162 = vmatprep.subr.mxu0 0.0
        %1163 = vmatpush1.msra.mxu0 0.0
        %1164 = vmatprep.subr.mxu0 0.0
        %1165 = vmatpush1.msra.mxu0 0.0
        %1166 = vmatprep.mubr.f32.mxu0 0.0
        %1167 = vmatmul.mubr.f32.gmra.mrb[0].mxu0 %v1095
        %v1168 = vpop.f32.mrb[0].mxu0
        %v1169 = vadd.f32 0.0, %v1168
        %v1170 = vpop.f32.mrb[0].mxu0
        %1171 = vmatprep.mubr.f32.mxu0 0.0
        %1172 = vmatmul.mubr.f32.gmra.mrb[0].mxu0 %v1098
        %v1173 = vpop.f32.mrb[0].mxu0
        %v1174 = vadd.f32 0.0, %v1173
        %v1175 = vpop.f32.mrb[0].mxu0
        %1176 = vdwg.mxu0
        %v1177 = vadd.f32 %v1083, %v1169
        %v1178 = vadd.f32 %v1084, %v1174
        %s1179 = scalar_lea.vmem %s808, 32
        %v1180 = vld [vmem:[%s1179] sm:$0xff]
        %v1181 = vld [vmem:[%s1179 + $0x8] sm:$0x1]
        %1182 = vrot.lane.b32.xlu0 %v993, 64
        %v1183 = vpop.permute.xlu0 %1182
        %1184 = vrot.lane.b32.xlu0 %v994, 64
        %v1185 = vpop.permute.xlu0 %1184
        %v1188 = vsel %vm997, %v1180, 0
        %v1191 = vsel %vm997, %v1181, 0
        %v1193 = vsel %vm1004, %v1185, 0
        %1195 = vmatprep.subr.mxu0 0.0
        %1196 = vmatpush1.msra.mxu0 %v1183
        %1197 = vmatprep.subr.mxu0 0.0
        %1198 = vmatpush1.msra.mxu0 %v1193
        %1199 = vmatprep.subr.mxu0 0.0
        %1200 = vmatpush1.msra.mxu0 0.0
        %1201 = vmatprep.subr.mxu0 0.0
        %1202 = vmatpush1.msra.mxu0 0.0
        %1203 = vmatprep.subr.mxu0 0.0
        %1204 = vmatpush1.msra.mxu0 0.0
        %1205 = vmatprep.subr.mxu0 0.0
        %1206 = vmatpush1.msra.mxu0 0.0
        %1207 = vmatprep.subr.mxu0 0.0
        %1208 = vmatpush1.msra.mxu0 0.0
        %1209 = vmatprep.subr.mxu0 0.0
        %1210 = vmatpush1.msra.mxu0 0.0
        %1211 = vmatprep.subr.mxu0 0.0
        %1212 = vmatpush1.msra.mxu0 0.0
        %1213 = vmatprep.subr.mxu0 0.0
        %1214 = vmatpush1.msra.mxu0 0.0
        %1215 = vmatprep.subr.mxu0 0.0
        %1216 = vmatpush1.msra.mxu0 0.0
        %1217 = vmatprep.subr.mxu0 0.0
        %1218 = vmatpush1.msra.mxu0 0.0
        %1219 = vmatprep.subr.mxu0 0.0
        %1220 = vmatpush1.msra.mxu0 0.0
        %1221 = vmatprep.subr.mxu0 0.0
        %1222 = vmatpush1.msra.mxu0 0.0
        %1223 = vmatprep.subr.mxu0 0.0
        %1224 = vmatpush1.msra.mxu0 0.0
        %1225 = vmatprep.subr.mxu0 0.0
        %1226 = vmatpush1.msra.mxu0 0.0
        %1227 = vmatprep.subr.mxu0 0.0
        %1228 = vmatpush1.msra.mxu0 0.0
        %1229 = vmatprep.subr.mxu0 0.0
        %1230 = vmatpush1.msra.mxu0 0.0
        %1231 = vmatprep.subr.mxu0 0.0
        %1232 = vmatpush1.msra.mxu0 0.0
        %1233 = vmatprep.subr.mxu0 0.0
        %1234 = vmatpush1.msra.mxu0 0.0
        %1235 = vmatprep.subr.mxu0 0.0
        %1236 = vmatpush1.msra.mxu0 0.0
        %1237 = vmatprep.subr.mxu0 0.0
        %1238 = vmatpush1.msra.mxu0 0.0
        %1239 = vmatprep.subr.mxu0 0.0
        %1240 = vmatpush1.msra.mxu0 0.0
        %1241 = vmatprep.subr.mxu0 0.0
        %1242 = vmatpush1.msra.mxu0 0.0
        %1243 = vmatprep.subr.mxu0 0.0
        %1244 = vmatpush1.msra.mxu0 0.0
        %1245 = vmatprep.subr.mxu0 0.0
        %1246 = vmatpush1.msra.mxu0 0.0
        %1247 = vmatprep.subr.mxu0 0.0
        %1248 = vmatpush1.msra.mxu0 0.0
        %1249 = vmatprep.subr.mxu0 0.0
        %1250 = vmatpush1.msra.mxu0 0.0
        %1251 = vmatprep.subr.mxu0 0.0
        %1252 = vmatpush1.msra.mxu0 0.0
        %1253 = vmatprep.subr.mxu0 0.0
        %1254 = vmatpush1.msra.mxu0 0.0
        %1255 = vmatprep.subr.mxu0 0.0
        %1256 = vmatpush1.msra.mxu0 0.0
        %1257 = vmatprep.subr.mxu0 0.0
        %1258 = vmatpush1.msra.mxu0 0.0
        %1259 = vmatprep.mubr.f32.mxu0 0.0
        %1260 = vmatmul.mubr.f32.gmra.mrb[0].mxu0 %v1188
        %v1261 = vpop.f32.mrb[0].mxu0
        %v1262 = vadd.f32 0.0, %v1261
        %v1263 = vpop.f32.mrb[0].mxu0
        %1264 = vmatprep.mubr.f32.mxu0 0.0
        %1265 = vmatmul.mubr.f32.gmra.mrb[0].mxu0 %v1191
        %v1266 = vpop.f32.mrb[0].mxu0
        %v1267 = vadd.f32 0.0, %v1266
        %v1268 = vpop.f32.mrb[0].mxu0
        %1269 = vdwg.mxu0
        %v1270 = vadd.f32 %v1177, %v1262
        %v1271 = vadd.f32 %v1178, %v1267
        %s1272 = scalar_lea.vmem %s808, 48
        %v1273 = vld [vmem:[%s1272] sm:$0xff]
        %v1274 = vld [vmem:[%s1272 + $0x8] sm:$0x1]
        %1275 = vrot.lane.b32.xlu0 %v993, 32
        %v1276 = vpop.permute.xlu0 %1275
        %1277 = vrot.lane.b32.xlu0 %v994, 32
        %v1278 = vpop.permute.xlu0 %1277
        %v1281 = vsel %vm997, %v1273, 0
        %v1284 = vsel %vm997, %v1274, 0
        %v1286 = vsel %vm1004, %v1278, 0
        %1288 = vmatprep.subr.mxu0 0.0
        %1289 = vmatpush1.msra.mxu0 %v1276
        %1290 = vmatprep.subr.mxu0 0.0
        %1291 = vmatpush1.msra.mxu0 %v1286
        %1292 = vmatprep.subr.mxu0 0.0
        %1293 = vmatpush1.msra.mxu0 0.0
        %1294 = vmatprep.subr.mxu0 0.0
        %1295 = vmatpush1.msra.mxu0 0.0
        %1296 = vmatprep.subr.mxu0 0.0
        %1297 = vmatpush1.msra.mxu0 0.0
        %1298 = vmatprep.subr.mxu0 0.0
        %1299 = vmatpush1.msra.mxu0 0.0
        %1300 = vmatprep.subr.mxu0 0.0
        %1301 = vmatpush1.msra.mxu0 0.0
        %1302 = vmatprep.subr.mxu0 0.0
        %1303 = vmatpush1.msra.mxu0 0.0
        %1304 = vmatprep.subr.mxu0 0.0
        %1305 = vmatpush1.msra.mxu0 0.0
        %1306 = vmatprep.subr.mxu0 0.0
        %1307 = vmatpush1.msra.mxu0 0.0
        %1308 = vmatprep.subr.mxu0 0.0
        %1309 = vmatpush1.msra.mxu0 0.0
        %1310 = vmatprep.subr.mxu0 0.0
        %1311 = vmatpush1.msra.mxu0 0.0
        %1312 = vmatprep.subr.mxu0 0.0
        %1313 = vmatpush1.msra.mxu0 0.0
        %1314 = vmatprep.subr.mxu0 0.0
        %1315 = vmatpush1.msra.mxu0 0.0
        %1316 = vmatprep.subr.mxu0 0.0
        %1317 = vmatpush1.msra.mxu0 0.0
        %1318 = vmatprep.subr.mxu0 0.0
        %1319 = vmatpush1.msra.mxu0 0.0
        %1320 = vmatprep.subr.mxu0 0.0
        %1321 = vmatpush1.msra.mxu0 0.0
        %1322 = vmatprep.subr.mxu0 0.0
        %1323 = vmatpush1.msra.mxu0 0.0
        %1324 = vmatprep.subr.mxu0 0.0
        %1325 = vmatpush1.msra.mxu0 0.0
        %1326 = vmatprep.subr.mxu0 0.0
        %1327 = vmatpush1.msra.mxu0 0.0
        %1328 = vmatprep.subr.mxu0 0.0
        %1329 = vmatpush1.msra.mxu0 0.0
        %1330 = vmatprep.subr.mxu0 0.0
        %1331 = vmatpush1.msra.mxu0 0.0
        %1332 = vmatprep.subr.mxu0 0.0
        %1333 = vmatpush1.msra.mxu0 0.0
        %1334 = vmatprep.subr.mxu0 0.0
        %1335 = vmatpush1.msra.mxu0 0.0
        %1336 = vmatprep.subr.mxu0 0.0
        %1337 = vmatpush1.msra.mxu0 0.0
        %1338 = vmatprep.subr.mxu0 0.0
        %1339 = vmatpush1.msra.mxu0 0.0
        %1340 = vmatprep.subr.mxu0 0.0
        %1341 = vmatpush1.msra.mxu0 0.0
        %1342 = vmatprep.subr.mxu0 0.0
        %1343 = vmatpush1.msra.mxu0 0.0
        %1344 = vmatprep.subr.mxu0 0.0
        %1345 = vmatpush1.msra.mxu0 0.0
        %1346 = vmatprep.subr.mxu0 0.0
        %1347 = vmatpush1.msra.mxu0 0.0
        %1348 = vmatprep.subr.mxu0 0.0
        %1349 = vmatpush1.msra.mxu0 0.0
        %1350 = vmatprep.subr.mxu0 0.0
        %1351 = vmatpush1.msra.mxu0 0.0
        %1352 = vmatprep.mubr.f32.mxu0 0.0
        %1353 = vmatmul.mubr.f32.gmra.mrb[0].mxu0 %v1281
        %v1354 = vpop.f32.mrb[0].mxu0
        %v1355 = vadd.f32 0.0, %v1354
        %v1356 = vpop.f32.mrb[0].mxu0
        %1357 = vmatprep.mubr.f32.mxu0 0.0
        %1358 = vmatmul.mubr.f32.gmra.mrb[0].mxu0 %v1284
        %v1359 = vpop.f32.mrb[0].mxu0
        %v1360 = vadd.f32 0.0, %v1359
        %v1361 = vpop.f32.mrb[0].mxu0
        %1362 = vdwg.mxu0
        %v1363 = vadd.f32 %v1270, %v1355
        %v1364 = vadd.f32 %v1271, %v1360
        %v1365 = vtanh.pop %v1363
        %v1366 = vtanh.pop %v1364
        %v1367 = vld [vmem:[%s7] sm:$0x1]
        %v1368 = vld [vmem:[%s6] sm:$0xff]
        %v1369 = vld [vmem:[%s6 + $0x8] sm:$0xff]
        %v1370 = vld [vmem:[%s6 + $0x10] sm:$0xff]
        %v1371 = vld [vmem:[%s6 + $0x18] sm:$0xff]
        %vm1372 = vcmask 261120
        %v1374 = vsel %vm1372, %v1365, 0
        %v1377 = vsel %vm1372, %v1366, 0
        %1379 = vmatprep.subr.mxu0 0.0
        %1380 = vmatpush1.msra.mxu0 %v1368
        %1381 = vmatprep.subr.mxu0 0.0
        %1382 = vmatpush1.msra.mxu0 %v1369
        %1383 = vmatprep.subr.mxu0 0.0
        %1384 = vmatpush1.msra.mxu0 %v1370
        %1385 = vmatprep.subr.mxu0 0.0
        %1386 = vmatpush1.msra.mxu0 %v1371
        %1387 = vmatprep.subr.mxu0 0.0
        %1388 = vmatpush1.msra.mxu0 0.0
        %1389 = vmatprep.subr.mxu0 0.0
        %1390 = vmatpush1.msra.mxu0 0.0
        %1391 = vmatprep.subr.mxu0 0.0
        %1392 = vmatpush1.msra.mxu0 0.0
        %1393 = vmatprep.subr.mxu0 0.0
        %1394 = vmatpush1.msra.mxu0 0.0
        %1395 = vmatprep.subr.mxu0 0.0
        %1396 = vmatpush1.msra.mxu0 0.0
        %1397 = vmatprep.subr.mxu0 0.0
        %1398 = vmatpush1.msra.mxu0 0.0
        %1399 = vmatprep.subr.mxu0 0.0
        %1400 = vmatpush1.msra.mxu0 0.0
        %1401 = vmatprep.subr.mxu0 0.0
        %1402 = vmatpush1.msra.mxu0 0.0
        %1403 = vmatprep.subr.mxu0 0.0
        %1404 = vmatpush1.msra.mxu0 0.0
        %1405 = vmatprep.subr.mxu0 0.0
        %1406 = vmatpush1.msra.mxu0 0.0
        %1407 = vmatprep.subr.mxu0 0.0
        %1408 = vmatpush1.msra.mxu0 0.0
        %1409 = vmatprep.subr.mxu0 0.0
        %1410 = vmatpush1.msra.mxu0 0.0
        %1411 = vmatprep.subr.mxu0 0.0
        %1412 = vmatpush1.msra.mxu0 0.0
        %1413 = vmatprep.subr.mxu0 0.0
        %1414 = vmatpush1.msra.mxu0 0.0
        %1415 = vmatprep.subr.mxu0 0.0
        %1416 = vmatpush1.msra.mxu0 0.0
        %1417 = vmatprep.subr.mxu0 0.0
        %1418 = vmatpush1.msra.mxu0 0.0
        %1419 = vmatprep.subr.mxu0 0.0
        %1420 = vmatpush1.msra.mxu0 0.0
        %1421 = vmatprep.subr.mxu0 0.0
        %1422 = vmatpush1.msra.mxu0 0.0
        %1423 = vmatprep.subr.mxu0 0.0
        %1424 = vmatpush1.msra.mxu0 0.0
        %1425 = vmatprep.subr.mxu0 0.0
        %1426 = vmatpush1.msra.mxu0 0.0
        %1427 = vmatprep.subr.mxu0 0.0
        %1428 = vmatpush1.msra.mxu0 0.0
        %1429 = vmatprep.subr.mxu0 0.0
        %1430 = vmatpush1.msra.mxu0 0.0
        %1431 = vmatprep.subr.mxu0 0.0
        %1432 = vmatpush1.msra.mxu0 0.0
        %1433 = vmatprep.subr.mxu0 0.0
        %1434 = vmatpush1.msra.mxu0 0.0
        %1435 = vmatprep.subr.mxu0 0.0
        %1436 = vmatpush1.msra.mxu0 0.0
        %1437 = vmatprep.subr.mxu0 0.0
        %1438 = vmatpush1.msra.mxu0 0.0
        %1439 = vmatprep.subr.mxu0 0.0
        %1440 = vmatpush1.msra.mxu0 0.0
        %1441 = vmatprep.subr.mxu0 0.0
        %1442 = vmatpush1.msra.mxu0 0.0
        %1443 = vmatprep.mubr.f32.mxu0 0.0
        %1444 = vmatmul.mubr.f32.gmra.mrb[0].mxu0 %v1374
        %v1445 = vpop.f32.mrb[0].mxu0
        %v1446 = vadd.f32 0.0, %v1445
        %v1447 = vpop.f32.mrb[0].mxu0
        %1448 = vmatprep.mubr.f32.mxu0 0.0
        %1449 = vmatmul.mubr.f32.gmra.mrb[0].mxu0 %v1377
        %v1450 = vpop.f32.mrb[0].mxu0
        %v1451 = vadd.f32 0.0, %v1450
        %v1452 = vpop.f32.mrb[0].mxu0
        %1453 = vdwg.mxu0
        %v1455 = vlaneseq
        %v1456 = vshrl.u32 %v1455, 7
        %v1457 = vsub.s32 0, %v1456
        %v1458 = vrot.slane %v1367, %v1457
        %v1460 = vadd.f32 %v1458, %v1446
        %v1461 = vadd.f32 %v1458, %v1451
        %v1462 = vld [vmem:[%s9] sm:$0x1]
        %v1463 = vld [vmem:[%s8] sm:$0xff]
        %v1464 = vld [vmem:[%s8 + $0x8] sm:$0xff]
        %v1465 = vld [vmem:[%s8 + $0x10] sm:$0xff]
        %v1466 = vld [vmem:[%s8 + $0x18] sm:$0xff]
        %1467 = vmatprep.subr.mxu0 0.0
        %1468 = vmatpush1.msra.mxu0 %v1463
        %1469 = vmatprep.subr.mxu0 0.0
        %1470 = vmatpush1.msra.mxu0 %v1464
        %1471 = vmatprep.subr.mxu0 0.0
        %1472 = vmatpush1.msra.mxu0 %v1465
        %1473 = vmatprep.subr.mxu0 0.0
        %1474 = vmatpush1.msra.mxu0 %v1466
        %1475 = vmatprep.subr.mxu0 0.0
        %1476 = vmatpush1.msra.mxu0 0.0
        %1477 = vmatprep.subr.mxu0 0.0
        %1478 = vmatpush1.msra.mxu0 0.0
        %1479 = vmatprep.subr.mxu0 0.0
        %1480 = vmatpush1.msra.mxu0 0.0
        %1481 = vmatprep.subr.mxu0 0.0
        %1482 = vmatpush1.msra.mxu0 0.0
        %1483 = vmatprep.subr.mxu0 0.0
        %1484 = vmatpush1.msra.mxu0 0.0
        %1485 = vmatprep.subr.mxu0 0.0
        %1486 = vmatpush1.msra.mxu0 0.0
        %1487 = vmatprep.subr.mxu0 0.0
        %1488 = vmatpush1.msra.mxu0 0.0
        %1489 = vmatprep.subr.mxu0 0.0
        %1490 = vmatpush1.msra.mxu0 0.0
        %1491 = vmatprep.subr.mxu0 0.0
        %1492 = vmatpush1.msra.mxu0 0.0
        %1493 = vmatprep.subr.mxu0 0.0
        %1494 = vmatpush1.msra.mxu0 0.0
        %1495 = vmatprep.subr.mxu0 0.0
        %1496 = vmatpush1.msra.mxu0 0.0
        %1497 = vmatprep.subr.mxu0 0.0
        %1498 = vmatpush1.msra.mxu0 0.0
        %1499 = vmatprep.subr.mxu0 0.0
        %1500 = vmatpush1.msra.mxu0 0.0
        %1501 = vmatprep.subr.mxu0 0.0
        %1502 = vmatpush1.msra.mxu0 0.0
        %1503 = vmatprep.subr.mxu0 0.0
        %1504 = vmatpush1.msra.mxu0 0.0
        %1505 = vmatprep.subr.mxu0 0.0
        %1506 = vmatpush1.msra.mxu0 0.0
        %1507 = vmatprep.subr.mxu0 0.0
        %1508 = vmatpush1.msra.mxu0 0.0
        %1509 = vmatprep.subr.mxu0 0.0
        %1510 = vmatpush1.msra.mxu0 0.0
        %1511 = vmatprep.subr.mxu0 0.0
        %1512 = vmatpush1.msra.mxu0 0.0
        %1513 = vmatprep.subr.mxu0 0.0
        %1514 = vmatpush1.msra.mxu0 0.0
        %1515 = vmatprep.subr.mxu0 0.0
        %1516 = vmatpush1.msra.mxu0 0.0
        %1517 = vmatprep.subr.mxu0 0.0
        %1518 = vmatpush1.msra.mxu0 0.0
        %1519 = vmatprep.subr.mxu0 0.0
        %1520 = vmatpush1.msra.mxu0 0.0
        %1521 = vmatprep.subr.mxu0 0.0
        %1522 = vmatpush1.msra.mxu0 0.0
        %1523 = vmatprep.subr.mxu0 0.0
        %1524 = vmatpush1.msra.mxu0 0.0
        %1525 = vmatprep.subr.mxu0 0.0
        %1526 = vmatpush1.msra.mxu0 0.0
        %1527 = vmatprep.subr.mxu0 0.0
        %1528 = vmatpush1.msra.mxu0 0.0
        %1529 = vmatprep.subr.mxu0 0.0
        %1530 = vmatpush1.msra.mxu0 0.0
        %1531 = vmatprep.mubr.f32.mxu0 0.0
        %1532 = vmatmul.mubr.f32.gmra.mrb[0].mxu0 %v1374
        %v1533 = vpop.f32.mrb[0].mxu0
        %v1534 = vadd.f32 0.0, %v1533
        %v1535 = vpop.f32.mrb[0].mxu0
        %1536 = vmatprep.mubr.f32.mxu0 0.0
        %1537 = vmatmul.mubr.f32.gmra.mrb[0].mxu0 %v1377
        %v1538 = vpop.f32.mrb[0].mxu0
        %v1539 = vadd.f32 0.0, %v1538
        %v1540 = vpop.f32.mrb[0].mxu0
        %1541 = vdwg.mxu0
        %v1543 = vlaneseq
        %v1544 = vshrl.u32 %v1543, 7
        %v1545 = vsub.s32 0, %v1544
        %v1546 = vrot.slane %v1462, %v1545
        %v1548 = vadd.f32 %v1546, %v1534
        %v1549 = vadd.f32 %v1546, %v1539
        %v1551 = vsel %vm1004, %v1549, 0
        %1553 = vmatprep.subr.mxu0 0.0
        %1554 = vmatpush1.msra.mxu0 %v1548
        %1555 = vmatprep.subr.mxu0 0.0
        %1556 = vmatpush1.msra.mxu0 %v1551
        %1557 = vmatprep.subr.mxu0 0.0
        %1558 = vmatpush1.msra.mxu0 0.0
        %1559 = vmatprep.subr.mxu0 0.0
        %1560 = vmatpush1.msra.mxu0 0.0
        %1561 = vmatprep.subr.mxu0 0.0
        %1562 = vmatpush1.msra.mxu0 0.0
        %1563 = vmatprep.subr.mxu0 0.0
        %1564 = vmatpush1.msra.mxu0 0.0
        %1565 = vmatprep.subr.mxu0 0.0
        %1566 = vmatpush1.msra.mxu0 0.0
        %1567 = vmatprep.subr.mxu0 0.0
        %1568 = vmatpush1.msra.mxu0 0.0
        %1569 = vmatprep.subr.mxu0 0.0
        %1570 = vmatpush1.msra.mxu0 0.0
        %1571 = vmatprep.subr.mxu0 0.0
        %1572 = vmatpush1.msra.mxu0 0.0
        %1573 = vmatprep.subr.mxu0 0.0
        %1574 = vmatpush1.msra.mxu0 0.0
        %1575 = vmatprep.subr.mxu0 0.0
        %1576 = vmatpush1.msra.mxu0 0.0
        %1577 = vmatprep.subr.mxu0 0.0
        %1578 = vmatpush1.msra.mxu0 0.0
        %1579 = vmatprep.subr.mxu0 0.0
        %1580 = vmatpush1.msra.mxu0 0.0
        %1581 = vmatprep.subr.mxu0 0.0
        %1582 = vmatpush1.msra.mxu0 0.0
        %1583 = vmatprep.subr.mxu0 0.0
        %1584 = vmatpush1.msra.mxu0 0.0
        %1585 = vmatprep.subr.mxu0 0.0
        %1586 = vmatpush1.msra.mxu0 0.0
        %1587 = vmatprep.subr.mxu0 0.0
        %1588 = vmatpush1.msra.mxu0 0.0
        %1589 = vmatprep.subr.mxu0 0.0
        %1590 = vmatpush1.msra.mxu0 0.0
        %1591 = vmatprep.subr.mxu0 0.0
        %1592 = vmatpush1.msra.mxu0 0.0
        %1593 = vmatprep.subr.mxu0 0.0
        %1594 = vmatpush1.msra.mxu0 0.0
        %1595 = vmatprep.subr.mxu0 0.0
        %1596 = vmatpush1.msra.mxu0 0.0
        %1597 = vmatprep.subr.mxu0 0.0
        %1598 = vmatpush1.msra.mxu0 0.0
        %1599 = vmatprep.subr.mxu0 0.0
        %1600 = vmatpush1.msra.mxu0 0.0
        %1601 = vmatprep.subr.mxu0 0.0
        %1602 = vmatpush1.msra.mxu0 0.0
        %1603 = vmatprep.subr.mxu0 0.0
        %1604 = vmatpush1.msra.mxu0 0.0
        %1605 = vmatprep.subr.mxu0 0.0
        %1606 = vmatpush1.msra.mxu0 0.0
        %1607 = vmatprep.subr.mxu0 0.0
        %1608 = vmatpush1.msra.mxu0 0.0
        %1609 = vmatprep.subr.mxu0 0.0
        %1610 = vmatpush1.msra.mxu0 0.0
        %1611 = vmatprep.subr.mxu0 0.0
        %1612 = vmatpush1.msra.mxu0 0.0
        %1613 = vmatprep.subr.mxu0 0.0
        %1614 = vmatpush1.msra.mxu0 0.0
        %1615 = vmatprep.subr.mxu0 0.0
        %1616 = vmatpush1.msra.mxu0 0.0
        %1617 = vmatprep.mubr.f32.mxu0 0.0
        %1618 = vmatmul.mubr.f32.gmra.mrb[0].mxu0 %v999
        %v1619 = vpop.f32.mrb[0].mxu0
        %v1620 = vadd.f32 0.0, %v1619
        %v1621 = vpop.f32.mrb[0].mxu0
        %1622 = vmatprep.mubr.f32.mxu0 0.0
        %1623 = vmatmul.mubr.f32.gmra.mrb[0].mxu0 %v1002
        %v1624 = vpop.f32.mrb[0].mxu0
        %v1625 = vadd.f32 0.0, %v1624
        %v1626 = vpop.f32.mrb[0].mxu0
        %1627 = vdwg.mxu0
        %v1628 = vadd.f32 %v1460, %v1620
        %v1629 = vadd.f32 %v1461, %v1625
        %1631 = vrot.lane.b32.xlu0 %v1548, 112
        %v1632 = vpop.permute.xlu0 %1631
        %1633 = vrot.lane.b32.xlu0 %v1549, 112
        %v1634 = vpop.permute.xlu0 %1633
        %v1636 = vsel %vm1004, %v1634, 0
        %1638 = vmatprep.subr.mxu0 0.0
        %1639 = vmatpush1.msra.mxu0 %v1632
        %1640 = vmatprep.subr.mxu0 0.0
        %1641 = vmatpush1.msra.mxu0 %v1636
        %1642 = vmatprep.subr.mxu0 0.0
        %1643 = vmatpush1.msra.mxu0 0.0
        %1644 = vmatprep.subr.mxu0 0.0
        %1645 = vmatpush1.msra.mxu0 0.0
        %1646 = vmatprep.subr.mxu0 0.0
        %1647 = vmatpush1.msra.mxu0 0.0
        %1648 = vmatprep.subr.mxu0 0.0
        %1649 = vmatpush1.msra.mxu0 0.0
        %1650 = vmatprep.subr.mxu0 0.0
        %1651 = vmatpush1.msra.mxu0 0.0
        %1652 = vmatprep.subr.mxu0 0.0
        %1653 = vmatpush1.msra.mxu0 0.0
        %1654 = vmatprep.subr.mxu0 0.0
        %1655 = vmatpush1.msra.mxu0 0.0
        %1656 = vmatprep.subr.mxu0 0.0
        %1657 = vmatpush1.msra.mxu0 0.0
        %1658 = vmatprep.subr.mxu0 0.0
        %1659 = vmatpush1.msra.mxu0 0.0
        %1660 = vmatprep.subr.mxu0 0.0
        %1661 = vmatpush1.msra.mxu0 0.0
        %1662 = vmatprep.subr.mxu0 0.0
        %1663 = vmatpush1.msra.mxu0 0.0
        %1664 = vmatprep.subr.mxu0 0.0
        %1665 = vmatpush1.msra.mxu0 0.0
        %1666 = vmatprep.subr.mxu0 0.0
        %1667 = vmatpush1.msra.mxu0 0.0
        %1668 = vmatprep.subr.mxu0 0.0
        %1669 = vmatpush1.msra.mxu0 0.0
        %1670 = vmatprep.subr.mxu0 0.0
        %1671 = vmatpush1.msra.mxu0 0.0
        %1672 = vmatprep.subr.mxu0 0.0
        %1673 = vmatpush1.msra.mxu0 0.0
        %1674 = vmatprep.subr.mxu0 0.0
        %1675 = vmatpush1.msra.mxu0 0.0
        %1676 = vmatprep.subr.mxu0 0.0
        %1677 = vmatpush1.msra.mxu0 0.0
        %1678 = vmatprep.subr.mxu0 0.0
        %1679 = vmatpush1.msra.mxu0 0.0
        %1680 = vmatprep.subr.mxu0 0.0
        %1681 = vmatpush1.msra.mxu0 0.0
        %1682 = vmatprep.subr.mxu0 0.0
        %1683 = vmatpush1.msra.mxu0 0.0
        %1684 = vmatprep.subr.mxu0 0.0
        %1685 = vmatpush1.msra.mxu0 0.0
        %1686 = vmatprep.subr.mxu0 0.0
        %1687 = vmatpush1.msra.mxu0 0.0
        %1688 = vmatprep.subr.mxu0 0.0
        %1689 = vmatpush1.msra.mxu0 0.0
        %1690 = vmatprep.subr.mxu0 0.0
        %1691 = vmatpush1.msra.mxu0 0.0
        %1692 = vmatprep.subr.mxu0 0.0
        %1693 = vmatpush1.msra.mxu0 0.0
        %1694 = vmatprep.subr.mxu0 0.0
        %1695 = vmatpush1.msra.mxu0 0.0
        %1696 = vmatprep.subr.mxu0 0.0
        %1697 = vmatpush1.msra.mxu0 0.0
        %1698 = vmatprep.subr.mxu0 0.0
        %1699 = vmatpush1.msra.mxu0 0.0
        %1700 = vmatprep.subr.mxu0 0.0
        %1701 = vmatpush1.msra.mxu0 0.0
        %1702 = vmatprep.mubr.f32.mxu0 0.0
        %1703 = vmatmul.mubr.f32.gmra.mrb[0].mxu0 %v1095
        %v1704 = vpop.f32.mrb[0].mxu0
        %v1705 = vadd.f32 0.0, %v1704
        %v1706 = vpop.f32.mrb[0].mxu0
        %1707 = vmatprep.mubr.f32.mxu0 0.0
        %1708 = vmatmul.mubr.f32.gmra.mrb[0].mxu0 %v1098
        %v1709 = vpop.f32.mrb[0].mxu0
        %v1710 = vadd.f32 0.0, %v1709
        %v1711 = vpop.f32.mrb[0].mxu0
        %1712 = vdwg.mxu0
        %v1713 = vadd.f32 %v1628, %v1705
        %v1714 = vadd.f32 %v1629, %v1710
        %1715 = vrot.lane.b32.xlu0 %v1548, 96
        %v1716 = vpop.permute.xlu0 %1715
        %1717 = vrot.lane.b32.xlu0 %v1549, 96
        %v1718 = vpop.permute.xlu0 %1717
        %v1720 = vsel %vm1004, %v1718, 0
        %1722 = vmatprep.subr.mxu0 0.0
        %1723 = vmatpush1.msra.mxu0 %v1716
        %1724 = vmatprep.subr.mxu0 0.0
        %1725 = vmatpush1.msra.mxu0 %v1720
        %1726 = vmatprep.subr.mxu0 0.0
        %1727 = vmatpush1.msra.mxu0 0.0
        %1728 = vmatprep.subr.mxu0 0.0
        %1729 = vmatpush1.msra.mxu0 0.0
        %1730 = vmatprep.subr.mxu0 0.0
        %1731 = vmatpush1.msra.mxu0 0.0
        %1732 = vmatprep.subr.mxu0 0.0
        %1733 = vmatpush1.msra.mxu0 0.0
        %1734 = vmatprep.subr.mxu0 0.0
        %1735 = vmatpush1.msra.mxu0 0.0
        %1736 = vmatprep.subr.mxu0 0.0
        %1737 = vmatpush1.msra.mxu0 0.0
        %1738 = vmatprep.subr.mxu0 0.0
        %1739 = vmatpush1.msra.mxu0 0.0
        %1740 = vmatprep.subr.mxu0 0.0
        %1741 = vmatpush1.msra.mxu0 0.0
        %1742 = vmatprep.subr.mxu0 0.0
        %1743 = vmatpush1.msra.mxu0 0.0
        %1744 = vmatprep.subr.mxu0 0.0
        %1745 = vmatpush1.msra.mxu0 0.0
        %1746 = vmatprep.subr.mxu0 0.0
        %1747 = vmatpush1.msra.mxu0 0.0
        %1748 = vmatprep.subr.mxu0 0.0
        %1749 = vmatpush1.msra.mxu0 0.0
        %1750 = vmatprep.subr.mxu0 0.0
        %1751 = vmatpush1.msra.mxu0 0.0
        %1752 = vmatprep.subr.mxu0 0.0
        %1753 = vmatpush1.msra.mxu0 0.0
        %1754 = vmatprep.subr.mxu0 0.0
        %1755 = vmatpush1.msra.mxu0 0.0
        %1756 = vmatprep.subr.mxu0 0.0
        %1757 = vmatpush1.msra.mxu0 0.0
        %1758 = vmatprep.subr.mxu0 0.0
        %1759 = vmatpush1.msra.mxu0 0.0
        %1760 = vmatprep.subr.mxu0 0.0
        %1761 = vmatpush1.msra.mxu0 0.0
        %1762 = vmatprep.subr.mxu0 0.0
        %1763 = vmatpush1.msra.mxu0 0.0
        %1764 = vmatprep.subr.mxu0 0.0
        %1765 = vmatpush1.msra.mxu0 0.0
        %1766 = vmatprep.subr.mxu0 0.0
        %1767 = vmatpush1.msra.mxu0 0.0
        %1768 = vmatprep.subr.mxu0 0.0
        %1769 = vmatpush1.msra.mxu0 0.0
        %1770 = vmatprep.subr.mxu0 0.0
        %1771 = vmatpush1.msra.mxu0 0.0
        %1772 = vmatprep.subr.mxu0 0.0
        %1773 = vmatpush1.msra.mxu0 0.0
        %1774 = vmatprep.subr.mxu0 0.0
        %1775 = vmatpush1.msra.mxu0 0.0
        %1776 = vmatprep.subr.mxu0 0.0
        %1777 = vmatpush1.msra.mxu0 0.0
        %1778 = vmatprep.subr.mxu0 0.0
        %1779 = vmatpush1.msra.mxu0 0.0
        %1780 = vmatprep.subr.mxu0 0.0
        %1781 = vmatpush1.msra.mxu0 0.0
        %1782 = vmatprep.subr.mxu0 0.0
        %1783 = vmatpush1.msra.mxu0 0.0
        %1784 = vmatprep.subr.mxu0 0.0
        %1785 = vmatpush1.msra.mxu0 0.0
        %1786 = vmatprep.mubr.f32.mxu0 0.0
        %1787 = vmatmul.mubr.f32.gmra.mrb[0].mxu0 %v1188
        %v1788 = vpop.f32.mrb[0].mxu0
        %v1789 = vadd.f32 0.0, %v1788
        %v1790 = vpop.f32.mrb[0].mxu0
        %1791 = vmatprep.mubr.f32.mxu0 0.0
        %1792 = vmatmul.mubr.f32.gmra.mrb[0].mxu0 %v1191
        %v1793 = vpop.f32.mrb[0].mxu0
        %v1794 = vadd.f32 0.0, %v1793
        %v1795 = vpop.f32.mrb[0].mxu0
        %1796 = vdwg.mxu0
        %v1797 = vadd.f32 %v1713, %v1789
        %v1798 = vadd.f32 %v1714, %v1794
        %1799 = vrot.lane.b32.xlu0 %v1548, 80
        %v1800 = vpop.permute.xlu0 %1799
        %1801 = vrot.lane.b32.xlu0 %v1549, 80
        %v1802 = vpop.permute.xlu0 %1801
        %v1804 = vsel %vm1004, %v1802, 0
        %1806 = vmatprep.subr.mxu0 0.0
        %1807 = vmatpush1.msra.mxu0 %v1800
        %1808 = vmatprep.subr.mxu0 0.0
        %1809 = vmatpush1.msra.mxu0 %v1804
        %1810 = vmatprep.subr.mxu0 0.0
        %1811 = vmatpush1.msra.mxu0 0.0
        %1812 = vmatprep.subr.mxu0 0.0
        %1813 = vmatpush1.msra.mxu0 0.0
        %1814 = vmatprep.subr.mxu0 0.0
        %1815 = vmatpush1.msra.mxu0 0.0
        %1816 = vmatprep.subr.mxu0 0.0
        %1817 = vmatpush1.msra.mxu0 0.0
        %1818 = vmatprep.subr.mxu0 0.0
        %1819 = vmatpush1.msra.mxu0 0.0
        %1820 = vmatprep.subr.mxu0 0.0
        %1821 = vmatpush1.msra.mxu0 0.0
        %1822 = vmatprep.subr.mxu0 0.0
        %1823 = vmatpush1.msra.mxu0 0.0
        %1824 = vmatprep.subr.mxu0 0.0
        %1825 = vmatpush1.msra.mxu0 0.0
        %1826 = vmatprep.subr.mxu0 0.0
        %1827 = vmatpush1.msra.mxu0 0.0
        %1828 = vmatprep.subr.mxu0 0.0
        %1829 = vmatpush1.msra.mxu0 0.0
        %1830 = vmatprep.subr.mxu0 0.0
        %1831 = vmatpush1.msra.mxu0 0.0
        %1832 = vmatprep.subr.mxu0 0.0
        %1833 = vmatpush1.msra.mxu0 0.0
        %1834 = vmatprep.subr.mxu0 0.0
        %1835 = vmatpush1.msra.mxu0 0.0
        %1836 = vmatprep.subr.mxu0 0.0
        %1837 = vmatpush1.msra.mxu0 0.0
        %1838 = vmatprep.subr.mxu0 0.0
        %1839 = vmatpush1.msra.mxu0 0.0
        %1840 = vmatprep.subr.mxu0 0.0
        %1841 = vmatpush1.msra.mxu0 0.0
        %1842 = vmatprep.subr.mxu0 0.0
        %1843 = vmatpush1.msra.mxu0 0.0
        %1844 = vmatprep.subr.mxu0 0.0
        %1845 = vmatpush1.msra.mxu0 0.0
        %1846 = vmatprep.subr.mxu0 0.0
        %1847 = vmatpush1.msra.mxu0 0.0
        %1848 = vmatprep.subr.mxu0 0.0
        %1849 = vmatpush1.msra.mxu0 0.0
        %1850 = vmatprep.subr.mxu0 0.0
        %1851 = vmatpush1.msra.mxu0 0.0
        %1852 = vmatprep.subr.mxu0 0.0
        %1853 = vmatpush1.msra.mxu0 0.0
        %1854 = vmatprep.subr.mxu0 0.0
        %1855 = vmatpush1.msra.mxu0 0.0
        %1856 = vmatprep.subr.mxu0 0.0
        %1857 = vmatpush1.msra.mxu0 0.0
        %1858 = vmatprep.subr.mxu0 0.0
        %1859 = vmatpush1.msra.mxu0 0.0
        %1860 = vmatprep.subr.mxu0 0.0
        %1861 = vmatpush1.msra.mxu0 0.0
        %1862 = vmatprep.subr.mxu0 0.0
        %1863 = vmatpush1.msra.mxu0 0.0
        %1864 = vmatprep.subr.mxu0 0.0
        %1865 = vmatpush1.msra.mxu0 0.0
        %1866 = vmatprep.subr.mxu0 0.0
        %1867 = vmatpush1.msra.mxu0 0.0
        %1868 = vmatprep.subr.mxu0 0.0
        %1869 = vmatpush1.msra.mxu0 0.0
        %1870 = vmatprep.mubr.f32.mxu0 0.0
        %1871 = vmatmul.mubr.f32.gmra.mrb[0].mxu0 %v1281
        %v1872 = vpop.f32.mrb[0].mxu0
        %v1873 = vadd.f32 0.0, %v1872
        %v1874 = vpop.f32.mrb[0].mxu0
        %1875 = vmatprep.mubr.f32.mxu0 0.0
        %1876 = vmatmul.mubr.f32.gmra.mrb[0].mxu0 %v1284
        %v1877 = vpop.f32.mrb[0].mxu0
        %v1878 = vadd.f32 0.0, %v1877
        %v1879 = vpop.f32.mrb[0].mxu0
        %1880 = vdwg.mxu0
        %v1881 = vadd.f32 %v1797, %v1873
        %v1882 = vadd.f32 %v1798, %v1878
        %v1883 = vtanh.pop %v1881
        %v1884 = vtanh.pop %v1882
        %v1885 = vld [vmem:[%s12] sm:$0x1]
        %v1886 = vld [vmem:[%s10] sm:$0x1f]
        %v1888 = vsel %vm820, %v1886, 0
        %1890 = vmatprep.subr.mxu0 0.0
        %1891 = vmatpush1.msra.mxu0 %v1888
        %1892 = vmatprep.subr.mxu0 0.0
        %1893 = vmatpush1.msra.mxu0 0.0
        %1894 = vmatprep.subr.mxu0 0.0
        %1895 = vmatpush1.msra.mxu0 0.0
        %1896 = vmatprep.subr.mxu0 0.0
        %1897 = vmatpush1.msra.mxu0 0.0
        %1898 = vmatprep.subr.mxu0 0.0
        %1899 = vmatpush1.msra.mxu0 0.0
        %1900 = vmatprep.subr.mxu0 0.0
        %1901 = vmatpush1.msra.mxu0 0.0
        %1902 = vmatprep.subr.mxu0 0.0
        %1903 = vmatpush1.msra.mxu0 0.0
        %1904 = vmatprep.subr.mxu0 0.0
        %1905 = vmatpush1.msra.mxu0 0.0
        %1906 = vmatprep.subr.mxu0 0.0
        %1907 = vmatpush1.msra.mxu0 0.0
        %1908 = vmatprep.subr.mxu0 0.0
        %1909 = vmatpush1.msra.mxu0 0.0
        %1910 = vmatprep.subr.mxu0 0.0
        %1911 = vmatpush1.msra.mxu0 0.0
        %1912 = vmatprep.subr.mxu0 0.0
        %1913 = vmatpush1.msra.mxu0 0.0
        %1914 = vmatprep.subr.mxu0 0.0
        %1915 = vmatpush1.msra.mxu0 0.0
        %1916 = vmatprep.subr.mxu0 0.0
        %1917 = vmatpush1.msra.mxu0 0.0
        %1918 = vmatprep.subr.mxu0 0.0
        %1919 = vmatpush1.msra.mxu0 0.0
        %1920 = vmatprep.subr.mxu0 0.0
        %1921 = vmatpush1.msra.mxu0 0.0
        %1922 = vmatprep.subr.mxu0 0.0
        %1923 = vmatpush1.msra.mxu0 0.0
        %1924 = vmatprep.subr.mxu0 0.0
        %1925 = vmatpush1.msra.mxu0 0.0
        %1926 = vmatprep.subr.mxu0 0.0
        %1927 = vmatpush1.msra.mxu0 0.0
        %1928 = vmatprep.subr.mxu0 0.0
        %1929 = vmatpush1.msra.mxu0 0.0
        %1930 = vmatprep.subr.mxu0 0.0
        %1931 = vmatpush1.msra.mxu0 0.0
        %1932 = vmatprep.subr.mxu0 0.0
        %1933 = vmatpush1.msra.mxu0 0.0
        %1934 = vmatprep.subr.mxu0 0.0
        %1935 = vmatpush1.msra.mxu0 0.0
        %1936 = vmatprep.subr.mxu0 0.0
        %1937 = vmatpush1.msra.mxu0 0.0
        %1938 = vmatprep.subr.mxu0 0.0
        %1939 = vmatpush1.msra.mxu0 0.0
        %1940 = vmatprep.subr.mxu0 0.0
        %1941 = vmatpush1.msra.mxu0 0.0
        %1942 = vmatprep.subr.mxu0 0.0
        %1943 = vmatpush1.msra.mxu0 0.0
        %1944 = vmatprep.subr.mxu0 0.0
        %1945 = vmatpush1.msra.mxu0 0.0
        %1946 = vmatprep.subr.mxu0 0.0
        %1947 = vmatpush1.msra.mxu0 0.0
        %1948 = vmatprep.subr.mxu0 0.0
        %1949 = vmatpush1.msra.mxu0 0.0
        %1950 = vmatprep.subr.mxu0 0.0
        %1951 = vmatpush1.msra.mxu0 0.0
        %1952 = vmatprep.subr.mxu0 0.0
        %1953 = vmatpush1.msra.mxu0 0.0
        %1954 = vmatprep.mubr.f32.mxu0 0.0
        %1955 = vmatmul.mubr.f32.gmra.mrb[0].mxu0 %v815
        %v1956 = vpop.f32.mrb[0].mxu0
        %v1957 = vadd.f32 0.0, %v1956
        %v1958 = vpop.f32.mrb[0].mxu0
        %1959 = vmatprep.mubr.f32.mxu0 0.0
        %1960 = vmatmul.mubr.f32.gmra.mrb[0].mxu0 %v818
        %v1961 = vpop.f32.mrb[0].mxu0
        %v1962 = vadd.f32 0.0, %v1961
        %v1963 = vpop.f32.mrb[0].mxu0
        %1964 = vdwg.mxu0
        %v1966 = vlaneseq
        %v1967 = vshrl.u32 %v1966, 7
        %v1968 = vsub.s32 0, %v1967
        %v1969 = vrot.slane %v1885, %v1968
        %v1971 = vadd.f32 %v1969, %v1957
        %v1972 = vadd.f32 %v1969, %v1962
        %v1973 = vld [vmem:[%s11] sm:$0xff]
        %v1974 = vld [vmem:[%s11 + $0x8] sm:$0xff]
        %vm1975 = vcmask 130048
        %v1977 = vsel %vm1975, %v1883, 0
        %v1980 = vsel %vm1975, %v1884, 0
        %1982 = vmatprep.subr.mxu0 0.0
        %1983 = vmatpush1.msra.mxu0 %v1973
        %1984 = vmatprep.subr.mxu0 0.0
        %1985 = vmatpush1.msra.mxu0 %v1974
        %1986 = vmatprep.subr.mxu0 0.0
        %1987 = vmatpush1.msra.mxu0 0.0
        %1988 = vmatprep.subr.mxu0 0.0
        %1989 = vmatpush1.msra.mxu0 0.0
        %1990 = vmatprep.subr.mxu0 0.0
        %1991 = vmatpush1.msra.mxu0 0.0
        %1992 = vmatprep.subr.mxu0 0.0
        %1993 = vmatpush1.msra.mxu0 0.0
        %1994 = vmatprep.subr.mxu0 0.0
        %1995 = vmatpush1.msra.mxu0 0.0
        %1996 = vmatprep.subr.mxu0 0.0
        %1997 = vmatpush1.msra.mxu0 0.0
        %1998 = vmatprep.subr.mxu0 0.0
        %1999 = vmatpush1.msra.mxu0 0.0
        %2000 = vmatprep.subr.mxu0 0.0
        %2001 = vmatpush1.msra.mxu0 0.0
        %2002 = vmatprep.subr.mxu0 0.0
        %2003 = vmatpush1.msra.mxu0 0.0
        %2004 = vmatprep.subr.mxu0 0.0
        %2005 = vmatpush1.msra.mxu0 0.0
        %2006 = vmatprep.subr.mxu0 0.0
        %2007 = vmatpush1.msra.mxu0 0.0
        %2008 = vmatprep.subr.mxu0 0.0
        %2009 = vmatpush1.msra.mxu0 0.0
        %2010 = vmatprep.subr.mxu0 0.0
        %2011 = vmatpush1.msra.mxu0 0.0
        %2012 = vmatprep.subr.mxu0 0.0
        %2013 = vmatpush1.msra.mxu0 0.0
        %2014 = vmatprep.subr.mxu0 0.0
        %2015 = vmatpush1.msra.mxu0 0.0
        %2016 = vmatprep.subr.mxu0 0.0
        %2017 = vmatpush1.msra.mxu0 0.0
        %2018 = vmatprep.subr.mxu0 0.0
        %2019 = vmatpush1.msra.mxu0 0.0
        %2020 = vmatprep.subr.mxu0 0.0
        %2021 = vmatpush1.msra.mxu0 0.0
        %2022 = vmatprep.subr.mxu0 0.0
        %2023 = vmatpush1.msra.mxu0 0.0
        %2024 = vmatprep.subr.mxu0 0.0
        %2025 = vmatpush1.msra.mxu0 0.0
        %2026 = vmatprep.subr.mxu0 0.0
        %2027 = vmatpush1.msra.mxu0 0.0
        %2028 = vmatprep.subr.mxu0 0.0
        %2029 = vmatpush1.msra.mxu0 0.0
        %2030 = vmatprep.subr.mxu0 0.0
        %2031 = vmatpush1.msra.mxu0 0.0
        %2032 = vmatprep.subr.mxu0 0.0
        %2033 = vmatpush1.msra.mxu0 0.0
        %2034 = vmatprep.subr.mxu0 0.0
        %2035 = vmatpush1.msra.mxu0 0.0
        %2036 = vmatprep.subr.mxu0 0.0
        %2037 = vmatpush1.msra.mxu0 0.0
        %2038 = vmatprep.subr.mxu0 0.0
        %2039 = vmatpush1.msra.mxu0 0.0
        %2040 = vmatprep.subr.mxu0 0.0
        %2041 = vmatpush1.msra.mxu0 0.0
        %2042 = vmatprep.subr.mxu0 0.0
        %2043 = vmatpush1.msra.mxu0 0.0
        %2044 = vmatprep.subr.mxu0 0.0
        %2045 = vmatpush1.msra.mxu0 0.0
        %2046 = vmatprep.mubr.f32.mxu0 0.0
        %2047 = vmatmul.mubr.f32.gmra.mrb[0].mxu0 %v1977
        %v2048 = vpop.f32.mrb[0].mxu0
        %v2049 = vadd.f32 0.0, %v2048
        %v2050 = vpop.f32.mrb[0].mxu0
        %2051 = vmatprep.mubr.f32.mxu0 0.0
        %2052 = vmatmul.mubr.f32.gmra.mrb[0].mxu0 %v1980
        %v2053 = vpop.f32.mrb[0].mxu0
        %v2054 = vadd.f32 0.0, %v2053
        %v2055 = vpop.f32.mrb[0].mxu0
        %2056 = vdwg.mxu0
        %v2057 = vadd.f32 %v1971, %v2049
        %v2058 = vadd.f32 %v1972, %v2054
        %v2059 = vld [vmem:[%s15] sm:$0x1]
        %v2060 = vld [vmem:[%s13] sm:$0x1f]
        %v2062 = vsel %vm820, %v2060, 0
        %2064 = vmatprep.subr.mxu0 0.0
        %2065 = vmatpush1.msra.mxu0 %v2062
        %2066 = vmatprep.subr.mxu0 0.0
        %2067 = vmatpush1.msra.mxu0 0.0
        %2068 = vmatprep.subr.mxu0 0.0
        %2069 = vmatpush1.msra.mxu0 0.0
        %2070 = vmatprep.subr.mxu0 0.0
        %2071 = vmatpush1.msra.mxu0 0.0
        %2072 = vmatprep.subr.mxu0 0.0
        %2073 = vmatpush1.msra.mxu0 0.0
        %2074 = vmatprep.subr.mxu0 0.0
        %2075 = vmatpush1.msra.mxu0 0.0
        %2076 = vmatprep.subr.mxu0 0.0
        %2077 = vmatpush1.msra.mxu0 0.0
        %2078 = vmatprep.subr.mxu0 0.0
        %2079 = vmatpush1.msra.mxu0 0.0
        %2080 = vmatprep.subr.mxu0 0.0
        %2081 = vmatpush1.msra.mxu0 0.0
        %2082 = vmatprep.subr.mxu0 0.0
        %2083 = vmatpush1.msra.mxu0 0.0
        %2084 = vmatprep.subr.mxu0 0.0
        %2085 = vmatpush1.msra.mxu0 0.0
        %2086 = vmatprep.subr.mxu0 0.0
        %2087 = vmatpush1.msra.mxu0 0.0
        %2088 = vmatprep.subr.mxu0 0.0
        %2089 = vmatpush1.msra.mxu0 0.0
        %2090 = vmatprep.subr.mxu0 0.0
        %2091 = vmatpush1.msra.mxu0 0.0
        %2092 = vmatprep.subr.mxu0 0.0
        %2093 = vmatpush1.msra.mxu0 0.0
        %2094 = vmatprep.subr.mxu0 0.0
        %2095 = vmatpush1.msra.mxu0 0.0
        %2096 = vmatprep.subr.mxu0 0.0
        %2097 = vmatpush1.msra.mxu0 0.0
        %2098 = vmatprep.subr.mxu0 0.0
        %2099 = vmatpush1.msra.mxu0 0.0
        %2100 = vmatprep.subr.mxu0 0.0
        %2101 = vmatpush1.msra.mxu0 0.0
        %2102 = vmatprep.subr.mxu0 0.0
        %2103 = vmatpush1.msra.mxu0 0.0
        %2104 = vmatprep.subr.mxu0 0.0
        %2105 = vmatpush1.msra.mxu0 0.0
        %2106 = vmatprep.subr.mxu0 0.0
        %2107 = vmatpush1.msra.mxu0 0.0
        %2108 = vmatprep.subr.mxu0 0.0
        %2109 = vmatpush1.msra.mxu0 0.0
        %2110 = vmatprep.subr.mxu0 0.0
        %2111 = vmatpush1.msra.mxu0 0.0
        %2112 = vmatprep.subr.mxu0 0.0
        %2113 = vmatpush1.msra.mxu0 0.0
        %2114 = vmatprep.subr.mxu0 0.0
        %2115 = vmatpush1.msra.mxu0 0.0
        %2116 = vmatprep.subr.mxu0 0.0
        %2117 = vmatpush1.msra.mxu0 0.0
        %2118 = vmatprep.subr.mxu0 0.0
        %2119 = vmatpush1.msra.mxu0 0.0
        %2120 = vmatprep.subr.mxu0 0.0
        %2121 = vmatpush1.msra.mxu0 0.0
        %2122 = vmatprep.subr.mxu0 0.0
        %2123 = vmatpush1.msra.mxu0 0.0
        %2124 = vmatprep.subr.mxu0 0.0
        %2125 = vmatpush1.msra.mxu0 0.0
        %2126 = vmatprep.subr.mxu0 0.0
        %2127 = vmatpush1.msra.mxu0 0.0
        %2128 = vmatprep.mubr.f32.mxu0 0.0
        %2129 = vmatmul.mubr.f32.gmra.mrb[0].mxu0 %v815
        %v2130 = vpop.f32.mrb[0].mxu0
        %v2131 = vadd.f32 0.0, %v2130
        %v2132 = vpop.f32.mrb[0].mxu0
        %2133 = vmatprep.mubr.f32.mxu0 0.0
        %2134 = vmatmul.mubr.f32.gmra.mrb[0].mxu0 %v818
        %v2135 = vpop.f32.mrb[0].mxu0
        %v2136 = vadd.f32 0.0, %v2135
        %v2137 = vpop.f32.mrb[0].mxu0
        %2138 = vdwg.mxu0
        %v2140 = vlaneseq
        %v2141 = vshrl.u32 %v2140, 7
        %v2142 = vsub.s32 0, %v2141
        %v2143 = vrot.slane %v2059, %v2142
        %v2145 = vadd.f32 %v2143, %v2131
        %v2146 = vadd.f32 %v2143, %v2136
        %v2147 = vld [vmem:[%s14] sm:$0xff]
        %v2148 = vld [vmem:[%s14 + $0x8] sm:$0xff]
        %2149 = vmatprep.subr.mxu0 0.0
        %2150 = vmatpush1.msra.mxu0 %v2147
        %2151 = vmatprep.subr.mxu0 0.0
        %2152 = vmatpush1.msra.mxu0 %v2148
        %2153 = vmatprep.subr.mxu0 0.0
        %2154 = vmatpush1.msra.mxu0 0.0
        %2155 = vmatprep.subr.mxu0 0.0
        %2156 = vmatpush1.msra.mxu0 0.0
        %2157 = vmatprep.subr.mxu0 0.0
        %2158 = vmatpush1.msra.mxu0 0.0
        %2159 = vmatprep.subr.mxu0 0.0
        %2160 = vmatpush1.msra.mxu0 0.0
        %2161 = vmatprep.subr.mxu0 0.0
        %2162 = vmatpush1.msra.mxu0 0.0
        %2163 = vmatprep.subr.mxu0 0.0
        %2164 = vmatpush1.msra.mxu0 0.0
        %2165 = vmatprep.subr.mxu0 0.0
        %2166 = vmatpush1.msra.mxu0 0.0
        %2167 = vmatprep.subr.mxu0 0.0
        %2168 = vmatpush1.msra.mxu0 0.0
        %2169 = vmatprep.subr.mxu0 0.0
        %2170 = vmatpush1.msra.mxu0 0.0
        %2171 = vmatprep.subr.mxu0 0.0
        %2172 = vmatpush1.msra.mxu0 0.0
        %2173 = vmatprep.subr.mxu0 0.0
        %2174 = vmatpush1.msra.mxu0 0.0
        %2175 = vmatprep.subr.mxu0 0.0
        %2176 = vmatpush1.msra.mxu0 0.0
        %2177 = vmatprep.subr.mxu0 0.0
        %2178 = vmatpush1.msra.mxu0 0.0
        %2179 = vmatprep.subr.mxu0 0.0
        %2180 = vmatpush1.msra.mxu0 0.0
        %2181 = vmatprep.subr.mxu0 0.0
        %2182 = vmatpush1.msra.mxu0 0.0
        %2183 = vmatprep.subr.mxu0 0.0
        %2184 = vmatpush1.msra.mxu0 0.0
        %2185 = vmatprep.subr.mxu0 0.0
        %2186 = vmatpush1.msra.mxu0 0.0
        %2187 = vmatprep.subr.mxu0 0.0
        %2188 = vmatpush1.msra.mxu0 0.0
        %2189 = vmatprep.subr.mxu0 0.0
        %2190 = vmatpush1.msra.mxu0 0.0
        %2191 = vmatprep.subr.mxu0 0.0
        %2192 = vmatpush1.msra.mxu0 0.0
        %2193 = vmatprep.subr.mxu0 0.0
        %2194 = vmatpush1.msra.mxu0 0.0
        %2195 = vmatprep.subr.mxu0 0.0
        %2196 = vmatpush1.msra.mxu0 0.0
        %2197 = vmatprep.subr.mxu0 0.0
        %2198 = vmatpush1.msra.mxu0 0.0
        %2199 = vmatprep.subr.mxu0 0.0
        %2200 = vmatpush1.msra.mxu0 0.0
        %2201 = vmatprep.subr.mxu0 0.0
        %2202 = vmatpush1.msra.mxu0 0.0
        %2203 = vmatprep.subr.mxu0 0.0
        %2204 = vmatpush1.msra.mxu0 0.0
        %2205 = vmatprep.subr.mxu0 0.0
        %2206 = vmatpush1.msra.mxu0 0.0
        %2207 = vmatprep.subr.mxu0 0.0
        %2208 = vmatpush1.msra.mxu0 0.0
        %2209 = vmatprep.subr.mxu0 0.0
        %2210 = vmatpush1.msra.mxu0 0.0
        %2211 = vmatprep.subr.mxu0 0.0
        %2212 = vmatpush1.msra.mxu0 0.0
        %2213 = vmatprep.mubr.f32.mxu0 0.0
        %2214 = vmatmul.mubr.f32.gmra.mrb[0].mxu0 %v1977
        %v2215 = vpop.f32.mrb[0].mxu0
        %v2216 = vadd.f32 0.0, %v2215
        %v2217 = vpop.f32.mrb[0].mxu0
        %2218 = vmatprep.mubr.f32.mxu0 0.0
        %2219 = vmatmul.mubr.f32.gmra.mrb[0].mxu0 %v1980
        %v2220 = vpop.f32.mrb[0].mxu0
        %v2221 = vadd.f32 0.0, %v2220
        %v2222 = vpop.f32.mrb[0].mxu0
        %2223 = vdwg.mxu0
        %v2224 = vadd.f32 %v2145, %v2216
        %v2225 = vadd.f32 %v2146, %v2221
        %v2227 = vsel %vm1004, %v2225, 0
        %2229 = vmatprep.subr.mxu0 0.0
        %2230 = vmatpush1.msra.mxu0 %v2224
        %2231 = vmatprep.subr.mxu0 0.0
        %2232 = vmatpush1.msra.mxu0 %v2227
        %2233 = vmatprep.subr.mxu0 0.0
        %2234 = vmatpush1.msra.mxu0 0.0
        %2235 = vmatprep.subr.mxu0 0.0
        %2236 = vmatpush1.msra.mxu0 0.0
        %2237 = vmatprep.subr.mxu0 0.0
        %2238 = vmatpush1.msra.mxu0 0.0
        %2239 = vmatprep.subr.mxu0 0.0
        %2240 = vmatpush1.msra.mxu0 0.0
        %2241 = vmatprep.subr.mxu0 0.0
        %2242 = vmatpush1.msra.mxu0 0.0
        %2243 = vmatprep.subr.mxu0 0.0
        %2244 = vmatpush1.msra.mxu0 0.0
        %2245 = vmatprep.subr.mxu0 0.0
        %2246 = vmatpush1.msra.mxu0 0.0
        %2247 = vmatprep.subr.mxu0 0.0
        %2248 = vmatpush1.msra.mxu0 0.0
        %2249 = vmatprep.subr.mxu0 0.0
        %2250 = vmatpush1.msra.mxu0 0.0
        %2251 = vmatprep.subr.mxu0 0.0
        %2252 = vmatpush1.msra.mxu0 0.0
        %2253 = vmatprep.subr.mxu0 0.0
        %2254 = vmatpush1.msra.mxu0 0.0
        %2255 = vmatprep.subr.mxu0 0.0
        %2256 = vmatpush1.msra.mxu0 0.0
        %2257 = vmatprep.subr.mxu0 0.0
        %2258 = vmatpush1.msra.mxu0 0.0
        %2259 = vmatprep.subr.mxu0 0.0
        %2260 = vmatpush1.msra.mxu0 0.0
        %2261 = vmatprep.subr.mxu0 0.0
        %2262 = vmatpush1.msra.mxu0 0.0
        %2263 = vmatprep.subr.mxu0 0.0
        %2264 = vmatpush1.msra.mxu0 0.0
        %2265 = vmatprep.subr.mxu0 0.0
        %2266 = vmatpush1.msra.mxu0 0.0
        %2267 = vmatprep.subr.mxu0 0.0
        %2268 = vmatpush1.msra.mxu0 0.0
        %2269 = vmatprep.subr.mxu0 0.0
        %2270 = vmatpush1.msra.mxu0 0.0
        %2271 = vmatprep.subr.mxu0 0.0
        %2272 = vmatpush1.msra.mxu0 0.0
        %2273 = vmatprep.subr.mxu0 0.0
        %2274 = vmatpush1.msra.mxu0 0.0
        %2275 = vmatprep.subr.mxu0 0.0
        %2276 = vmatpush1.msra.mxu0 0.0
        %2277 = vmatprep.subr.mxu0 0.0
        %2278 = vmatpush1.msra.mxu0 0.0
        %2279 = vmatprep.subr.mxu0 0.0
        %2280 = vmatpush1.msra.mxu0 0.0
        %2281 = vmatprep.subr.mxu0 0.0
        %2282 = vmatpush1.msra.mxu0 0.0
        %2283 = vmatprep.subr.mxu0 0.0
        %2284 = vmatpush1.msra.mxu0 0.0
        %2285 = vmatprep.subr.mxu0 0.0
        %2286 = vmatpush1.msra.mxu0 0.0
        %2287 = vmatprep.subr.mxu0 0.0
        %2288 = vmatpush1.msra.mxu0 0.0
        %2289 = vmatprep.subr.mxu0 0.0
        %2290 = vmatpush1.msra.mxu0 0.0
        %2291 = vmatprep.subr.mxu0 0.0
        %2292 = vmatpush1.msra.mxu0 0.0
        %2293 = vmatprep.mubr.f32.mxu0 0.0
        %2294 = vmatmul.mubr.f32.gmra.mrb[0].mxu0 %v999
        %v2295 = vpop.f32.mrb[0].mxu0
        %v2296 = vadd.f32 0.0, %v2295
        %v2297 = vpop.f32.mrb[0].mxu0
        %2298 = vmatprep.mubr.f32.mxu0 0.0
        %2299 = vmatmul.mubr.f32.gmra.mrb[0].mxu0 %v1002
        %v2300 = vpop.f32.mrb[0].mxu0
        %v2301 = vadd.f32 0.0, %v2300
        %v2302 = vpop.f32.mrb[0].mxu0
        %2303 = vdwg.mxu0
        %v2304 = vadd.f32 %v2057, %v2296
        %v2305 = vadd.f32 %v2058, %v2301
        %2307 = vrot.lane.b32.xlu0 %v2224, 112
        %v2308 = vpop.permute.xlu0 %2307
        %2309 = vrot.lane.b32.xlu0 %v2225, 112
        %v2310 = vpop.permute.xlu0 %2309
        %v2312 = vsel %vm1004, %v2310, 0
        %2314 = vmatprep.subr.mxu0 0.0
        %2315 = vmatpush1.msra.mxu0 %v2308
        %2316 = vmatprep.subr.mxu0 0.0
        %2317 = vmatpush1.msra.mxu0 %v2312
        %2318 = vmatprep.subr.mxu0 0.0
        %2319 = vmatpush1.msra.mxu0 0.0
        %2320 = vmatprep.subr.mxu0 0.0
        %2321 = vmatpush1.msra.mxu0 0.0
        %2322 = vmatprep.subr.mxu0 0.0
        %2323 = vmatpush1.msra.mxu0 0.0
        %2324 = vmatprep.subr.mxu0 0.0
        %2325 = vmatpush1.msra.mxu0 0.0
        %2326 = vmatprep.subr.mxu0 0.0
        %2327 = vmatpush1.msra.mxu0 0.0
        %2328 = vmatprep.subr.mxu0 0.0
        %2329 = vmatpush1.msra.mxu0 0.0
        %2330 = vmatprep.subr.mxu0 0.0
        %2331 = vmatpush1.msra.mxu0 0.0
        %2332 = vmatprep.subr.mxu0 0.0
        %2333 = vmatpush1.msra.mxu0 0.0
        %2334 = vmatprep.subr.mxu0 0.0
        %2335 = vmatpush1.msra.mxu0 0.0
        %2336 = vmatprep.subr.mxu0 0.0
        %2337 = vmatpush1.msra.mxu0 0.0
        %2338 = vmatprep.subr.mxu0 0.0
        %2339 = vmatpush1.msra.mxu0 0.0
        %2340 = vmatprep.subr.mxu0 0.0
        %2341 = vmatpush1.msra.mxu0 0.0
        %2342 = vmatprep.subr.mxu0 0.0
        %2343 = vmatpush1.msra.mxu0 0.0
        %2344 = vmatprep.subr.mxu0 0.0
        %2345 = vmatpush1.msra.mxu0 0.0
        %2346 = vmatprep.subr.mxu0 0.0
        %2347 = vmatpush1.msra.mxu0 0.0
        %2348 = vmatprep.subr.mxu0 0.0
        %2349 = vmatpush1.msra.mxu0 0.0
        %2350 = vmatprep.subr.mxu0 0.0
        %2351 = vmatpush1.msra.mxu0 0.0
        %2352 = vmatprep.subr.mxu0 0.0
        %2353 = vmatpush1.msra.mxu0 0.0
        %2354 = vmatprep.subr.mxu0 0.0
        %2355 = vmatpush1.msra.mxu0 0.0
        %2356 = vmatprep.subr.mxu0 0.0
        %2357 = vmatpush1.msra.mxu0 0.0
        %2358 = vmatprep.subr.mxu0 0.0
        %2359 = vmatpush1.msra.mxu0 0.0
        %2360 = vmatprep.subr.mxu0 0.0
        %2361 = vmatpush1.msra.mxu0 0.0
        %2362 = vmatprep.subr.mxu0 0.0
        %2363 = vmatpush1.msra.mxu0 0.0
        %2364 = vmatprep.subr.mxu0 0.0
        %2365 = vmatpush1.msra.mxu0 0.0
        %2366 = vmatprep.subr.mxu0 0.0
        %2367 = vmatpush1.msra.mxu0 0.0
        %2368 = vmatprep.subr.mxu0 0.0
        %2369 = vmatpush1.msra.mxu0 0.0
        %2370 = vmatprep.subr.mxu0 0.0
        %2371 = vmatpush1.msra.mxu0 0.0
        %2372 = vmatprep.subr.mxu0 0.0
        %2373 = vmatpush1.msra.mxu0 0.0
        %2374 = vmatprep.subr.mxu0 0.0
        %2375 = vmatpush1.msra.mxu0 0.0
        %2376 = vmatprep.subr.mxu0 0.0
        %2377 = vmatpush1.msra.mxu0 0.0
        %2378 = vmatprep.mubr.f32.mxu0 0.0
        %2379 = vmatmul.mubr.f32.gmra.mrb[0].mxu0 %v1095
        %v2380 = vpop.f32.mrb[0].mxu0
        %v2381 = vadd.f32 0.0, %v2380
        %v2382 = vpop.f32.mrb[0].mxu0
        %2383 = vmatprep.mubr.f32.mxu0 0.0
        %2384 = vmatmul.mubr.f32.gmra.mrb[0].mxu0 %v1098
        %v2385 = vpop.f32.mrb[0].mxu0
        %v2386 = vadd.f32 0.0, %v2385
        %v2387 = vpop.f32.mrb[0].mxu0
        %2388 = vdwg.mxu0
        %v2389 = vadd.f32 %v2304, %v2381
        %v2390 = vadd.f32 %v2305, %v2386
        %2391 = vrot.lane.b32.xlu0 %v2224, 96
        %v2392 = vpop.permute.xlu0 %2391
        %2393 = vrot.lane.b32.xlu0 %v2225, 96
        %v2394 = vpop.permute.xlu0 %2393
        %v2396 = vsel %vm1004, %v2394, 0
        %2398 = vmatprep.subr.mxu0 0.0
        %2399 = vmatpush1.msra.mxu0 %v2392
        %2400 = vmatprep.subr.mxu0 0.0
        %2401 = vmatpush1.msra.mxu0 %v2396
        %2402 = vmatprep.subr.mxu0 0.0
        %2403 = vmatpush1.msra.mxu0 0.0
        %2404 = vmatprep.subr.mxu0 0.0
        %2405 = vmatpush1.msra.mxu0 0.0
        %2406 = vmatprep.subr.mxu0 0.0
        %2407 = vmatpush1.msra.mxu0 0.0
        %2408 = vmatprep.subr.mxu0 0.0
        %2409 = vmatpush1.msra.mxu0 0.0
        %2410 = vmatprep.subr.mxu0 0.0
        %2411 = vmatpush1.msra.mxu0 0.0
        %2412 = vmatprep.subr.mxu0 0.0
        %2413 = vmatpush1.msra.mxu0 0.0
        %2414 = vmatprep.subr.mxu0 0.0
        %2415 = vmatpush1.msra.mxu0 0.0
        %2416 = vmatprep.subr.mxu0 0.0
        %2417 = vmatpush1.msra.mxu0 0.0
        %2418 = vmatprep.subr.mxu0 0.0
        %2419 = vmatpush1.msra.mxu0 0.0
        %2420 = vmatprep.subr.mxu0 0.0
        %2421 = vmatpush1.msra.mxu0 0.0
        %2422 = vmatprep.subr.mxu0 0.0
        %2423 = vmatpush1.msra.mxu0 0.0
        %2424 = vmatprep.subr.mxu0 0.0
        %2425 = vmatpush1.msra.mxu0 0.0
        %2426 = vmatprep.subr.mxu0 0.0
        %2427 = vmatpush1.msra.mxu0 0.0
        %2428 = vmatprep.subr.mxu0 0.0
        %2429 = vmatpush1.msra.mxu0 0.0
        %2430 = vmatprep.subr.mxu0 0.0
        %2431 = vmatpush1.msra.mxu0 0.0
        %2432 = vmatprep.subr.mxu0 0.0
        %2433 = vmatpush1.msra.mxu0 0.0
        %2434 = vmatprep.subr.mxu0 0.0
        %2435 = vmatpush1.msra.mxu0 0.0
        %2436 = vmatprep.subr.mxu0 0.0
        %2437 = vmatpush1.msra.mxu0 0.0
        %2438 = vmatprep.subr.mxu0 0.0
        %2439 = vmatpush1.msra.mxu0 0.0
        %2440 = vmatprep.subr.mxu0 0.0
        %2441 = vmatpush1.msra.mxu0 0.0
        %2442 = vmatprep.subr.mxu0 0.0
        %2443 = vmatpush1.msra.mxu0 0.0
        %2444 = vmatprep.subr.mxu0 0.0
        %2445 = vmatpush1.msra.mxu0 0.0
        %2446 = vmatprep.subr.mxu0 0.0
        %2447 = vmatpush1.msra.mxu0 0.0
        %2448 = vmatprep.subr.mxu0 0.0
        %2449 = vmatpush1.msra.mxu0 0.0
        %2450 = vmatprep.subr.mxu0 0.0
        %2451 = vmatpush1.msra.mxu0 0.0
        %2452 = vmatprep.subr.mxu0 0.0
        %2453 = vmatpush1.msra.mxu0 0.0
        %2454 = vmatprep.subr.mxu0 0.0
        %2455 = vmatpush1.msra.mxu0 0.0
        %2456 = vmatprep.subr.mxu0 0.0
        %2457 = vmatpush1.msra.mxu0 0.0
        %2458 = vmatprep.subr.mxu0 0.0
        %2459 = vmatpush1.msra.mxu0 0.0
        %2460 = vmatprep.subr.mxu0 0.0
        %2461 = vmatpush1.msra.mxu0 0.0
        %2462 = vmatprep.mubr.f32.mxu0 0.0
        %2463 = vmatmul.mubr.f32.gmra.mrb[0].mxu0 %v1188
        %v2464 = vpop.f32.mrb[0].mxu0
        %v2465 = vadd.f32 0.0, %v2464
        %v2466 = vpop.f32.mrb[0].mxu0
        %2467 = vmatprep.mubr.f32.mxu0 0.0
        %2468 = vmatmul.mubr.f32.gmra.mrb[0].mxu0 %v1191
        %v2469 = vpop.f32.mrb[0].mxu0
        %v2470 = vadd.f32 0.0, %v2469
        %v2471 = vpop.f32.mrb[0].mxu0
        %2472 = vdwg.mxu0
        %v2473 = vadd.f32 %v2389, %v2465
        %v2474 = vadd.f32 %v2390, %v2470
        %2475 = vrot.lane.b32.xlu0 %v2224, 80
        %v2476 = vpop.permute.xlu0 %2475
        %2477 = vrot.lane.b32.xlu0 %v2225, 80
        %v2478 = vpop.permute.xlu0 %2477
        %v2480 = vsel %vm1004, %v2478, 0
        %2482 = vmatprep.subr.mxu0 0.0
        %2483 = vmatpush1.msra.mxu0 %v2476
        %2484 = vmatprep.subr.mxu0 0.0
        %2485 = vmatpush1.msra.mxu0 %v2480
        %2486 = vmatprep.subr.mxu0 0.0
        %2487 = vmatpush1.msra.mxu0 0.0
        %2488 = vmatprep.subr.mxu0 0.0
        %2489 = vmatpush1.msra.mxu0 0.0
        %2490 = vmatprep.subr.mxu0 0.0
        %2491 = vmatpush1.msra.mxu0 0.0
        %2492 = vmatprep.subr.mxu0 0.0
        %2493 = vmatpush1.msra.mxu0 0.0
        %2494 = vmatprep.subr.mxu0 0.0
        %2495 = vmatpush1.msra.mxu0 0.0
        %2496 = vmatprep.subr.mxu0 0.0
        %2497 = vmatpush1.msra.mxu0 0.0
        %2498 = vmatprep.subr.mxu0 0.0
        %2499 = vmatpush1.msra.mxu0 0.0
        %2500 = vmatprep.subr.mxu0 0.0
        %2501 = vmatpush1.msra.mxu0 0.0
        %2502 = vmatprep.subr.mxu0 0.0
        %2503 = vmatpush1.msra.mxu0 0.0
        %2504 = vmatprep.subr.mxu0 0.0
        %2505 = vmatpush1.msra.mxu0 0.0
        %2506 = vmatprep.subr.mxu0 0.0
        %2507 = vmatpush1.msra.mxu0 0.0
        %2508 = vmatprep.subr.mxu0 0.0
        %2509 = vmatpush1.msra.mxu0 0.0
        %2510 = vmatprep.subr.mxu0 0.0
        %2511 = vmatpush1.msra.mxu0 0.0
        %2512 = vmatprep.subr.mxu0 0.0
        %2513 = vmatpush1.msra.mxu0 0.0
        %2514 = vmatprep.subr.mxu0 0.0
        %2515 = vmatpush1.msra.mxu0 0.0
        %2516 = vmatprep.subr.mxu0 0.0
        %2517 = vmatpush1.msra.mxu0 0.0
        %2518 = vmatprep.subr.mxu0 0.0
        %2519 = vmatpush1.msra.mxu0 0.0
        %2520 = vmatprep.subr.mxu0 0.0
        %2521 = vmatpush1.msra.mxu0 0.0
        %2522 = vmatprep.subr.mxu0 0.0
        %2523 = vmatpush1.msra.mxu0 0.0
        %2524 = vmatprep.subr.mxu0 0.0
        %2525 = vmatpush1.msra.mxu0 0.0
        %2526 = vmatprep.subr.mxu0 0.0
        %2527 = vmatpush1.msra.mxu0 0.0
        %2528 = vmatprep.subr.mxu0 0.0
        %2529 = vmatpush1.msra.mxu0 0.0
        %2530 = vmatprep.subr.mxu0 0.0
        %2531 = vmatpush1.msra.mxu0 0.0
        %2532 = vmatprep.subr.mxu0 0.0
        %2533 = vmatpush1.msra.mxu0 0.0
        %2534 = vmatprep.subr.mxu0 0.0
        %2535 = vmatpush1.msra.mxu0 0.0
        %2536 = vmatprep.subr.mxu0 0.0
        %2537 = vmatpush1.msra.mxu0 0.0
        %2538 = vmatprep.subr.mxu0 0.0
        %2539 = vmatpush1.msra.mxu0 0.0
        %2540 = vmatprep.subr.mxu0 0.0
        %2541 = vmatpush1.msra.mxu0 0.0
        %2542 = vmatprep.subr.mxu0 0.0
        %2543 = vmatpush1.msra.mxu0 0.0
        %2544 = vmatprep.subr.mxu0 0.0
        %2545 = vmatpush1.msra.mxu0 0.0
        %2546 = vmatprep.mubr.f32.mxu0 0.0
        %2547 = vmatmul.mubr.f32.gmra.mrb[0].mxu0 %v1281
        %v2548 = vpop.f32.mrb[0].mxu0
        %v2549 = vadd.f32 0.0, %v2548
        %v2550 = vpop.f32.mrb[0].mxu0
        %2551 = vmatprep.mubr.f32.mxu0 0.0
        %2552 = vmatmul.mubr.f32.gmra.mrb[0].mxu0 %v1284
        %v2553 = vpop.f32.mrb[0].mxu0
        %v2554 = vadd.f32 0.0, %v2553
        %v2555 = vpop.f32.mrb[0].mxu0
        %2556 = vdwg.mxu0
        %v2557 = vadd.f32 %v2473, %v2549
        %v2558 = vadd.f32 %v2474, %v2554
        %v2559 = vxor.u32 %v2557, 2147483648
        %v2560 = vxor.u32 %v2558, 2147483648
        %v2561 = vmul.f32 %v2559, 1.442695
        %v2562 = vpow.pop %v2561
        %v2563 = vmul.f32 %v2560, 1.442695
        %v2564 = vpow.pop %v2563
        %v2565 = vadd.f32 %v2562, 1.0
        %v2566 = vadd.f32 %v2564, 1.0
        %v2567 = vrcp.pop %v2565
        %v2568 = vmul.f32 1.0, %v2567
        %v2569 = vrcp.pop %v2566
        %v2570 = vmul.f32 1.0, %v2569
        %v2571 = vld [vmem:[%s18] sm:$0x1]
        %v2572 = vld [vmem:[%s16] sm:$0x1f]
        %v2574 = vsel %vm820, %v2572, 0
        %2576 = vmatprep.subr.mxu0 0.0
        %2577 = vmatpush1.msra.mxu0 %v2574
        %2578 = vmatprep.subr.mxu0 0.0
        %2579 = vmatpush1.msra.mxu0 0.0
        %2580 = vmatprep.subr.mxu0 0.0
        %2581 = vmatpush1.msra.mxu0 0.0
        %2582 = vmatprep.subr.mxu0 0.0
        %2583 = vmatpush1.msra.mxu0 0.0
        %2584 = vmatprep.subr.mxu0 0.0
        %2585 = vmatpush1.msra.mxu0 0.0
        %2586 = vmatprep.subr.mxu0 0.0
        %2587 = vmatpush1.msra.mxu0 0.0
        %2588 = vmatprep.subr.mxu0 0.0
        %2589 = vmatpush1.msra.mxu0 0.0
        %2590 = vmatprep.subr.mxu0 0.0
        %2591 = vmatpush1.msra.mxu0 0.0
        %2592 = vmatprep.subr.mxu0 0.0
        %2593 = vmatpush1.msra.mxu0 0.0
        %2594 = vmatprep.subr.mxu0 0.0
        %2595 = vmatpush1.msra.mxu0 0.0
        %2596 = vmatprep.subr.mxu0 0.0
        %2597 = vmatpush1.msra.mxu0 0.0
        %2598 = vmatprep.subr.mxu0 0.0
        %2599 = vmatpush1.msra.mxu0 0.0
        %2600 = vmatprep.subr.mxu0 0.0
        %2601 = vmatpush1.msra.mxu0 0.0
        %2602 = vmatprep.subr.mxu0 0.0
        %2603 = vmatpush1.msra.mxu0 0.0
        %2604 = vmatprep.subr.mxu0 0.0
        %2605 = vmatpush1.msra.mxu0 0.0
        %2606 = vmatprep.subr.mxu0 0.0
        %2607 = vmatpush1.msra.mxu0 0.0
        %2608 = vmatprep.subr.mxu0 0.0
        %2609 = vmatpush1.msra.mxu0 0.0
        %2610 = vmatprep.subr.mxu0 0.0
        %2611 = vmatpush1.msra.mxu0 0.0
        %2612 = vmatprep.subr.mxu0 0.0
        %2613 = vmatpush1.msra.mxu0 0.0
        %2614 = vmatprep.subr.mxu0 0.0
        %2615 = vmatpush1.msra.mxu0 0.0
        %2616 = vmatprep.subr.mxu0 0.0
        %2617 = vmatpush1.msra.mxu0 0.0
        %2618 = vmatprep.subr.mxu0 0.0
        %2619 = vmatpush1.msra.mxu0 0.0
        %2620 = vmatprep.subr.mxu0 0.0
        %2621 = vmatpush1.msra.mxu0 0.0
        %2622 = vmatprep.subr.mxu0 0.0
        %2623 = vmatpush1.msra.mxu0 0.0
        %2624 = vmatprep.subr.mxu0 0.0
        %2625 = vmatpush1.msra.mxu0 0.0
        %2626 = vmatprep.subr.mxu0 0.0
        %2627 = vmatpush1.msra.mxu0 0.0
        %2628 = vmatprep.subr.mxu0 0.0
        %2629 = vmatpush1.msra.mxu0 0.0
        %2630 = vmatprep.subr.mxu0 0.0
        %2631 = vmatpush1.msra.mxu0 0.0
        %2632 = vmatprep.subr.mxu0 0.0
        %2633 = vmatpush1.msra.mxu0 0.0
        %2634 = vmatprep.subr.mxu0 0.0
        %2635 = vmatpush1.msra.mxu0 0.0
        %2636 = vmatprep.subr.mxu0 0.0
        %2637 = vmatpush1.msra.mxu0 0.0
        %2638 = vmatprep.subr.mxu0 0.0
        %2639 = vmatpush1.msra.mxu0 0.0
        %2640 = vmatprep.mubr.f32.mxu0 0.0
        %2641 = vmatmul.mubr.f32.gmra.mrb[0].mxu0 %v815
        %v2642 = vpop.f32.mrb[0].mxu0
        %v2643 = vadd.f32 0.0, %v2642
        %v2644 = vpop.f32.mrb[0].mxu0
        %2645 = vmatprep.mubr.f32.mxu0 0.0
        %2646 = vmatmul.mubr.f32.gmra.mrb[0].mxu0 %v818
        %v2647 = vpop.f32.mrb[0].mxu0
        %v2648 = vadd.f32 0.0, %v2647
        %v2649 = vpop.f32.mrb[0].mxu0
        %2650 = vdwg.mxu0
        %v2652 = vlaneseq
        %v2653 = vshrl.u32 %v2652, 7
        %v2654 = vsub.s32 0, %v2653
        %v2655 = vrot.slane %v2571, %v2654
        %v2657 = vadd.f32 %v2655, %v2643
        %v2658 = vadd.f32 %v2655, %v2648
        %v2659 = vld [vmem:[%s17] sm:$0xff]
        %v2660 = vld [vmem:[%s17 + $0x8] sm:$0xff]
        %2661 = vmatprep.subr.mxu0 0.0
        %2662 = vmatpush1.msra.mxu0 %v2659
        %2663 = vmatprep.subr.mxu0 0.0
        %2664 = vmatpush1.msra.mxu0 %v2660
        %2665 = vmatprep.subr.mxu0 0.0
        %2666 = vmatpush1.msra.mxu0 0.0
        %2667 = vmatprep.subr.mxu0 0.0
        %2668 = vmatpush1.msra.mxu0 0.0
        %2669 = vmatprep.subr.mxu0 0.0
        %2670 = vmatpush1.msra.mxu0 0.0
        %2671 = vmatprep.subr.mxu0 0.0
        %2672 = vmatpush1.msra.mxu0 0.0
        %2673 = vmatprep.subr.mxu0 0.0
        %2674 = vmatpush1.msra.mxu0 0.0
        %2675 = vmatprep.subr.mxu0 0.0
        %2676 = vmatpush1.msra.mxu0 0.0
        %2677 = vmatprep.subr.mxu0 0.0
        %2678 = vmatpush1.msra.mxu0 0.0
        %2679 = vmatprep.subr.mxu0 0.0
        %2680 = vmatpush1.msra.mxu0 0.0
        %2681 = vmatprep.subr.mxu0 0.0
        %2682 = vmatpush1.msra.mxu0 0.0
        %2683 = vmatprep.subr.mxu0 0.0
        %2684 = vmatpush1.msra.mxu0 0.0
        %2685 = vmatprep.subr.mxu0 0.0
        %2686 = vmatpush1.msra.mxu0 0.0
        %2687 = vmatprep.subr.mxu0 0.0
        %2688 = vmatpush1.msra.mxu0 0.0
        %2689 = vmatprep.subr.mxu0 0.0
        %2690 = vmatpush1.msra.mxu0 0.0
        %2691 = vmatprep.subr.mxu0 0.0
        %2692 = vmatpush1.msra.mxu0 0.0
        %2693 = vmatprep.subr.mxu0 0.0
        %2694 = vmatpush1.msra.mxu0 0.0
        %2695 = vmatprep.subr.mxu0 0.0
        %2696 = vmatpush1.msra.mxu0 0.0
        %2697 = vmatprep.subr.mxu0 0.0
        %2698 = vmatpush1.msra.mxu0 0.0
        %2699 = vmatprep.subr.mxu0 0.0
        %2700 = vmatpush1.msra.mxu0 0.0
        %2701 = vmatprep.subr.mxu0 0.0
        %2702 = vmatpush1.msra.mxu0 0.0
        %2703 = vmatprep.subr.mxu0 0.0
        %2704 = vmatpush1.msra.mxu0 0.0
        %2705 = vmatprep.subr.mxu0 0.0
        %2706 = vmatpush1.msra.mxu0 0.0
        %2707 = vmatprep.subr.mxu0 0.0
        %2708 = vmatpush1.msra.mxu0 0.0
        %2709 = vmatprep.subr.mxu0 0.0
        %2710 = vmatpush1.msra.mxu0 0.0
        %2711 = vmatprep.subr.mxu0 0.0
        %2712 = vmatpush1.msra.mxu0 0.0
        %2713 = vmatprep.subr.mxu0 0.0
        %2714 = vmatpush1.msra.mxu0 0.0
        %2715 = vmatprep.subr.mxu0 0.0
        %2716 = vmatpush1.msra.mxu0 0.0
        %2717 = vmatprep.subr.mxu0 0.0
        %2718 = vmatpush1.msra.mxu0 0.0
        %2719 = vmatprep.subr.mxu0 0.0
        %2720 = vmatpush1.msra.mxu0 0.0
        %2721 = vmatprep.subr.mxu0 0.0
        %2722 = vmatpush1.msra.mxu0 0.0
        %2723 = vmatprep.subr.mxu0 0.0
        %2724 = vmatpush1.msra.mxu0 0.0
        %2725 = vmatprep.mubr.f32.mxu0 0.0
        %2726 = vmatmul.mubr.f32.gmra.mrb[0].mxu0 %v1977
        %v2727 = vpop.f32.mrb[0].mxu0
        %v2728 = vadd.f32 0.0, %v2727
        %v2729 = vpop.f32.mrb[0].mxu0
        %2730 = vmatprep.mubr.f32.mxu0 0.0
        %2731 = vmatmul.mubr.f32.gmra.mrb[0].mxu0 %v1980
        %v2732 = vpop.f32.mrb[0].mxu0
        %v2733 = vadd.f32 0.0, %v2732
        %v2734 = vpop.f32.mrb[0].mxu0
        %2735 = vdwg.mxu0
        %v2736 = vadd.f32 %v2657, %v2728
        %v2737 = vadd.f32 %v2658, %v2733
        %v2738 = vld [vmem:[%s21] sm:$0x1]
        %v2739 = vld [vmem:[%s19] sm:$0x1f]
        %v2741 = vsel %vm820, %v2739, 0
        %2743 = vmatprep.subr.mxu0 0.0
        %2744 = vmatpush1.msra.mxu0 %v2741
        %2745 = vmatprep.subr.mxu0 0.0
        %2746 = vmatpush1.msra.mxu0 0.0
        %2747 = vmatprep.subr.mxu0 0.0
        %2748 = vmatpush1.msra.mxu0 0.0
        %2749 = vmatprep.subr.mxu0 0.0
        %2750 = vmatpush1.msra.mxu0 0.0
        %2751 = vmatprep.subr.mxu0 0.0
        %2752 = vmatpush1.msra.mxu0 0.0
        %2753 = vmatprep.subr.mxu0 0.0
        %2754 = vmatpush1.msra.mxu0 0.0
        %2755 = vmatprep.subr.mxu0 0.0
        %2756 = vmatpush1.msra.mxu0 0.0
        %2757 = vmatprep.subr.mxu0 0.0
        %2758 = vmatpush1.msra.mxu0 0.0
        %2759 = vmatprep.subr.mxu0 0.0
        %2760 = vmatpush1.msra.mxu0 0.0
        %2761 = vmatprep.subr.mxu0 0.0
        %2762 = vmatpush1.msra.mxu0 0.0
        %2763 = vmatprep.subr.mxu0 0.0
        %2764 = vmatpush1.msra.mxu0 0.0
        %2765 = vmatprep.subr.mxu0 0.0
        %2766 = vmatpush1.msra.mxu0 0.0
        %2767 = vmatprep.subr.mxu0 0.0
        %2768 = vmatpush1.msra.mxu0 0.0
        %2769 = vmatprep.subr.mxu0 0.0
        %2770 = vmatpush1.msra.mxu0 0.0
        %2771 = vmatprep.subr.mxu0 0.0
        %2772 = vmatpush1.msra.mxu0 0.0
        %2773 = vmatprep.subr.mxu0 0.0
        %2774 = vmatpush1.msra.mxu0 0.0
        %2775 = vmatprep.subr.mxu0 0.0
        %2776 = vmatpush1.msra.mxu0 0.0
        %2777 = vmatprep.subr.mxu0 0.0
        %2778 = vmatpush1.msra.mxu0 0.0
        %2779 = vmatprep.subr.mxu0 0.0
        %2780 = vmatpush1.msra.mxu0 0.0
        %2781 = vmatprep.subr.mxu0 0.0
        %2782 = vmatpush1.msra.mxu0 0.0
        %2783 = vmatprep.subr.mxu0 0.0
        %2784 = vmatpush1.msra.mxu0 0.0
        %2785 = vmatprep.subr.mxu0 0.0
        %2786 = vmatpush1.msra.mxu0 0.0
        %2787 = vmatprep.subr.mxu0 0.0
        %2788 = vmatpush1.msra.mxu0 0.0
        %2789 = vmatprep.subr.mxu0 0.0
        %2790 = vmatpush1.msra.mxu0 0.0
        %2791 = vmatprep.subr.mxu0 0.0
        %2792 = vmatpush1.msra.mxu0 0.0
        %2793 = vmatprep.subr.mxu0 0.0
        %2794 = vmatpush1.msra.mxu0 0.0
        %2795 = vmatprep.subr.mxu0 0.0
        %2796 = vmatpush1.msra.mxu0 0.0
        %2797 = vmatprep.subr.mxu0 0.0
        %2798 = vmatpush1.msra.mxu0 0.0
        %2799 = vmatprep.subr.mxu0 0.0
        %2800 = vmatpush1.msra.mxu0 0.0
        %2801 = vmatprep.subr.mxu0 0.0
        %2802 = vmatpush1.msra.mxu0 0.0
        %2803 = vmatprep.subr.mxu0 0.0
        %2804 = vmatpush1.msra.mxu0 0.0
        %2805 = vmatprep.subr.mxu0 0.0
        %2806 = vmatpush1.msra.mxu0 0.0
        %2807 = vmatprep.mubr.f32.mxu0 0.0
        %2808 = vmatmul.mubr.f32.gmra.mrb[0].mxu0 %v815
        %v2809 = vpop.f32.mrb[0].mxu0
        %v2810 = vadd.f32 0.0, %v2809
        %v2811 = vpop.f32.mrb[0].mxu0
        %2812 = vmatprep.mubr.f32.mxu0 0.0
        %2813 = vmatmul.mubr.f32.gmra.mrb[0].mxu0 %v818
        %v2814 = vpop.f32.mrb[0].mxu0
        %v2815 = vadd.f32 0.0, %v2814
        %v2816 = vpop.f32.mrb[0].mxu0
        %2817 = vdwg.mxu0
        %v2819 = vlaneseq
        %v2820 = vshrl.u32 %v2819, 7
        %v2821 = vsub.s32 0, %v2820
        %v2822 = vrot.slane %v2738, %v2821
        %v2824 = vadd.f32 %v2822, %v2810
        %v2825 = vadd.f32 %v2822, %v2815
        %v2826 = vld [vmem:[%s20] sm:$0xff]
        %v2827 = vld [vmem:[%s20 + $0x8] sm:$0xff]
        %2828 = vmatprep.subr.mxu0 0.0
        %2829 = vmatpush1.msra.mxu0 %v2826
        %2830 = vmatprep.subr.mxu0 0.0
        %2831 = vmatpush1.msra.mxu0 %v2827
        %2832 = vmatprep.subr.mxu0 0.0
        %2833 = vmatpush1.msra.mxu0 0.0
        %2834 = vmatprep.subr.mxu0 0.0
        %2835 = vmatpush1.msra.mxu0 0.0
        %2836 = vmatprep.subr.mxu0 0.0
        %2837 = vmatpush1.msra.mxu0 0.0
        %2838 = vmatprep.subr.mxu0 0.0
        %2839 = vmatpush1.msra.mxu0 0.0
        %2840 = vmatprep.subr.mxu0 0.0
        %2841 = vmatpush1.msra.mxu0 0.0
        %2842 = vmatprep.subr.mxu0 0.0
        %2843 = vmatpush1.msra.mxu0 0.0
        %2844 = vmatprep.subr.mxu0 0.0
        %2845 = vmatpush1.msra.mxu0 0.0
        %2846 = vmatprep.subr.mxu0 0.0
        %2847 = vmatpush1.msra.mxu0 0.0
        %2848 = vmatprep.subr.mxu0 0.0
        %2849 = vmatpush1.msra.mxu0 0.0
        %2850 = vmatprep.subr.mxu0 0.0
        %2851 = vmatpush1.msra.mxu0 0.0
        %2852 = vmatprep.subr.mxu0 0.0
        %2853 = vmatpush1.msra.mxu0 0.0
        %2854 = vmatprep.subr.mxu0 0.0
        %2855 = vmatpush1.msra.mxu0 0.0
        %2856 = vmatprep.subr.mxu0 0.0
        %2857 = vmatpush1.msra.mxu0 0.0
        %2858 = vmatprep.subr.mxu0 0.0
        %2859 = vmatpush1.msra.mxu0 0.0
        %2860 = vmatprep.subr.mxu0 0.0
        %2861 = vmatpush1.msra.mxu0 0.0
        %2862 = vmatprep.subr.mxu0 0.0
        %2863 = vmatpush1.msra.mxu0 0.0
        %2864 = vmatprep.subr.mxu0 0.0
        %2865 = vmatpush1.msra.mxu0 0.0
        %2866 = vmatprep.subr.mxu0 0.0
        %2867 = vmatpush1.msra.mxu0 0.0
        %2868 = vmatprep.subr.mxu0 0.0
        %2869 = vmatpush1.msra.mxu0 0.0
        %2870 = vmatprep.subr.mxu0 0.0
        %2871 = vmatpush1.msra.mxu0 0.0
        %2872 = vmatprep.subr.mxu0 0.0
        %2873 = vmatpush1.msra.mxu0 0.0
        %2874 = vmatprep.subr.mxu0 0.0
        %2875 = vmatpush1.msra.mxu0 0.0
        %2876 = vmatprep.subr.mxu0 0.0
        %2877 = vmatpush1.msra.mxu0 0.0
        %2878 = vmatprep.subr.mxu0 0.0
        %2879 = vmatpush1.msra.mxu0 0.0
        %2880 = vmatprep.subr.mxu0 0.0
        %2881 = vmatpush1.msra.mxu0 0.0
        %2882 = vmatprep.subr.mxu0 0.0
        %2883 = vmatpush1.msra.mxu0 0.0
        %2884 = vmatprep.subr.mxu0 0.0
        %2885 = vmatpush1.msra.mxu0 0.0
        %2886 = vmatprep.subr.mxu0 0.0
        %2887 = vmatpush1.msra.mxu0 0.0
        %2888 = vmatprep.subr.mxu0 0.0
        %2889 = vmatpush1.msra.mxu0 0.0
        %2890 = vmatprep.subr.mxu0 0.0
        %2891 = vmatpush1.msra.mxu0 0.0
        %2892 = vmatprep.mubr.f32.mxu0 0.0
        %2893 = vmatmul.mubr.f32.gmra.mrb[0].mxu0 %v1977
        %v2894 = vpop.f32.mrb[0].mxu0
        %v2895 = vadd.f32 0.0, %v2894
        %v2896 = vpop.f32.mrb[0].mxu0
        %2897 = vmatprep.mubr.f32.mxu0 0.0
        %2898 = vmatmul.mubr.f32.gmra.mrb[0].mxu0 %v1980
        %v2899 = vpop.f32.mrb[0].mxu0
        %v2900 = vadd.f32 0.0, %v2899
        %v2901 = vpop.f32.mrb[0].mxu0
        %2902 = vdwg.mxu0
        %v2903 = vadd.f32 %v2824, %v2895
        %v2904 = vadd.f32 %v2825, %v2900
        %v2906 = vsel %vm1004, %v2904, 0
        %2908 = vmatprep.subr.mxu0 0.0
        %2909 = vmatpush1.msra.mxu0 %v2903
        %2910 = vmatprep.subr.mxu0 0.0
        %2911 = vmatpush1.msra.mxu0 %v2906
        %2912 = vmatprep.subr.mxu0 0.0
        %2913 = vmatpush1.msra.mxu0 0.0
        %2914 = vmatprep.subr.mxu0 0.0
        %2915 = vmatpush1.msra.mxu0 0.0
        %2916 = vmatprep.subr.mxu0 0.0
        %2917 = vmatpush1.msra.mxu0 0.0
        %2918 = vmatprep.subr.mxu0 0.0
        %2919 = vmatpush1.msra.mxu0 0.0
        %2920 = vmatprep.subr.mxu0 0.0
        %2921 = vmatpush1.msra.mxu0 0.0
        %2922 = vmatprep.subr.mxu0 0.0
        %2923 = vmatpush1.msra.mxu0 0.0
        %2924 = vmatprep.subr.mxu0 0.0
        %2925 = vmatpush1.msra.mxu0 0.0
        %2926 = vmatprep.subr.mxu0 0.0
        %2927 = vmatpush1.msra.mxu0 0.0
        %2928 = vmatprep.subr.mxu0 0.0
        %2929 = vmatpush1.msra.mxu0 0.0
        %2930 = vmatprep.subr.mxu0 0.0
        %2931 = vmatpush1.msra.mxu0 0.0
        %2932 = vmatprep.subr.mxu0 0.0
        %2933 = vmatpush1.msra.mxu0 0.0
        %2934 = vmatprep.subr.mxu0 0.0
        %2935 = vmatpush1.msra.mxu0 0.0
        %2936 = vmatprep.subr.mxu0 0.0
        %2937 = vmatpush1.msra.mxu0 0.0
        %2938 = vmatprep.subr.mxu0 0.0
        %2939 = vmatpush1.msra.mxu0 0.0
        %2940 = vmatprep.subr.mxu0 0.0
        %2941 = vmatpush1.msra.mxu0 0.0
        %2942 = vmatprep.subr.mxu0 0.0
        %2943 = vmatpush1.msra.mxu0 0.0
        %2944 = vmatprep.subr.mxu0 0.0
        %2945 = vmatpush1.msra.mxu0 0.0
        %2946 = vmatprep.subr.mxu0 0.0
        %2947 = vmatpush1.msra.mxu0 0.0
        %2948 = vmatprep.subr.mxu0 0.0
        %2949 = vmatpush1.msra.mxu0 0.0
        %2950 = vmatprep.subr.mxu0 0.0
        %2951 = vmatpush1.msra.mxu0 0.0
        %2952 = vmatprep.subr.mxu0 0.0
        %2953 = vmatpush1.msra.mxu0 0.0
        %2954 = vmatprep.subr.mxu0 0.0
        %2955 = vmatpush1.msra.mxu0 0.0
        %2956 = vmatprep.subr.mxu0 0.0
        %2957 = vmatpush1.msra.mxu0 0.0
        %2958 = vmatprep.subr.mxu0 0.0
        %2959 = vmatpush1.msra.mxu0 0.0
        %2960 = vmatprep.subr.mxu0 0.0
        %2961 = vmatpush1.msra.mxu0 0.0
        %2962 = vmatprep.subr.mxu0 0.0
        %2963 = vmatpush1.msra.mxu0 0.0
        %2964 = vmatprep.subr.mxu0 0.0
        %2965 = vmatpush1.msra.mxu0 0.0
        %2966 = vmatprep.subr.mxu0 0.0
        %2967 = vmatpush1.msra.mxu0 0.0
        %2968 = vmatprep.subr.mxu0 0.0
        %2969 = vmatpush1.msra.mxu0 0.0
        %2970 = vmatprep.subr.mxu0 0.0
        %2971 = vmatpush1.msra.mxu0 0.0
        %2972 = vmatprep.mubr.f32.mxu0 0.0
        %2973 = vmatmul.mubr.f32.gmra.mrb[0].mxu0 %v999
        %v2974 = vpop.f32.mrb[0].mxu0
        %v2975 = vadd.f32 0.0, %v2974
        %v2976 = vpop.f32.mrb[0].mxu0
        %2977 = vmatprep.mubr.f32.mxu0 0.0
        %2978 = vmatmul.mubr.f32.gmra.mrb[0].mxu0 %v1002
        %v2979 = vpop.f32.mrb[0].mxu0
        %v2980 = vadd.f32 0.0, %v2979
        %v2981 = vpop.f32.mrb[0].mxu0
        %2982 = vdwg.mxu0
        %v2983 = vadd.f32 %v2736, %v2975
        %v2984 = vadd.f32 %v2737, %v2980
        %2986 = vrot.lane.b32.xlu0 %v2903, 112
        %v2987 = vpop.permute.xlu0 %2986
        %2988 = vrot.lane.b32.xlu0 %v2904, 112
        %v2989 = vpop.permute.xlu0 %2988
        %v2991 = vsel %vm1004, %v2989, 0
        %2993 = vmatprep.subr.mxu0 0.0
        %2994 = vmatpush1.msra.mxu0 %v2987
        %2995 = vmatprep.subr.mxu0 0.0
        %2996 = vmatpush1.msra.mxu0 %v2991
        %2997 = vmatprep.subr.mxu0 0.0
        %2998 = vmatpush1.msra.mxu0 0.0
        %2999 = vmatprep.subr.mxu0 0.0
        %3000 = vmatpush1.msra.mxu0 0.0
        %3001 = vmatprep.subr.mxu0 0.0
        %3002 = vmatpush1.msra.mxu0 0.0
        %3003 = vmatprep.subr.mxu0 0.0
        %3004 = vmatpush1.msra.mxu0 0.0
        %3005 = vmatprep.subr.mxu0 0.0
        %3006 = vmatpush1.msra.mxu0 0.0
        %3007 = vmatprep.subr.mxu0 0.0
        %3008 = vmatpush1.msra.mxu0 0.0
        %3009 = vmatprep.subr.mxu0 0.0
        %3010 = vmatpush1.msra.mxu0 0.0
        %3011 = vmatprep.subr.mxu0 0.0
        %3012 = vmatpush1.msra.mxu0 0.0
        %3013 = vmatprep.subr.mxu0 0.0
        %3014 = vmatpush1.msra.mxu0 0.0
        %3015 = vmatprep.subr.mxu0 0.0
        %3016 = vmatpush1.msra.mxu0 0.0
        %3017 = vmatprep.subr.mxu0 0.0
        %3018 = vmatpush1.msra.mxu0 0.0
        %3019 = vmatprep.subr.mxu0 0.0
        %3020 = vmatpush1.msra.mxu0 0.0
        %3021 = vmatprep.subr.mxu0 0.0
        %3022 = vmatpush1.msra.mxu0 0.0
        %3023 = vmatprep.subr.mxu0 0.0
        %3024 = vmatpush1.msra.mxu0 0.0
        %3025 = vmatprep.subr.mxu0 0.0
        %3026 = vmatpush1.msra.mxu0 0.0
        %3027 = vmatprep.subr.mxu0 0.0
        %3028 = vmatpush1.msra.mxu0 0.0
        %3029 = vmatprep.subr.mxu0 0.0
        %3030 = vmatpush1.msra.mxu0 0.0
        %3031 = vmatprep.subr.mxu0 0.0
        %3032 = vmatpush1.msra.mxu0 0.0
        %3033 = vmatprep.subr.mxu0 0.0
        %3034 = vmatpush1.msra.mxu0 0.0
        %3035 = vmatprep.subr.mxu0 0.0
        %3036 = vmatpush1.msra.mxu0 0.0
        %3037 = vmatprep.subr.mxu0 0.0
        %3038 = vmatpush1.msra.mxu0 0.0
        %3039 = vmatprep.subr.mxu0 0.0
        %3040 = vmatpush1.msra.mxu0 0.0
        %3041 = vmatprep.subr.mxu0 0.0
        %3042 = vmatpush1.msra.mxu0 0.0
        %3043 = vmatprep.subr.mxu0 0.0
        %3044 = vmatpush1.msra.mxu0 0.0
        %3045 = vmatprep.subr.mxu0 0.0
        %3046 = vmatpush1.msra.mxu0 0.0
        %3047 = vmatprep.subr.mxu0 0.0
        %3048 = vmatpush1.msra.mxu0 0.0
        %3049 = vmatprep.subr.mxu0 0.0
        %3050 = vmatpush1.msra.mxu0 0.0
        %3051 = vmatprep.subr.mxu0 0.0
        %3052 = vmatpush1.msra.mxu0 0.0
        %3053 = vmatprep.subr.mxu0 0.0
        %3054 = vmatpush1.msra.mxu0 0.0
        %3055 = vmatprep.subr.mxu0 0.0
        %3056 = vmatpush1.msra.mxu0 0.0
        %3057 = vmatprep.mubr.f32.mxu0 0.0
        %3058 = vmatmul.mubr.f32.gmra.mrb[0].mxu0 %v1095
        %v3059 = vpop.f32.mrb[0].mxu0
        %v3060 = vadd.f32 0.0, %v3059
        %v3061 = vpop.f32.mrb[0].mxu0
        %3062 = vmatprep.mubr.f32.mxu0 0.0
        %3063 = vmatmul.mubr.f32.gmra.mrb[0].mxu0 %v1098
        %v3064 = vpop.f32.mrb[0].mxu0
        %v3065 = vadd.f32 0.0, %v3064
        %v3066 = vpop.f32.mrb[0].mxu0
        %3067 = vdwg.mxu0
        %v3068 = vadd.f32 %v2983, %v3060
        %v3069 = vadd.f32 %v2984, %v3065
        %3070 = vrot.lane.b32.xlu0 %v2903, 96
        %v3071 = vpop.permute.xlu0 %3070
        %3072 = vrot.lane.b32.xlu0 %v2904, 96
        %v3073 = vpop.permute.xlu0 %3072
        %v3075 = vsel %vm1004, %v3073, 0
        %3077 = vmatprep.subr.mxu0 0.0
        %3078 = vmatpush1.msra.mxu0 %v3071
        %3079 = vmatprep.subr.mxu0 0.0
        %3080 = vmatpush1.msra.mxu0 %v3075
        %3081 = vmatprep.subr.mxu0 0.0
        %3082 = vmatpush1.msra.mxu0 0.0
        %3083 = vmatprep.subr.mxu0 0.0
        %3084 = vmatpush1.msra.mxu0 0.0
        %3085 = vmatprep.subr.mxu0 0.0
        %3086 = vmatpush1.msra.mxu0 0.0
        %3087 = vmatprep.subr.mxu0 0.0
        %3088 = vmatpush1.msra.mxu0 0.0
        %3089 = vmatprep.subr.mxu0 0.0
        %3090 = vmatpush1.msra.mxu0 0.0
        %3091 = vmatprep.subr.mxu0 0.0
        %3092 = vmatpush1.msra.mxu0 0.0
        %3093 = vmatprep.subr.mxu0 0.0
        %3094 = vmatpush1.msra.mxu0 0.0
        %3095 = vmatprep.subr.mxu0 0.0
        %3096 = vmatpush1.msra.mxu0 0.0
        %3097 = vmatprep.subr.mxu0 0.0
        %3098 = vmatpush1.msra.mxu0 0.0
        %3099 = vmatprep.subr.mxu0 0.0
        %3100 = vmatpush1.msra.mxu0 0.0
        %3101 = vmatprep.subr.mxu0 0.0
        %3102 = vmatpush1.msra.mxu0 0.0
        %3103 = vmatprep.subr.mxu0 0.0
        %3104 = vmatpush1.msra.mxu0 0.0
        %3105 = vmatprep.subr.mxu0 0.0
        %3106 = vmatpush1.msra.mxu0 0.0
        %3107 = vmatprep.subr.mxu0 0.0
        %3108 = vmatpush1.msra.mxu0 0.0
        %3109 = vmatprep.subr.mxu0 0.0
        %3110 = vmatpush1.msra.mxu0 0.0
        %3111 = vmatprep.subr.mxu0 0.0
        %3112 = vmatpush1.msra.mxu0 0.0
        %3113 = vmatprep.subr.mxu0 0.0
        %3114 = vmatpush1.msra.mxu0 0.0
        %3115 = vmatprep.subr.mxu0 0.0
        %3116 = vmatpush1.msra.mxu0 0.0
        %3117 = vmatprep.subr.mxu0 0.0
        %3118 = vmatpush1.msra.mxu0 0.0
        %3119 = vmatprep.subr.mxu0 0.0
        %3120 = vmatpush1.msra.mxu0 0.0
        %3121 = vmatprep.subr.mxu0 0.0
        %3122 = vmatpush1.msra.mxu0 0.0
        %3123 = vmatprep.subr.mxu0 0.0
        %3124 = vmatpush1.msra.mxu0 0.0
        %3125 = vmatprep.subr.mxu0 0.0
        %3126 = vmatpush1.msra.mxu0 0.0
        %3127 = vmatprep.subr.mxu0 0.0
        %3128 = vmatpush1.msra.mxu0 0.0
        %3129 = vmatprep.subr.mxu0 0.0
        %3130 = vmatpush1.msra.mxu0 0.0
        %3131 = vmatprep.subr.mxu0 0.0
        %3132 = vmatpush1.msra.mxu0 0.0
        %3133 = vmatprep.subr.mxu0 0.0
        %3134 = vmatpush1.msra.mxu0 0.0
        %3135 = vmatprep.subr.mxu0 0.0
        %3136 = vmatpush1.msra.mxu0 0.0
        %3137 = vmatprep.subr.mxu0 0.0
        %3138 = vmatpush1.msra.mxu0 0.0
        %3139 = vmatprep.subr.mxu0 0.0
        %3140 = vmatpush1.msra.mxu0 0.0
        %3141 = vmatprep.mubr.f32.mxu0 0.0
        %3142 = vmatmul.mubr.f32.gmra.mrb[0].mxu0 %v1188
        %v3143 = vpop.f32.mrb[0].mxu0
        %v3144 = vadd.f32 0.0, %v3143
        %v3145 = vpop.f32.mrb[0].mxu0
        %3146 = vmatprep.mubr.f32.mxu0 0.0
        %3147 = vmatmul.mubr.f32.gmra.mrb[0].mxu0 %v1191
        %v3148 = vpop.f32.mrb[0].mxu0
        %v3149 = vadd.f32 0.0, %v3148
        %v3150 = vpop.f32.mrb[0].mxu0
        %3151 = vdwg.mxu0
        %v3152 = vadd.f32 %v3068, %v3144
        %v3153 = vadd.f32 %v3069, %v3149
        %3154 = vrot.lane.b32.xlu0 %v2903, 80
        %v3155 = vpop.permute.xlu0 %3154
        %3156 = vrot.lane.b32.xlu0 %v2904, 80
        %v3157 = vpop.permute.xlu0 %3156
        %v3159 = vsel %vm1004, %v3157, 0
        %3161 = vmatprep.subr.mxu0 0.0
        %3162 = vmatpush1.msra.mxu0 %v3155
        %3163 = vmatprep.subr.mxu0 0.0
        %3164 = vmatpush1.msra.mxu0 %v3159
        %3165 = vmatprep.subr.mxu0 0.0
        %3166 = vmatpush1.msra.mxu0 0.0
        %3167 = vmatprep.subr.mxu0 0.0
        %3168 = vmatpush1.msra.mxu0 0.0
        %3169 = vmatprep.subr.mxu0 0.0
        %3170 = vmatpush1.msra.mxu0 0.0
        %3171 = vmatprep.subr.mxu0 0.0
        %3172 = vmatpush1.msra.mxu0 0.0
        %3173 = vmatprep.subr.mxu0 0.0
        %3174 = vmatpush1.msra.mxu0 0.0
        %3175 = vmatprep.subr.mxu0 0.0
        %3176 = vmatpush1.msra.mxu0 0.0
        %3177 = vmatprep.subr.mxu0 0.0
        %3178 = vmatpush1.msra.mxu0 0.0
        %3179 = vmatprep.subr.mxu0 0.0
        %3180 = vmatpush1.msra.mxu0 0.0
        %3181 = vmatprep.subr.mxu0 0.0
        %3182 = vmatpush1.msra.mxu0 0.0
        %3183 = vmatprep.subr.mxu0 0.0
        %3184 = vmatpush1.msra.mxu0 0.0
        %3185 = vmatprep.subr.mxu0 0.0
        %3186 = vmatpush1.msra.mxu0 0.0
        %3187 = vmatprep.subr.mxu0 0.0
        %3188 = vmatpush1.msra.mxu0 0.0
        %3189 = vmatprep.subr.mxu0 0.0
        %3190 = vmatpush1.msra.mxu0 0.0
        %3191 = vmatprep.subr.mxu0 0.0
        %3192 = vmatpush1.msra.mxu0 0.0
        %3193 = vmatprep.subr.mxu0 0.0
        %3194 = vmatpush1.msra.mxu0 0.0
        %3195 = vmatprep.subr.mxu0 0.0
        %3196 = vmatpush1.msra.mxu0 0.0
        %3197 = vmatprep.subr.mxu0 0.0
        %3198 = vmatpush1.msra.mxu0 0.0
        %3199 = vmatprep.subr.mxu0 0.0
        %3200 = vmatpush1.msra.mxu0 0.0
        %3201 = vmatprep.subr.mxu0 0.0
        %3202 = vmatpush1.msra.mxu0 0.0
        %3203 = vmatprep.subr.mxu0 0.0
        %3204 = vmatpush1.msra.mxu0 0.0
        %3205 = vmatprep.subr.mxu0 0.0
        %3206 = vmatpush1.msra.mxu0 0.0
        %3207 = vmatprep.subr.mxu0 0.0
        %3208 = vmatpush1.msra.mxu0 0.0
        %3209 = vmatprep.subr.mxu0 0.0
        %3210 = vmatpush1.msra.mxu0 0.0
        %3211 = vmatprep.subr.mxu0 0.0
        %3212 = vmatpush1.msra.mxu0 0.0
        %3213 = vmatprep.subr.mxu0 0.0
        %3214 = vmatpush1.msra.mxu0 0.0
        %3215 = vmatprep.subr.mxu0 0.0
        %3216 = vmatpush1.msra.mxu0 0.0
        %3217 = vmatprep.subr.mxu0 0.0
        %3218 = vmatpush1.msra.mxu0 0.0
        %3219 = vmatprep.subr.mxu0 0.0
        %3220 = vmatpush1.msra.mxu0 0.0
        %3221 = vmatprep.subr.mxu0 0.0
        %3222 = vmatpush1.msra.mxu0 0.0
        %3223 = vmatprep.subr.mxu0 0.0
        %3224 = vmatpush1.msra.mxu0 0.0
        %3225 = vmatprep.mubr.f32.mxu0 0.0
        %3226 = vmatmul.mubr.f32.gmra.mrb[0].mxu0 %v1281
        %v3227 = vpop.f32.mrb[0].mxu0
        %v3228 = vadd.f32 0.0, %v3227
        %v3229 = vpop.f32.mrb[0].mxu0
        %3230 = vmatprep.mubr.f32.mxu0 0.0
        %3231 = vmatmul.mubr.f32.gmra.mrb[0].mxu0 %v1284
        %v3232 = vpop.f32.mrb[0].mxu0
        %v3233 = vadd.f32 0.0, %v3232
        %v3234 = vpop.f32.mrb[0].mxu0
        %3235 = vdwg.mxu0
        %v3236 = vadd.f32 %v3152, %v3228
        %v3237 = vadd.f32 %v3153, %v3233
        %v3238 = vxor.u32 %v3236, 2147483648
        %v3239 = vxor.u32 %v3237, 2147483648
        %v3240 = vmul.f32 %v3238, 1.442695
        %v3241 = vpow.pop %v3240
        %v3242 = vmul.f32 %v3239, 1.442695
        %v3243 = vpow.pop %v3242
        %v3244 = vadd.f32 %v3241, 1.0
        %v3245 = vadd.f32 %v3243, 1.0
        %v3246 = vrcp.pop %v3244
        %v3247 = vmul.f32 1.0, %v3246
        %v3248 = vrcp.pop %v3245
        %v3249 = vmul.f32 1.0, %v3248
        %v3250 = vmul.f32 %v2568, %v3247
        %v3251 = vmul.f32 %v2570, %v3249
        %v3252 = vsel %vm1975, %v3250, 0.0
        %vm3253 = vcmask 122880
        %v3254 = vsel %vm3253, %v3251, 0.0
        %v3255 = vadd.f32 %v3252, %v3254
        %v3256 = vrot.slane %v3255, 4
        %v3257 = vadd.f32 %v3255, %v3256
        %v3258 = vrot.slane %v3257, 2
        %v3259 = vadd.f32 %v3257, %v3258
        %v3260 = vrot.slane %v3259, 1
        %v3261 = vadd.f32 %v3259, %v3260
        %v3262 = vtanh.pop %v3261
        %v3263 = vld [vmem:[%s22] sm:$0xff]
        %v3264 = vld [vmem:[%s22 + $0x8] sm:$0xff]
        %v3265 = vld [vmem:[%s23] sm:$0x1]
        %v3267 = vsel %vm1975, %v3262, 0
        %3269 = vmatprep.subr.mxu0 0.0
        %3270 = vmatpush1.msra.mxu0 %v3263
        %3271 = vmatprep.subr.mxu0 0.0
        %3272 = vmatpush1.msra.mxu0 %v3264
        %3273 = vmatprep.subr.mxu0 0.0
        %3274 = vmatpush1.msra.mxu0 0.0
        %3275 = vmatprep.subr.mxu0 0.0
        %3276 = vmatpush1.msra.mxu0 0.0
        %3277 = vmatprep.subr.mxu0 0.0
        %3278 = vmatpush1.msra.mxu0 0.0
        %3279 = vmatprep.subr.mxu0 0.0
        %3280 = vmatpush1.msra.mxu0 0.0
        %3281 = vmatprep.subr.mxu0 0.0
        %3282 = vmatpush1.msra.mxu0 0.0
        %3283 = vmatprep.subr.mxu0 0.0
        %3284 = vmatpush1.msra.mxu0 0.0
        %3285 = vmatprep.subr.mxu0 0.0
        %3286 = vmatpush1.msra.mxu0 0.0
        %3287 = vmatprep.subr.mxu0 0.0
        %3288 = vmatpush1.msra.mxu0 0.0
        %3289 = vmatprep.subr.mxu0 0.0
        %3290 = vmatpush1.msra.mxu0 0.0
        %3291 = vmatprep.subr.mxu0 0.0
        %3292 = vmatpush1.msra.mxu0 0.0
        %3293 = vmatprep.subr.mxu0 0.0
        %3294 = vmatpush1.msra.mxu0 0.0
        %3295 = vmatprep.subr.mxu0 0.0
        %3296 = vmatpush1.msra.mxu0 0.0
        %3297 = vmatprep.subr.mxu0 0.0
        %3298 = vmatpush1.msra.mxu0 0.0
        %3299 = vmatprep.subr.mxu0 0.0
        %3300 = vmatpush1.msra.mxu0 0.0
        %3301 = vmatprep.subr.mxu0 0.0
        %3302 = vmatpush1.msra.mxu0 0.0
        %3303 = vmatprep.subr.mxu0 0.0
        %3304 = vmatpush1.msra.mxu0 0.0
        %3305 = vmatprep.subr.mxu0 0.0
        %3306 = vmatpush1.msra.mxu0 0.0
        %3307 = vmatprep.subr.mxu0 0.0
        %3308 = vmatpush1.msra.mxu0 0.0
        %3309 = vmatprep.subr.mxu0 0.0
        %3310 = vmatpush1.msra.mxu0 0.0
        %3311 = vmatprep.subr.mxu0 0.0
        %3312 = vmatpush1.msra.mxu0 0.0
        %3313 = vmatprep.subr.mxu0 0.0
        %3314 = vmatpush1.msra.mxu0 0.0
        %3315 = vmatprep.subr.mxu0 0.0
        %3316 = vmatpush1.msra.mxu0 0.0
        %3317 = vmatprep.subr.mxu0 0.0
        %3318 = vmatpush1.msra.mxu0 0.0
        %3319 = vmatprep.subr.mxu0 0.0
        %3320 = vmatpush1.msra.mxu0 0.0
        %3321 = vmatprep.subr.mxu0 0.0
        %3322 = vmatpush1.msra.mxu0 0.0
        %3323 = vmatprep.subr.mxu0 0.0
        %3324 = vmatpush1.msra.mxu0 0.0
        %3325 = vmatprep.subr.mxu0 0.0
        %3326 = vmatpush1.msra.mxu0 0.0
        %3327 = vmatprep.subr.mxu0 0.0
        %3328 = vmatpush1.msra.mxu0 0.0
        %3329 = vmatprep.subr.mxu0 0.0
        %3330 = vmatpush1.msra.mxu0 0.0
        %3331 = vmatprep.subr.mxu0 0.0
        %3332 = vmatpush1.msra.mxu0 0.0
        %3333 = vmatprep.mubr.f32.mxu0 0.0
        %3334 = vmatmul.mubr.f32.gmra.mrb[0].mxu0 %v3267
        %v3335 = vpop.f32.mrb[0].mxu0
        %v3336 = vadd.f32 %v3265, %v3335
        %v3337 = vpop.f32.mrb[0].mxu0
        %3338 = vdwg.mxu0
        %v3339 = vtanh.pop %v3336
        %v3340 = vld [vmem:[%s24] sm:$0xff]
        %v3341 = vld [vmem:[%s24 + $0x8] sm:$0xff]
        %v3342 = vld [vmem:[%s24 + $0x10] sm:$0xff]
        %v3343 = vld [vmem:[%s24 + $0x18] sm:$0xff]
        %v3344 = vld [vmem:[%s25] sm:$0x1]
        %v3346 = vsel %vm1372, %v3339, 0
        %3348 = vmatprep.subr.mxu0 0.0
        %3349 = vmatpush1.msra.mxu0 %v3340
        %3350 = vmatprep.subr.mxu0 0.0
        %3351 = vmatpush1.msra.mxu0 %v3341
        %3352 = vmatprep.subr.mxu0 0.0
        %3353 = vmatpush1.msra.mxu0 %v3342
        %3354 = vmatprep.subr.mxu0 0.0
        %3355 = vmatpush1.msra.mxu0 %v3343
        %3356 = vmatprep.subr.mxu0 0.0
        %3357 = vmatpush1.msra.mxu0 0.0
        %3358 = vmatprep.subr.mxu0 0.0
        %3359 = vmatpush1.msra.mxu0 0.0
        %3360 = vmatprep.subr.mxu0 0.0
        %3361 = vmatpush1.msra.mxu0 0.0
        %3362 = vmatprep.subr.mxu0 0.0
        %3363 = vmatpush1.msra.mxu0 0.0
        %3364 = vmatprep.subr.mxu0 0.0
        %3365 = vmatpush1.msra.mxu0 0.0
        %3366 = vmatprep.subr.mxu0 0.0
        %3367 = vmatpush1.msra.mxu0 0.0
        %3368 = vmatprep.subr.mxu0 0.0
        %3369 = vmatpush1.msra.mxu0 0.0
        %3370 = vmatprep.subr.mxu0 0.0
        %3371 = vmatpush1.msra.mxu0 0.0
        %3372 = vmatprep.subr.mxu0 0.0
        %3373 = vmatpush1.msra.mxu0 0.0
        %3374 = vmatprep.subr.mxu0 0.0
        %3375 = vmatpush1.msra.mxu0 0.0
        %3376 = vmatprep.subr.mxu0 0.0
        %3377 = vmatpush1.msra.mxu0 0.0
        %3378 = vmatprep.subr.mxu0 0.0
        %3379 = vmatpush1.msra.mxu0 0.0
        %3380 = vmatprep.subr.mxu0 0.0
        %3381 = vmatpush1.msra.mxu0 0.0
        %3382 = vmatprep.subr.mxu0 0.0
        %3383 = vmatpush1.msra.mxu0 0.0
        %3384 = vmatprep.subr.mxu0 0.0
        %3385 = vmatpush1.msra.mxu0 0.0
        %3386 = vmatprep.subr.mxu0 0.0
        %3387 = vmatpush1.msra.mxu0 0.0
        %3388 = vmatprep.subr.mxu0 0.0
        %3389 = vmatpush1.msra.mxu0 0.0
        %3390 = vmatprep.subr.mxu0 0.0
        %3391 = vmatpush1.msra.mxu0 0.0
        %3392 = vmatprep.subr.mxu0 0.0
        %3393 = vmatpush1.msra.mxu0 0.0
        %3394 = vmatprep.subr.mxu0 0.0
        %3395 = vmatpush1.msra.mxu0 0.0
        %3396 = vmatprep.subr.mxu0 0.0
        %3397 = vmatpush1.msra.mxu0 0.0
        %3398 = vmatprep.subr.mxu0 0.0
        %3399 = vmatpush1.msra.mxu0 0.0
        %3400 = vmatprep.subr.mxu0 0.0
        %3401 = vmatpush1.msra.mxu0 0.0
        %3402 = vmatprep.subr.mxu0 0.0
        %3403 = vmatpush1.msra.mxu0 0.0
        %3404 = vmatprep.subr.mxu0 0.0
        %3405 = vmatpush1.msra.mxu0 0.0
        %3406 = vmatprep.subr.mxu0 0.0
        %3407 = vmatpush1.msra.mxu0 0.0
        %3408 = vmatprep.subr.mxu0 0.0
        %3409 = vmatpush1.msra.mxu0 0.0
        %3410 = vmatprep.subr.mxu0 0.0
        %3411 = vmatpush1.msra.mxu0 0.0
        %3412 = vmatprep.mubr.f32.mxu0 0.0
        %3413 = vmatmul.mubr.f32.gmra.mrb[0].mxu0 %v3346
        %v3414 = vpop.f32.mrb[0].mxu0
        %v3415 = vadd.f32 %v3344, %v3414
        %v3416 = vpop.f32.mrb[0].mxu0
        %3417 = vdwg.mxu0
        %3418 = vst [vmem:[%s798] sm:$0x1] %v3415
        %s3419 = sand.u32 %s604, 1
        %s3420 = scalar_lea.sflag [#allocation3], %s3419
        %s3421 = sand.u32 %s604, 1
        %s3422 = scalar_lea.vmem [#allocation2], %s3421
        // Predicated region
        $region125: #{tpu_custom_call.1} parent=123 // pred_check
          %p3423 = pneg %p614
        $region126: #{tpu_custom_call.1} parent=123 // pred_check_branch
          %3425 = sbr.rel (%p3423) target = $region128
        $region127: #{tpu_custom_call.1} parent=123 // pred_region
          %s3427 = ssub.s32 16, 16
          %3428 = vsyncadd %s3420, %s3427
          %s3429 = smul.addr %s40, 16
          %s3430 = scalar_lea.hbm %s26, %s3429
          %s3432 = sshll.u32 %s3422, 4
          %s3433 = int_to_ptr.vmem [resolvable:$true] %s3432
          %3435 = dma.vmem_to_hbm [thread:$0]  %s3433, 16, %s3430, %s3420
        $region128: #{tpu_custom_call.1} parent=123 // pred_fallthru
          _
      $region124: #{tpu_custom_call.1} parent=5 // pred_fallthru
        _
      %p3436 = scmp.le.s32.totalorder 2, %s35
      // Predicated region
      $region129: #{tpu_custom_call.1} parent=5 // pred_check
        %p3437 = pneg %p3436
      $region130: #{tpu_custom_call.1} parent=5 // pred_check_branch
        %3439 = sbr.rel (%p3437) target = $region132
      $region131: #{tpu_custom_call.1} parent=5 // pred_region
        %s3440 = ssub.s32 %s35, 2
        // Predicated region
        $region133: #{tpu_custom_call.1} parent=131 // pred_check
          %p3441 = pneg %p620
        $region134: #{tpu_custom_call.1} parent=131 // pred_check_branch
          %3443 = sbr.rel (%p3441) target = $region136
        $region135: #{tpu_custom_call.1} parent=131 // pred_region
          %s3444 = sand.u32 %s605, 1
          %s3445 = scalar_lea.sflag [#allocation3], %s3444
          %s3446 = sand.u32 %s605, 1
          %s3447 = scalar_lea.vmem [#allocation2], %s3446
          %3448 = dma.done %s3445, 16
        $region136: #{tpu_custom_call.1} parent=131 // pred_fallthru
          _
      $region132: #{tpu_custom_call.1} parent=5 // pred_fallthru
        _
    $region6: #{tpu_custom_call.1} parent=1 // loop_footer
      %s39 = sadd.s32 1, %s35
    $region7: #{tpu_custom_call.1} parent=1 // loop_footer_branch
      %34 = sbr.rel target = $region3
    $region8: #{tpu_custom_call.1} parent=1 // loop_exit
      _
    %3449 = vsyncpa [#allocation3], 1
    %s3450 = scalar_lea.sflag [#allocation3], 1
    %3451 = vsyncpa %s3450, 1

</llo_original>
